<compile_context>
chip_gen: v7x
topology: tpu7x:2x2x1
jax: 0.10.0
libtpu: 0.0.40
codegen_flags: <defaults>
</compile_context>

<pallas_src>
import numpy as np
import jax
import jax.numpy as jnp
from jax.experimental import pallas as pl
from jax.experimental.pallas import tpu as pltpu

NEG_SLOPE = 0.01  # F.leaky_relu default negative_slope


def _leaky(x):
    return jnp.where(x >= 0, x, NEG_SLOPE * x)


# ---------------------------------------------------------------------------
# Fused kernel: one grid step == one batch tile (features on sublanes, batch
# tile on lanes).
# ---------------------------------------------------------------------------
def convnet_kernel(xt_ref, w1_ref, b1_ref, w2_ref, b2_ref,
                   fw1_ref, fb1_ref, fw2_ref, fb2_ref, fw3_ref, fb3_ref,
                   o_ref):
    blk1 = w1_ref.shape[0] // 4      # rows per pool1 candidate block (384)
    blk2 = w2_ref.shape[0] // 4      # rows per pool2 candidate block (128)

    xt = xt_ref[...]                                             # (256, TB)

    # conv1 + bias + leaky: rows = 4 pool-candidate blocks of (c, a, b)
    y1 = _leaky(jnp.dot(w1_ref[...], xt,
                        preferred_element_type=jnp.float32) + b1_ref[...])
    # pool1: elementwise max of the 4 sublane-aligned candidate blocks
    p1 = jnp.maximum(
        jnp.maximum(y1[0 * blk1:1 * blk1], y1[1 * blk1:2 * blk1]),
        jnp.maximum(y1[2 * blk1:3 * blk1], y1[3 * blk1:4 * blk1]))  # (384, TB)

    # conv2 (only the 2x2 window feeding pool2) + bias + leaky
    y2 = _leaky(jnp.dot(w2_ref[...], p1,
                        preferred_element_type=jnp.float32) + b2_ref[...])
    # pool2 + NCHW flatten: max of the 4 blocks; valid rows 0..15 are channels
    p2 = jnp.maximum(
        jnp.maximum(y2[0 * blk2:1 * blk2], y2[1 * blk2:2 * blk2]),
        jnp.maximum(y2[2 * blk2:3 * blk2], y2[3 * blk2:4 * blk2]))  # (128, TB)

    # FC head (all transposed: out = W^T-free, batch stays on lanes)
    h = _leaky(jnp.dot(fw1_ref[...], p2,
                       preferred_element_type=jnp.float32) + fb1_ref[...])
    h = _leaky(jnp.dot(fw2_ref[...], h,
                       preferred_element_type=jnp.float32) + fb2_ref[...])
    out = (jnp.dot(fw3_ref[...], h,
                   preferred_element_type=jnp.float32) + fb3_ref[...])  # (1, TB)

    o_ref[...] = out.astype(o_ref.dtype)    # lane-dense (1, TB) row store


# ---------------------------------------------------------------------------
# One-time weight preparation (outside the hot path): build the sparse banded
# matrices that evaluate conv1/conv2 (with pooling candidates) as single GEMMs.
# ---------------------------------------------------------------------------
def prepare_params(p, num_of_features):
    F = int(num_of_features)
    H1 = F - 2               # conv1 output size (14)
    n1 = H1 // 2             # pool1 output size (7)
    H2 = n1 - 4              # conv2 output size (3)
    n2 = H2 // 2             # pool2 output size (1)
    C1, C2 = 6, 16
    # TODO(synk): the padded row layout below assumes the default EEG config
    # (16x16 input -> n2 == 1); generalize if other input sizes are needed.
    assert F == 16 and n2 == 1, "fused kernel supports the 16x16 EEG config"

    BLK1 = 384                # rows per pool1 candidate block (>= C1*n1*n1=294)
    BLK2 = 128                # rows per pool2 candidate block (>= C2=16)

    w1 = np.asarray(p["w1"], np.float32)      # (6, 1, 3, 3)   OIHW
    b1 = np.asarray(p["b1"], np.float32)      # (6,)
    w2 = np.asarray(p["w2"], np.float32)      # (16, 6, 5, 5)  OIHW
    b2 = np.asarray(p["b2"], np.float32)      # (16,)

    # conv1 as one sparse matmul producing the 4 pool1 candidates:
    #   row pblk*BLK1 + c*n1*n1 + a*n1 + b  ==  conv1(x)[c, 2a + pblk//2, 2b + pblk%2]
    w1t = np.zeros((4 * BLK1, F * F), np.float32)
    b1t = np.zeros((4 * BLK1, 1), np.float32)
    P, C, A, B, DU, DV = np.meshgrid(
        np.arange(4), np.arange(C1), np.arange(n1), np.arange(n1),
        np.arange(3), np.arange(3), indexing="ij")
    rows = P * BLK1 + C * (n1 * n1) + A * n1 + B
    cols = (2 * A + P // 2 + DU) * F + (2 * B + P % 2 + DV)
    w1t[rows, cols] = w1[C, 0, DU, DV]
    valid1 = (np.arange(4)[:, None] * BLK1
              + np.arange(C1 * n1 * n1)[None, :]).ravel()
    b1t[valid1, 0] = np.tile(np.repeat(b1, n1 * n1), 4)

    # conv2 (only the 2x2 window feeding pool2) as one sparse matmul:
    #   row q*BLK2 + co  ==  conv2(p1)[co, q//2, q%2]
    w2t = np.zeros((4 * BLK2, BLK1), np.float32)
    b2t = np.zeros((4 * BLK2, 1), np.float32)
    Q, CO, C, DI, DJ = np.meshgrid(
        np.arange(4), np.arange(C2), np.arange(C1), np.arange(5), np.arange(5),
        indexing="ij")
    rows = Q * BLK2 + CO
    cols = C * (n1 * n1) + (Q // 2 + DI) * n1 + (Q % 2 + DJ)
    w2t[rows, cols] = w2[CO, C, DI, DJ]
    valid2 = (np.arange(4)[:, None] * BLK2 + np.arange(C2)[None, :]).ravel()
    b2t[valid2, 0] = np.tile(b2, 4)

    # FC head, transposed to (out, in); fc1 input padded from 16 to BLK2 rows.
    fw1t = np.zeros((64, BLK2), np.float32)
    fw1t[:, :C2] = np.asarray(p["fw1"], np.float32).T          # (64, 16)
    fb1t = np.asarray(p["fb1"], np.float32).reshape(64, 1)
    fw2t = np.asarray(p["fw2"], np.float32).T                   # (16, 64)
    fb2t = np.asarray(p["fb2"], np.float32).reshape(16, 1)
    fw3t = np.asarray(p["fw3"], np.float32).T                   # (1, 16)
    fb3t = np.asarray(p["fb3"], np.float32).reshape(1, 1)

    return dict(w1t=jnp.asarray(w1t), b1t=jnp.asarray(b1t),
                w2t=jnp.asarray(w2t), b2t=jnp.asarray(b2t),
                fw1t=jnp.asarray(fw1t), fb1t=jnp.asarray(fb1t),
                fw2t=jnp.asarray(fw2t), fb2t=jnp.asarray(fb2t),
                fw3t=jnp.asarray(fw3t), fb3t=jnp.asarray(fb3t))


# ---------------------------------------------------------------------------
# Forward wrapper: a single pallas_call over batch tiles.
# ---------------------------------------------------------------------------
def convnet_forward(x, kp):
    # x: (N, 1, F, F) float32, NCHW like the PyTorch module.
    N = x.shape[0]
    F = x.shape[2]
    x = x.astype(jnp.float32)

    # Batch tile TB (lane dimension of every GEMM): multiple of 128; use 256 on
    # large batches, and keep grid length >= 2 when possible so both v7x
    # TensorCores get work.
    TB = 256 if N >= 512 else 128
    n_tiles = pl.cdiv(N, TB)
    n_pad = n_tiles * TB

    # Layout plumbing (outside the kernel): flatten image, pad batch, transpose
    # so the batch lives on the lane axis of the kernel's input tile.
    xt = x.reshape(N, F * F)
    if n_pad != N:
        xt = jnp.pad(xt, ((0, n_pad - N), (0, 0)))
    xt = xt.T                                            # (F*F, n_pad)

    def rep(shape):                                      # weights stay resident
        return pl.BlockSpec(shape, lambda n: (0, 0))

    flops = 2 * n_pad * sum(int(kp[k].shape[0]) * int(kp[k].shape[1])
                            for k in ("w1t", "w2t", "fw1t", "fw2t", "fw3t"))
    bytes_accessed = 4 * (int(xt.size) + n_pad
                          + sum(int(np.prod(kp[k].shape)) for k in kp))

    out = pl.pallas_call(
        convnet_kernel,
        out_shape=jax.ShapeDtypeStruct((1, n_pad), jnp.float32),
        grid=(n_tiles,),
        in_specs=[
            pl.BlockSpec((F * F, TB), lambda n: (0, n)),          # x batch tile
            rep(kp["w1t"].shape), rep(kp["b1t"].shape),
            rep(kp["w2t"].shape), rep(kp["b2t"].shape),
            rep(kp["fw1t"].shape), rep(kp["fb1t"].shape),
            rep(kp["fw2t"].shape), rep(kp["fb2t"].shape),
            rep(kp["fw3t"].shape), rep(kp["fb3t"].shape),
        ],
        out_specs=pl.BlockSpec((1, TB), lambda n: (0, n)),        # lane-dense row
        compiler_params=pltpu.CompilerParams(
            dimension_semantics=("parallel",),
            vmem_limit_bytes=32 * 1024 * 1024),
        cost_estimate=pl.CostEstimate(flops=flops, transcendentals=0,
                                      bytes_accessed=bytes_accessed),
    )(xt, kp["w1t"], kp["b1t"], kp["w2t"], kp["b2t"],
      kp["fw1t"], kp["fb1t"], kp["fw2t"], kp["fb2t"], kp["fw3t"], kp["fb3t"])

    return out[0, :N].reshape(N, 1)


# ---------------------------------------------------------------------------
# Deterministic synthetic parameter init (shapes from ConvNet.__init__).
# Linear weights are stored transposed to (in, out).
# ---------------------------------------------------------------------------
def init_params(key, num_of_features):
    n1 = (num_of_features - 3 + 1) // 2          # after conv1 + pool
    n2 = (n1 - 5 + 1) // 2                       # after conv2 + pool
    fc1_in = 16 * n2 * n2
    ks = jax.random.split(key, 10)

    def rnd(k, shape, scale):
        return (scale * jax.random.normal(k, shape)).astype(jnp.float32)

    return dict(
        w1=rnd(ks[0], (6, 1, 3, 3), 0.3),   b1=rnd(ks[1], (6,), 0.1),
        w2=rnd(ks[2], (16, 6, 5, 5), 0.1),  b2=rnd(ks[3], (16,), 0.1),
        fw1=rnd(ks[4], (fc1_in, 64), 0.2),  fb1=rnd(ks[5], (1, 64), 0.1),
        fw2=rnd(ks[6], (64, 16), 0.2),      fb2=rnd(ks[7], (1, 16), 0.1),
        fw3=rnd(ks[8], (16, 1), 0.2),       fb3=rnd(ks[9], (1, 1), 0.1),
    )


# ---------------------------------------------------------------------------
# Pure-JAX reference (raw PyTorch-layout params, full f32 precision).
# ---------------------------------------------------------------------------
def ref_forward(x, p):
    hp = jax.lax.Precision.HIGHEST
    dn = ("NCHW", "OIHW", "NCHW")
    y = jax.lax.conv_general_dilated(x, p["w1"], (1, 1), "VALID",
                                     dimension_numbers=dn, precision=hp)
    y = _leaky(y + p["b1"].reshape(1, -1, 1, 1))
    y = jax.lax.reduce_window(y, -jnp.inf, jax.lax.max,
                              (1, 1, 2, 2), (1, 1, 2, 2), "VALID")
    y = jax.lax.conv_general_dilated(y, p["w2"], (1, 1), "VALID",
                                     dimension_numbers=dn, precision=hp)
    y = _leaky(y + p["b2"].reshape(1, -1, 1, 1))
    y = jax.lax.reduce_window(y, -jnp.inf, jax.lax.max,
                              (1, 1, 2, 2), (1, 1, 2, 2), "VALID")
    flat = y.reshape(y.shape[0], -1)
    h = _leaky(jnp.dot(flat, p["fw1"], precision=hp) + p["fb1"])
    h = _leaky(jnp.dot(h, p["fw2"], precision=hp) + p["fb2"])
    return jnp.dot(h, p["fw3"], precision=hp) + p["fb3"]


if __name__ == "__main__":
    num_of_features = 16     # 16 -> conv1:14 -> pool:7 -> conv2:3 -> pool:1
    batch = 2

    key = jax.random.PRNGKey(0)
    kx, kparam = jax.random.split(key)
    x = jax.random.normal(kx, (batch, 1, num_of_features, num_of_features),
                          dtype=jnp.float32)
    params = init_params(kparam, num_of_features)
    kparams = prepare_params(params, num_of_features)   # one-time weight prep

    fwd = jax.jit(convnet_forward)
    out = jax.block_until_ready(fwd(x, kparams))
    assert out.shape == (batch, 1), out.shape

    ref = ref_forward(x, params)
    # Tolerance allows for TPU MXU default f32 precision inside the kernel vs.
    # the full-f32 XLA reference; pass precision=HIGHEST on the in-kernel dots
    # if tighter parity with PyTorch fp32 is ever required.
    np.testing.assert_allclose(np.asarray(out), np.asarray(ref),
                               rtol=1e-2, atol=1e-2)
    print("KERNEL_OK")
</pallas_src>

<mosaic_0001>
module attributes {stable_mosaic.version = 11 : i64} {
  func.func @convnet_kernel(%arg0: i32, %arg1: memref<256x128xf32, #tpu.memory_space<vmem>>, %arg2: memref<1536x256xf32, #tpu.memory_space<vmem>>, %arg3: memref<1536x1xf32, #tpu.memory_space<vmem>>, %arg4: memref<512x384xf32, #tpu.memory_space<vmem>>, %arg5: memref<512x1xf32, #tpu.memory_space<vmem>>, %arg6: memref<64x128xf32, #tpu.memory_space<vmem>>, %arg7: memref<64x1xf32, #tpu.memory_space<vmem>>, %arg8: memref<16x64xf32, #tpu.memory_space<vmem>>, %arg9: memref<16x1xf32, #tpu.memory_space<vmem>>, %arg10: memref<1x16xf32, #tpu.memory_space<vmem>>, %arg11: memref<1x1xf32, #tpu.memory_space<vmem>>, %arg12: memref<1x128xf32, #tpu.memory_space<vmem>>) attributes {dimension_semantics = [#tpu.dimension_semantics<parallel>], iteration_bounds = array<i64: 1>, scalar_prefetch = 0 : i64, scratch_operands = 0 : i64, tpu.core_type = #tpu.core_type<tc>, window_params = [{transform_indices = @transform_0, window_bounds = array<i64: 256, 128>}, {pipeline_mode = #tpu.pipeline_mode<synchronous>, transform_indices = @transform_1, window_bounds = array<i64: 1536, 256>}, {pipeline_mode = #tpu.pipeline_mode<synchronous>, transform_indices = @transform_2, window_bounds = array<i64: 1536, 1>}, {pipeline_mode = #tpu.pipeline_mode<synchronous>, transform_indices = @transform_3, window_bounds = array<i64: 512, 384>}, {pipeline_mode = #tpu.pipeline_mode<synchronous>, transform_indices = @transform_4, window_bounds = array<i64: 512, 1>}, {pipeline_mode = #tpu.pipeline_mode<synchronous>, transform_indices = @transform_5, window_bounds = array<i64: 64, 128>}, {pipeline_mode = #tpu.pipeline_mode<synchronous>, transform_indices = @transform_6, window_bounds = array<i64: 64, 1>}, {pipeline_mode = #tpu.pipeline_mode<synchronous>, transform_indices = @transform_7, window_bounds = array<i64: 16, 64>}, {pipeline_mode = #tpu.pipeline_mode<synchronous>, transform_indices = @transform_8, window_bounds = array<i64: 16, 1>}, {pipeline_mode = #tpu.pipeline_mode<synchronous>, transform_indices = @transform_9, window_bounds = array<i64: 1, 16>}, {pipeline_mode = #tpu.pipeline_mode<synchronous>, transform_indices = @transform_10, window_bounds = array<i64: 1, 1>}, {transform_indices = @transform_11, window_bounds = array<i64: 1, 128>}]} {
    %c0 = arith.constant 0 : index
    %c0_0 = arith.constant 0 : index
    %0 = vector.load %arg1[%c0, %c0_0] : memref<256x128xf32, #tpu.memory_space<vmem>>, vector<256x128xf32>
    %c0_1 = arith.constant 0 : index
    %c0_2 = arith.constant 0 : index
    %1 = vector.load %arg2[%c0_1, %c0_2] : memref<1536x256xf32, #tpu.memory_space<vmem>>, vector<1536x256xf32>
    %cst = arith.constant dense<0.000000e+00> : vector<1536x128xf32>
    %2 = tpu.matmul %1, %0, %cst {dimension_numbers = #tpu.dot_dimension_numbers<[1], [0], [0], [1], [0, 0, 1, 1], [], []>} : vector<1536x256xf32>, vector<256x128xf32>, vector<1536x128xf32> -> vector<1536x128xf32>
    %c0_3 = arith.constant 0 : index
    %c0_4 = arith.constant 0 : index
    %3 = vector.load %arg3[%c0_3, %c0_4] : memref<1536x1xf32, #tpu.memory_space<vmem>>, vector<1536x1xf32>
    %4 = vector.broadcast %3 : vector<1536x1xf32> to vector<1536x128xf32>
    %5 = arith.addf %2, %4 : vector<1536x128xf32>
    %cst_5 = arith.constant 0.000000e+00 : f32
    %6 = vector.broadcast %cst_5 : f32 to vector<1536x128xf32>
    %7 = arith.cmpf oge, %5, %6 : vector<1536x128xf32>
    %cst_6 = arith.constant 0.00999999977 : f32
    %8 = vector.broadcast %cst_6 : f32 to vector<1536x128xf32>
    %9 = arith.mulf %8, %5 : vector<1536x128xf32>
    %10 = arith.select %7, %5, %9 : vector<1536x128xi1>, vector<1536x128xf32>
    %11 = vector.extract_strided_slice %10 {offsets = [0, 0], sizes = [384, 128], strides = [1, 1]} : vector<1536x128xf32> to vector<384x128xf32>
    %12 = vector.extract_strided_slice %10 {offsets = [384, 0], sizes = [384, 128], strides = [1, 1]} : vector<1536x128xf32> to vector<384x128xf32>
    %13 = arith.maximumf %11, %12 : vector<384x128xf32>
    %14 = vector.extract_strided_slice %10 {offsets = [768, 0], sizes = [384, 128], strides = [1, 1]} : vector<1536x128xf32> to vector<384x128xf32>
    %15 = vector.extract_strided_slice %10 {offsets = [1152, 0], sizes = [384, 128], strides = [1, 1]} : vector<1536x128xf32> to vector<384x128xf32>
    %16 = arith.maximumf %14, %15 : vector<384x128xf32>
    %17 = arith.maximumf %13, %16 : vector<384x128xf32>
    %c0_7 = arith.constant 0 : index
    %c0_8 = arith.constant 0 : index
    %18 = vector.load %arg4[%c0_7, %c0_8] : memref<512x384xf32, #tpu.memory_space<vmem>>, vector<512x384xf32>
    %cst_9 = arith.constant dense<0.000000e+00> : vector<512x128xf32>
    %19 = tpu.matmul %18, %17, %cst_9 {dimension_numbers = #tpu.dot_dimension_numbers<[1], [0], [0], [1], [0, 0, 1, 1], [], []>} : vector<512x384xf32>, vector<384x128xf32>, vector<512x128xf32> -> vector<512x128xf32>
    %c0_10 = arith.constant 0 : index
    %c0_11 = arith.constant 0 : index
    %20 = vector.load %arg5[%c0_10, %c0_11] : memref<512x1xf32, #tpu.memory_space<vmem>>, vector<512x1xf32>
    %21 = vector.broadcast %20 : vector<512x1xf32> to vector<512x128xf32>
    %22 = arith.addf %19, %21 : vector<512x128xf32>
    %cst_12 = arith.constant 0.000000e+00 : f32
    %23 = vector.broadcast %cst_12 : f32 to vector<512x128xf32>
    %24 = arith.cmpf oge, %22, %23 : vector<512x128xf32>
    %cst_13 = arith.constant 0.00999999977 : f32
    %25 = vector.broadcast %cst_13 : f32 to vector<512x128xf32>
    %26 = arith.mulf %25, %22 : vector<512x128xf32>
    %27 = arith.select %24, %22, %26 : vector<512x128xi1>, vector<512x128xf32>
    %28 = vector.extract_strided_slice %27 {offsets = [0, 0], sizes = [128, 128], strides = [1, 1]} : vector<512x128xf32> to vector<128x128xf32>
    %29 = vector.extract_strided_slice %27 {offsets = [128, 0], sizes = [128, 128], strides = [1, 1]} : vector<512x128xf32> to vector<128x128xf32>
    %30 = arith.maximumf %28, %29 : vector<128x128xf32>
    %31 = vector.extract_strided_slice %27 {offsets = [256, 0], sizes = [128, 128], strides = [1, 1]} : vector<512x128xf32> to vector<128x128xf32>
    %32 = vector.extract_strided_slice %27 {offsets = [384, 0], sizes = [128, 128], strides = [1, 1]} : vector<512x128xf32> to vector<128x128xf32>
    %33 = arith.maximumf %31, %32 : vector<128x128xf32>
    %34 = arith.maximumf %30, %33 : vector<128x128xf32>
    %c0_14 = arith.constant 0 : index
    %c0_15 = arith.constant 0 : index
    %35 = vector.load %arg6[%c0_14, %c0_15] : memref<64x128xf32, #tpu.memory_space<vmem>>, vector<64x128xf32>
    %cst_16 = arith.constant dense<0.000000e+00> : vector<64x128xf32>
    %36 = tpu.matmul %35, %34, %cst_16 {dimension_numbers = #tpu.dot_dimension_numbers<[1], [0], [0], [1], [0, 0, 1, 1], [], []>} : vector<64x128xf32>, vector<128x128xf32>, vector<64x128xf32> -> vector<64x128xf32>
    %c0_17 = arith.constant 0 : index
    %c0_18 = arith.constant 0 : index
    %37 = vector.load %arg7[%c0_17, %c0_18] : memref<64x1xf32, #tpu.memory_space<vmem>>, vector<64x1xf32>
    %38 = vector.broadcast %37 : vector<64x1xf32> to vector<64x128xf32>
    %39 = arith.addf %36, %38 : vector<64x128xf32>
    %cst_19 = arith.constant 0.000000e+00 : f32
    %40 = vector.broadcast %cst_19 : f32 to vector<64x128xf32>
    %41 = arith.cmpf oge, %39, %40 : vector<64x128xf32>
    %cst_20 = arith.constant 0.00999999977 : f32
    %42 = vector.broadcast %cst_20 : f32 to vector<64x128xf32>
    %43 = arith.mulf %42, %39 : vector<64x128xf32>
    %44 = arith.select %41, %39, %43 : vector<64x128xi1>, vector<64x128xf32>
    %c0_21 = arith.constant 0 : index
    %c0_22 = arith.constant 0 : index
    %45 = vector.load %arg8[%c0_21, %c0_22] : memref<16x64xf32, #tpu.memory_space<vmem>>, vector<16x64xf32>
    %cst_23 = arith.constant dense<0.000000e+00> : vector<16x128xf32>
    %46 = tpu.matmul %45, %44, %cst_23 {dimension_numbers = #tpu.dot_dimension_numbers<[1], [0], [0], [1], [0, 0, 1, 1], [], []>} : vector<16x64xf32>, vector<64x128xf32>, vector<16x128xf32> -> vector<16x128xf32>
    %c0_24 = arith.constant 0 : index
    %c0_25 = arith.constant 0 : index
    %47 = vector.load %arg9[%c0_24, %c0_25] : memref<16x1xf32, #tpu.memory_space<vmem>>, vector<16x1xf32>
    %48 = vector.broadcast %47 : vector<16x1xf32> to vector<16x128xf32>
    %49 = arith.addf %46, %48 : vector<16x128xf32>
    %cst_26 = arith.constant 0.000000e+00 : f32
    %50 = vector.broadcast %cst_26 : f32 to vector<16x128xf32>
    %51 = arith.cmpf oge, %49, %50 : vector<16x128xf32>
    %cst_27 = arith.constant 0.00999999977 : f32
    %52 = vector.broadcast %cst_27 : f32 to vector<16x128xf32>
    %53 = arith.mulf %52, %49 : vector<16x128xf32>
    %54 = arith.select %51, %49, %53 : vector<16x128xi1>, vector<16x128xf32>
    %c0_28 = arith.constant 0 : index
    %c0_29 = arith.constant 0 : index
    %55 = vector.load %arg10[%c0_28, %c0_29] : memref<1x16xf32, #tpu.memory_space<vmem>>, vector<1x16xf32>
    %cst_30 = arith.constant dense<0.000000e+00> : vector<1x128xf32>
    %56 = tpu.matmul %55, %54, %cst_30 {dimension_numbers = #tpu.dot_dimension_numbers<[1], [0], [0], [1], [0, 0, 1, 1], [], []>} : vector<1x16xf32>, vector<16x128xf32>, vector<1x128xf32> -> vector<1x128xf32>
    %c0_31 = arith.constant 0 : index
    %c0_32 = arith.constant 0 : index
    %57 = vector.load %arg11[%c0_31, %c0_32] : memref<1x1xf32, #tpu.memory_space<vmem>>, vector<1x1xf32>
    %58 = vector.broadcast %57 : vector<1x1xf32> to vector<1x128xf32>
    %59 = arith.addf %56, %58 : vector<1x128xf32>
    %c0_33 = arith.constant 0 : index
    %c0_34 = arith.constant 0 : index
    %60 = vector.load %arg12[%c0_33, %c0_34] : memref<1x128xf32, #tpu.memory_space<vmem>>, vector<1x128xf32>
    tpu.vector_store %arg12[%c0_33, %c0_34], %59 {strides = array<i32>} : memref<1x128xf32, #tpu.memory_space<vmem>>, vector<1x128xf32>,
    return
  }
  func.func @transform_0(%arg0: i32) -> (i32, i32) {
    %c0_i32 = arith.constant 0 : i32
    %c0_i32_0 = arith.constant 0 : i32
    return %c0_i32, %arg0 : i32, i32
  }
  func.func @transform_1(%arg0: i32) -> (i32, i32) {
    %c0_i32 = arith.constant 0 : i32
    %c0_i32_0 = arith.constant 0 : i32
    %c0_i32_1 = arith.constant 0 : i32
    return %c0_i32, %c0_i32_0 : i32, i32
  }
  func.func @transform_2(%arg0: i32) -> (i32, i32) {
    %c0_i32 = arith.constant 0 : i32
    %c0_i32_0 = arith.constant 0 : i32
    %c0_i32_1 = arith.constant 0 : i32
    return %c0_i32, %c0_i32_0 : i32, i32
  }
  func.func @transform_3(%arg0: i32) -> (i32, i32) {
    %c0_i32 = arith.constant 0 : i32
    %c0_i32_0 = arith.constant 0 : i32
    %c0_i32_1 = arith.constant 0 : i32
    return %c0_i32, %c0_i32_0 : i32, i32
  }
  func.func @transform_4(%arg0: i32) -> (i32, i32) {
    %c0_i32 = arith.constant 0 : i32
    %c0_i32_0 = arith.constant 0 : i32
    %c0_i32_1 = arith.constant 0 : i32
    return %c0_i32, %c0_i32_0 : i32, i32
  }
  func.func @transform_5(%arg0: i32) -> (i32, i32) {
    %c0_i32 = arith.constant 0 : i32
    %c0_i32_0 = arith.constant 0 : i32
    %c0_i32_1 = arith.constant 0 : i32
    return %c0_i32, %c0_i32_0 : i32, i32
  }
  func.func @transform_6(%arg0: i32) -> (i32, i32) {
    %c0_i32 = arith.constant 0 : i32
    %c0_i32_0 = arith.constant 0 : i32
    %c0_i32_1 = arith.constant 0 : i32
    return %c0_i32, %c0_i32_0 : i32, i32
  }
  func.func @transform_7(%arg0: i32) -> (i32, i32) {
    %c0_i32 = arith.constant 0 : i32
    %c0_i32_0 = arith.constant 0 : i32
    %c0_i32_1 = arith.constant 0 : i32
    return %c0_i32, %c0_i32_0 : i32, i32
  }
  func.func @transform_8(%arg0: i32) -> (i32, i32) {
    %c0_i32 = arith.constant 0 : i32
    %c0_i32_0 = arith.constant 0 : i32
    %c0_i32_1 = arith.constant 0 : i32
    return %c0_i32, %c0_i32_0 : i32, i32
  }
  func.func @transform_9(%arg0: i32) -> (i32, i32) {
    %c0_i32 = arith.constant 0 : i32
    %c0_i32_0 = arith.constant 0 : i32
    %c0_i32_1 = arith.constant 0 : i32
    return %c0_i32, %c0_i32_0 : i32, i32
  }
  func.func @transform_10(%arg0: i32) -> (i32, i32) {
    %c0_i32 = arith.constant 0 : i32
    %c0_i32_0 = arith.constant 0 : i32
    %c0_i32_1 = arith.constant 0 : i32
    return %c0_i32, %c0_i32_0 : i32, i32
  }
  func.func @transform_11(%arg0: i32) -> (i32, i32) {
    %c0_i32 = arith.constant 0 : i32
    %c0_i32_0 = arith.constant 0 : i32
    return %c0_i32, %arg0 : i32, i32
  }
}

</mosaic_0001>

<llo_original>
// kernel: convnet_forward.1
$region0: #{convnet_forward.1}
  #allocation0 [shape = 'u32[]', space=smem, size = 0x4, offset = 0x4, fixed_abs, tag = 'smem constant byte address 0x4 - core index']
  #allocation1 [shape = 'u32[144,128]{1,0:T(1,128)}', space=vmem, size = 0x12000, scoped, tag = 'internal scratch']
  #allocation2 [shape = 'f32[1,1]{1,0:T(1,128)S(1)}', space=vmem, size = 0x200, scoped, tag = 'scoped memory for convnet_forward.1']
  %s0 = inlined_call_operand.vmem [shape: f32[256,128], index: 0, kind: input, shape index: {}]
  %s1 = inlined_call_operand.hbm [shape: f32[1536,256], index: 1, kind: input, shape index: {}]
  %s2 = inlined_call_operand.vmem [shape: f32[1536,1], index: 2, kind: input, shape index: {}]
  %s3 = inlined_call_operand.vmem [shape: f32[512,384], index: 3, kind: input, shape index: {}]
  %s4 = inlined_call_operand.vmem [shape: f32[512,1], index: 4, kind: input, shape index: {}]
  %s5 = inlined_call_operand.hbm [shape: f32[64,128], index: 5, kind: input, shape index: {}]
  %s6 = inlined_call_operand.vmem [shape: f32[64,1], index: 6, kind: input, shape index: {}]
  %s7 = inlined_call_operand.hbm [shape: f32[16,64], index: 7, kind: input, shape index: {}]
  %s8 = inlined_call_operand.vmem [shape: f32[16,1], index: 8, kind: input, shape index: {}]
  %s9 = inlined_call_operand.hbm [shape: f32[1,16], index: 9, kind: input, shape index: {}]
  %s10 = inlined_call_operand.<no memory space> [shape: f32[1,1], index: 10, kind: input, shape index: {}]
  %s11 = inlined_call_operand.vmem [shape: f32[1,128], index: 11, kind: output, shape index: {}]
  %s12 = sld [smem:[#allocation0]]
  $region70: #{convnet_forward.1} parent=0
    _
  %s14 = ssub.s32 1, %s12
  %s15 = scalar_select 0, %s14, %s12
  %v16 = vstv %s10
  %17 = vst [vmem:[#allocation2] sm:$0x1] %v16
  $region1: #{convnet_forward.1} parent=0
    #allocation3 [shape = 'u8[1572864]{0}', space=vmem, size = 0x180000, scoped, tag = 'input window, operand 1, single buffered']
    #allocation4 [shape = 's32[1]{0}', space=sflag, size = 0x4, scoped, tag = 'scoped memory for convnet_forward.1']
    #allocation5 [shape = 'u8[32768]{0}', space=vmem, size = 0x8000, scoped, tag = 'input window, operand 5, single buffered']
    #allocation6 [shape = 's32[1]{0}', space=sflag, size = 0x4, scoped, tag = 'scoped memory for convnet_forward.1']
    #allocation7 [shape = 'u8[8192]{0}', space=vmem, size = 0x2000, scoped, tag = 'input window, operand 7, single buffered']
    #allocation8 [shape = 'u8[512]{0}', space=vmem, size = 0x400, scoped, tag = 'input window, operand 9, single buffered']
    #allocation9 [shape = 's32[1]{0}', space=sflag, size = 0x4, scoped, tag = 'scoped memory for convnet_forward.1']
    %18 = vsyncpa [#allocation4], 0
    %19 = vsyncpa [#allocation6], 0
    %20 = vsyncpa [#allocation9], 0
    // Predicated region
    $region2: #{convnet_forward.1} parent=1 // pred_check
      _
    $region3: #{convnet_forward.1} parent=1 // pred_check_branch
      %22 = sbr.rel (0) target = $region5
    $region4: #{convnet_forward.1} parent=1 // pred_region
      _
    $region5: #{convnet_forward.1} parent=1 // pred_fallthru
      _
    // Predicated region
    $region6: #{convnet_forward.1} parent=1 // pred_check
      _
    $region7: #{convnet_forward.1} parent=1 // pred_check_branch
      %24 = sbr.rel (0) target = $region9
    $region8: #{convnet_forward.1} parent=1 // pred_region
      %s26 = ssub.s32 49152, 49152
      %27 = vsyncadd [#allocation4], %s26
      %s28 = sshll.u32 [#allocation3], 4
      %s29 = int_to_ptr.vmem [resolvable:$true] %s28
      %34 = dma.hbm_to_vmem [thread:$0]  %s1, 49152, %s29, [#allocation4], 256, 256, 16
    $region9: #{convnet_forward.1} parent=1 // pred_fallthru
      _
    // Predicated region
    $region10: #{convnet_forward.1} parent=1 // pred_check
      _
    $region11: #{convnet_forward.1} parent=1 // pred_check_branch
      %36 = sbr.rel (0) target = $region13
    $region12: #{convnet_forward.1} parent=1 // pred_region
      _
    $region13: #{convnet_forward.1} parent=1 // pred_fallthru
      _
    // Predicated region
    $region14: #{convnet_forward.1} parent=1 // pred_check
      _
    $region15: #{convnet_forward.1} parent=1 // pred_check_branch
      %38 = sbr.rel (0) target = $region17
    $region16: #{convnet_forward.1} parent=1 // pred_region
      _
    $region17: #{convnet_forward.1} parent=1 // pred_fallthru
      _
    // Predicated region
    $region18: #{convnet_forward.1} parent=1 // pred_check
      _
    $region19: #{convnet_forward.1} parent=1 // pred_check_branch
      %40 = sbr.rel (0) target = $region21
    $region20: #{convnet_forward.1} parent=1 // pred_region
      _
    $region21: #{convnet_forward.1} parent=1 // pred_fallthru
      _
    // Predicated region
    $region22: #{convnet_forward.1} parent=1 // pred_check
      _
    $region23: #{convnet_forward.1} parent=1 // pred_check_branch
      %42 = sbr.rel (0) target = $region25
    $region24: #{convnet_forward.1} parent=1 // pred_region
      %s44 = ssub.s32 1024, 1024
      %45 = vsyncadd [#allocation6], %s44
      %s46 = sshll.u32 [#allocation5], 4
      %s47 = int_to_ptr.vmem [resolvable:$true] %s46
      %52 = dma.hbm_to_vmem [thread:$0]  %s5, 1024, %s47, [#allocation6], 128, 128, 8
    $region25: #{convnet_forward.1} parent=1 // pred_fallthru
      _
    // Predicated region
    $region26: #{convnet_forward.1} parent=1 // pred_check
      _
    $region27: #{convnet_forward.1} parent=1 // pred_check_branch
      %54 = sbr.rel (0) target = $region29
    $region28: #{convnet_forward.1} parent=1 // pred_region
      _
    $region29: #{convnet_forward.1} parent=1 // pred_fallthru
      _
    // Predicated region
    $region30: #{convnet_forward.1} parent=1 // pred_check
      _
    $region31: #{convnet_forward.1} parent=1 // pred_check_branch
      %56 = sbr.rel (0) target = $region33
    $region32: #{convnet_forward.1} parent=1 // pred_region
      %s58 = ssub.s32 256, 256
      %59 = vsyncadd [#allocation6], %s58
      %s60 = sshll.u32 [#allocation7], 4
      %s61 = int_to_ptr.vmem [resolvable:$true] %s60
      %66 = dma.hbm_to_vmem [thread:$0]  %s7, 256, %s61, [#allocation6], 128, 128, 8
    $region33: #{convnet_forward.1} parent=1 // pred_fallthru
      _
    // Predicated region
    $region34: #{convnet_forward.1} parent=1 // pred_check
      _
    $region35: #{convnet_forward.1} parent=1 // pred_check_branch
      %68 = sbr.rel (0) target = $region37
    $region36: #{convnet_forward.1} parent=1 // pred_region
      _
    $region37: #{convnet_forward.1} parent=1 // pred_fallthru
      _
    // Predicated region
    $region38: #{convnet_forward.1} parent=1 // pred_check
      _
    $region39: #{convnet_forward.1} parent=1 // pred_check_branch
      %70 = sbr.rel (0) target = $region41
    $region40: #{convnet_forward.1} parent=1 // pred_region
      %s72 = ssub.s32 16, 16
      %73 = vsyncadd [#allocation9], %s72
      %s75 = sshll.u32 [#allocation8], 4
      %s76 = int_to_ptr.vmem [resolvable:$true] %s75
      %78 = dma.hbm_to_vmem [thread:$0]  %s9, 16, %s76, [#allocation9]
    $region41: #{convnet_forward.1} parent=1 // pred_fallthru
      _
    // Predicated region
    $region42: #{convnet_forward.1} parent=1 // pred_check
      _
    $region43: #{convnet_forward.1} parent=1 // pred_check_branch
      %80 = sbr.rel (0) target = $region45
    $region44: #{convnet_forward.1} parent=1 // pred_region
      _
    $region45: #{convnet_forward.1} parent=1 // pred_fallthru
      _
    // Predicated region
    $region46: #{convnet_forward.1} parent=1 // pred_check
      _
    $region47: #{convnet_forward.1} parent=1 // pred_check_branch
      %82 = sbr.rel (0) target = $region49
    $region48: #{convnet_forward.1} parent=1 // pred_region
      %83 = dma.done [#allocation4], 49152
    $region49: #{convnet_forward.1} parent=1 // pred_fallthru
      _
    // Predicated region
    $region50: #{convnet_forward.1} parent=1 // pred_check
      _
    $region51: #{convnet_forward.1} parent=1 // pred_check_branch
      %85 = sbr.rel (0) target = $region53
    $region52: #{convnet_forward.1} parent=1 // pred_region
      %86 = dma.done [#allocation6], 1024
    $region53: #{convnet_forward.1} parent=1 // pred_fallthru
      _
    // Predicated region
    $region54: #{convnet_forward.1} parent=1 // pred_check
      _
    $region55: #{convnet_forward.1} parent=1 // pred_check_branch
      %88 = sbr.rel (0) target = $region57
    $region56: #{convnet_forward.1} parent=1 // pred_region
      %89 = dma.done [#allocation6], 256
    $region57: #{convnet_forward.1} parent=1 // pred_fallthru
      _
    // Predicated region
    $region58: #{convnet_forward.1} parent=1 // pred_check
      _
    $region59: #{convnet_forward.1} parent=1 // pred_check_branch
      %91 = sbr.rel (0) target = $region61
    $region60: #{convnet_forward.1} parent=1 // pred_region
      %92 = dma.done [#allocation9], 16
    $region61: #{convnet_forward.1} parent=1 // pred_fallthru
      _
    %v93 = vld [vmem:[%s0] sm:$0xff]
    %v94 = vld [vmem:[%s0 + $0x8] sm:$0xff]
    %v95 = vld [vmem:[%s0 + $0x10] sm:$0xff]
    %v96 = vld [vmem:[%s0 + $0x18] sm:$0xff]
    %v97 = vld [vmem:[%s0 + $0x20] sm:$0xff]
    %v98 = vld [vmem:[%s0 + $0x28] sm:$0xff]
    %v99 = vld [vmem:[%s0 + $0x30] sm:$0xff]
    %v100 = vld [vmem:[%s0 + $0x38] sm:$0xff]
    %v101 = vld [vmem:[%s0 + $0x40] sm:$0xff]
    %v102 = vld [vmem:[%s0 + $0x48] sm:$0xff]
    %v103 = vld [vmem:[%s0 + $0x50] sm:$0xff]
    %v104 = vld [vmem:[%s0 + $0x58] sm:$0xff]
    %v105 = vld [vmem:[%s0 + $0x60] sm:$0xff]
    %v106 = vld [vmem:[%s0 + $0x68] sm:$0xff]
    %v107 = vld [vmem:[%s0 + $0x70] sm:$0xff]
    %v108 = vld [vmem:[%s0 + $0x78] sm:$0xff]
    %v109 = vld [vmem:[%s0 + $0x80] sm:$0xff]
    %v110 = vld [vmem:[%s0 + $0x88] sm:$0xff]
    %v111 = vld [vmem:[%s0 + $0x90] sm:$0xff]
    %v112 = vld [vmem:[%s0 + $0x98] sm:$0xff]
    %v113 = vld [vmem:[%s0 + $0xa0] sm:$0xff]
    %v114 = vld [vmem:[%s0 + $0xa8] sm:$0xff]
    %v115 = vld [vmem:[%s0 + $0xb0] sm:$0xff]
    %v116 = vld [vmem:[%s0 + $0xb8] sm:$0xff]
    %v117 = vld [vmem:[%s0 + $0xc0] sm:$0xff]
    %v118 = vld [vmem:[%s0 + $0xc8] sm:$0xff]
    %v119 = vld [vmem:[%s0 + $0xd0] sm:$0xff]
    %v120 = vld [vmem:[%s0 + $0xd8] sm:$0xff]
    %v121 = vld [vmem:[%s0 + $0xe0] sm:$0xff]
    %v122 = vld [vmem:[%s0 + $0xe8] sm:$0xff]
    %v123 = vld [vmem:[%s0 + $0xf0] sm:$0xff]
    %v124 = vld [vmem:[%s0 + $0xf8] sm:$0xff]
    %v125 = vld [vmem:[#allocation3] sm:$0xff]
    %v126 = vld [vmem:[#allocation3 + $0x8] sm:$0xff]
    %v127 = vld [vmem:[#allocation3 + $0x10] sm:$0xff]
    %v128 = vld [vmem:[#allocation3 + $0x18] sm:$0xff]
    %v129 = vld [vmem:[#allocation3 + $0x20] sm:$0xff]
    %v130 = vld [vmem:[#allocation3 + $0x28] sm:$0xff]
    %v131 = vld [vmem:[#allocation3 + $0x30] sm:$0xff]
    %v132 = vld [vmem:[#allocation3 + $0x38] sm:$0xff]
    %v133 = vld [vmem:[#allocation3 + $0x40] sm:$0xff]
    %v134 = vld [vmem:[#allocation3 + $0x48] sm:$0xff]
    %v135 = vld [vmem:[#allocation3 + $0x50] sm:$0xff]
    %v136 = vld [vmem:[#allocation3 + $0x58] sm:$0xff]
    %v137 = vld [vmem:[#allocation3 + $0x60] sm:$0xff]
    %v138 = vld [vmem:[#allocation3 + $0x68] sm:$0xff]
    %v139 = vld [vmem:[#allocation3 + $0x70] sm:$0xff]
    %v140 = vld [vmem:[#allocation3 + $0x78] sm:$0xff]
    %v141 = vld [vmem:[#allocation3 + $0x80] sm:$0xff]
    %v142 = vld [vmem:[#allocation3 + $0x88] sm:$0xff]
    %v143 = vld [vmem:[#allocation3 + $0x90] sm:$0xff]
    %v144 = vld [vmem:[#allocation3 + $0x98] sm:$0xff]
    %v145 = vld [vmem:[#allocation3 + $0xa0] sm:$0xff]
    %v146 = vld [vmem:[#allocation3 + $0xa8] sm:$0xff]
    %v147 = vld [vmem:[#allocation3 + $0xb0] sm:$0xff]
    %v148 = vld [vmem:[#allocation3 + $0xb8] sm:$0xff]
    %v149 = vld [vmem:[#allocation3 + $0xc0] sm:$0xff]
    %v150 = vld [vmem:[#allocation3 + $0xc8] sm:$0xff]
    %v151 = vld [vmem:[#allocation3 + $0xd0] sm:$0xff]
    %v152 = vld [vmem:[#allocation3 + $0xd8] sm:$0xff]
    %v153 = vld [vmem:[#allocation3 + $0xe0] sm:$0xff]
    %v154 = vld [vmem:[#allocation3 + $0xe8] sm:$0xff]
    %v155 = vld [vmem:[#allocation3 + $0xf0] sm:$0xff]
    %v156 = vld [vmem:[#allocation3 + $0xf8] sm:$0xff]
    %v157 = vld [vmem:[#allocation3 + $0x100] sm:$0xff]
    %v158 = vld [vmem:[#allocation3 + $0x108] sm:$0xff]
    %v159 = vld [vmem:[#allocation3 + $0x110] sm:$0xff]
    %v160 = vld [vmem:[#allocation3 + $0x118] sm:$0xff]
    %v161 = vld [vmem:[#allocation3 + $0x120] sm:$0xff]
    %v162 = vld [vmem:[#allocation3 + $0x128] sm:$0xff]
    %v163 = vld [vmem:[#allocation3 + $0x130] sm:$0xff]
    %v164 = vld [vmem:[#allocation3 + $0x138] sm:$0xff]
    %v165 = vld [vmem:[#allocation3 + $0x140] sm:$0xff]
    %v166 = vld [vmem:[#allocation3 + $0x148] sm:$0xff]
    %v167 = vld [vmem:[#allocation3 + $0x150] sm:$0xff]
    %v168 = vld [vmem:[#allocation3 + $0x158] sm:$0xff]
    %v169 = vld [vmem:[#allocation3 + $0x160] sm:$0xff]
    %v170 = vld [vmem:[#allocation3 + $0x168] sm:$0xff]
    %v171 = vld [vmem:[#allocation3 + $0x170] sm:$0xff]
    %v172 = vld [vmem:[#allocation3 + $0x178] sm:$0xff]
    %v173 = vld [vmem:[#allocation3 + $0x180] sm:$0xff]
    %v174 = vld [vmem:[#allocation3 + $0x188] sm:$0xff]
    %v175 = vld [vmem:[#allocation3 + $0x190] sm:$0xff]
    %v176 = vld [vmem:[#allocation3 + $0x198] sm:$0xff]
    %v177 = vld [vmem:[#allocation3 + $0x1a0] sm:$0xff]
    %v178 = vld [vmem:[#allocation3 + $0x1a8] sm:$0xff]
    %v179 = vld [vmem:[#allocation3 + $0x1b0] sm:$0xff]
    %v180 = vld [vmem:[#allocation3 + $0x1b8] sm:$0xff]
    %v181 = vld [vmem:[#allocation3 + $0x1c0] sm:$0xff]
    %v182 = vld [vmem:[#allocation3 + $0x1c8] sm:$0xff]
    %v183 = vld [vmem:[#allocation3 + $0x1d0] sm:$0xff]
    %v184 = vld [vmem:[#allocation3 + $0x1d8] sm:$0xff]
    %v185 = vld [vmem:[#allocation3 + $0x1e0] sm:$0xff]
    %v186 = vld [vmem:[#allocation3 + $0x1e8] sm:$0xff]
    %v187 = vld [vmem:[#allocation3 + $0x1f0] sm:$0xff]
    %v188 = vld [vmem:[#allocation3 + $0x1f8] sm:$0xff]
    %v189 = vld [vmem:[#allocation3 + $0x200] sm:$0xff]
    %v190 = vld [vmem:[#allocation3 + $0x208] sm:$0xff]
    %v191 = vld [vmem:[#allocation3 + $0x210] sm:$0xff]
    %v192 = vld [vmem:[#allocation3 + $0x218] sm:$0xff]
    %v193 = vld [vmem:[#allocation3 + $0x220] sm:$0xff]
    %v194 = vld [vmem:[#allocation3 + $0x228] sm:$0xff]
    %v195 = vld [vmem:[#allocation3 + $0x230] sm:$0xff]
    %v196 = vld [vmem:[#allocation3 + $0x238] sm:$0xff]
    %v197 = vld [vmem:[#allocation3 + $0x240] sm:$0xff]
    %v198 = vld [vmem:[#allocation3 + $0x248] sm:$0xff]
    %v199 = vld [vmem:[#allocation3 + $0x250] sm:$0xff]
    %v200 = vld [vmem:[#allocation3 + $0x258] sm:$0xff]
    %v201 = vld [vmem:[#allocation3 + $0x260] sm:$0xff]
    %v202 = vld [vmem:[#allocation3 + $0x268] sm:$0xff]
    %v203 = vld [vmem:[#allocation3 + $0x270] sm:$0xff]
    %v204 = vld [vmem:[#allocation3 + $0x278] sm:$0xff]
    %v205 = vld [vmem:[#allocation3 + $0x280] sm:$0xff]
    %v206 = vld [vmem:[#allocation3 + $0x288] sm:$0xff]
    %v207 = vld [vmem:[#allocation3 + $0x290] sm:$0xff]
    %v208 = vld [vmem:[#allocation3 + $0x298] sm:$0xff]
    %v209 = vld [vmem:[#allocation3 + $0x2a0] sm:$0xff]
    %v210 = vld [vmem:[#allocation3 + $0x2a8] sm:$0xff]
    %v211 = vld [vmem:[#allocation3 + $0x2b0] sm:$0xff]
    %v212 = vld [vmem:[#allocation3 + $0x2b8] sm:$0xff]
    %v213 = vld [vmem:[#allocation3 + $0x2c0] sm:$0xff]
    %v214 = vld [vmem:[#allocation3 + $0x2c8] sm:$0xff]
    %v215 = vld [vmem:[#allocation3 + $0x2d0] sm:$0xff]
    %v216 = vld [vmem:[#allocation3 + $0x2d8] sm:$0xff]
    %v217 = vld [vmem:[#allocation3 + $0x2e0] sm:$0xff]
    %v218 = vld [vmem:[#allocation3 + $0x2e8] sm:$0xff]
    %v219 = vld [vmem:[#allocation3 + $0x2f0] sm:$0xff]
    %v220 = vld [vmem:[#allocation3 + $0x2f8] sm:$0xff]
    %v221 = vld [vmem:[#allocation3 + $0x300] sm:$0xff]
    %v222 = vld [vmem:[#allocation3 + $0x308] sm:$0xff]
    %v223 = vld [vmem:[#allocation3 + $0x310] sm:$0xff]
    %v224 = vld [vmem:[#allocation3 + $0x318] sm:$0xff]
    %v225 = vld [vmem:[#allocation3 + $0x320] sm:$0xff]
    %v226 = vld [vmem:[#allocation3 + $0x328] sm:$0xff]
    %v227 = vld [vmem:[#allocation3 + $0x330] sm:$0xff]
    %v228 = vld [vmem:[#allocation3 + $0x338] sm:$0xff]
    %v229 = vld [vmem:[#allocation3 + $0x340] sm:$0xff]
    %v230 = vld [vmem:[#allocation3 + $0x348] sm:$0xff]
    %v231 = vld [vmem:[#allocation3 + $0x350] sm:$0xff]
    %v232 = vld [vmem:[#allocation3 + $0x358] sm:$0xff]
    %v233 = vld [vmem:[#allocation3 + $0x360] sm:$0xff]
    %v234 = vld [vmem:[#allocation3 + $0x368] sm:$0xff]
    %v235 = vld [vmem:[#allocation3 + $0x370] sm:$0xff]
    %v236 = vld [vmem:[#allocation3 + $0x378] sm:$0xff]
    %v237 = vld [vmem:[#allocation3 + $0x380] sm:$0xff]
    %v238 = vld [vmem:[#allocation3 + $0x388] sm:$0xff]
    %v239 = vld [vmem:[#allocation3 + $0x390] sm:$0xff]
    %v240 = vld [vmem:[#allocation3 + $0x398] sm:$0xff]
    %v241 = vld [vmem:[#allocation3 + $0x3a0] sm:$0xff]
    %v242 = vld [vmem:[#allocation3 + $0x3a8] sm:$0xff]
    %v243 = vld [vmem:[#allocation3 + $0x3b0] sm:$0xff]
    %v244 = vld [vmem:[#allocation3 + $0x3b8] sm:$0xff]
    %v245 = vld [vmem:[#allocation3 + $0x3c0] sm:$0xff]
    %v246 = vld [vmem:[#allocation3 + $0x3c8] sm:$0xff]
    %v247 = vld [vmem:[#allocation3 + $0x3d0] sm:$0xff]
    %v248 = vld [vmem:[#allocation3 + $0x3d8] sm:$0xff]
    %v249 = vld [vmem:[#allocation3 + $0x3e0] sm:$0xff]
    %v250 = vld [vmem:[#allocation3 + $0x3e8] sm:$0xff]
    %v251 = vld [vmem:[#allocation3 + $0x3f0] sm:$0xff]
    %v252 = vld [vmem:[#allocation3 + $0x3f8] sm:$0xff]
    %v253 = vld [vmem:[#allocation3 + $0x400] sm:$0xff]
    %v254 = vld [vmem:[#allocation3 + $0x408] sm:$0xff]
    %v255 = vld [vmem:[#allocation3 + $0x410] sm:$0xff]
    %v256 = vld [vmem:[#allocation3 + $0x418] sm:$0xff]
    %v257 = vld [vmem:[#allocation3 + $0x420] sm:$0xff]
    %v258 = vld [vmem:[#allocation3 + $0x428] sm:$0xff]
    %v259 = vld [vmem:[#allocation3 + $0x430] sm:$0xff]
    %v260 = vld [vmem:[#allocation3 + $0x438] sm:$0xff]
    %v261 = vld [vmem:[#allocation3 + $0x440] sm:$0xff]
    %v262 = vld [vmem:[#allocation3 + $0x448] sm:$0xff]
    %v263 = vld [vmem:[#allocation3 + $0x450] sm:$0xff]
    %v264 = vld [vmem:[#allocation3 + $0x458] sm:$0xff]
    %v265 = vld [vmem:[#allocation3 + $0x460] sm:$0xff]
    %v266 = vld [vmem:[#allocation3 + $0x468] sm:$0xff]
    %v267 = vld [vmem:[#allocation3 + $0x470] sm:$0xff]
    %v268 = vld [vmem:[#allocation3 + $0x478] sm:$0xff]
    %v269 = vld [vmem:[#allocation3 + $0x480] sm:$0xff]
    %v270 = vld [vmem:[#allocation3 + $0x488] sm:$0xff]
    %v271 = vld [vmem:[#allocation3 + $0x490] sm:$0xff]
    %v272 = vld [vmem:[#allocation3 + $0x498] sm:$0xff]
    %v273 = vld [vmem:[#allocation3 + $0x4a0] sm:$0xff]
    %v274 = vld [vmem:[#allocation3 + $0x4a8] sm:$0xff]
    %v275 = vld [vmem:[#allocation3 + $0x4b0] sm:$0xff]
    %v276 = vld [vmem:[#allocation3 + $0x4b8] sm:$0xff]
    %v277 = vld [vmem:[#allocation3 + $0x4c0] sm:$0xff]
    %v278 = vld [vmem:[#allocation3 + $0x4c8] sm:$0xff]
    %v279 = vld [vmem:[#allocation3 + $0x4d0] sm:$0xff]
    %v280 = vld [vmem:[#allocation3 + $0x4d8] sm:$0xff]
    %v281 = vld [vmem:[#allocation3 + $0x4e0] sm:$0xff]
    %v282 = vld [vmem:[#allocation3 + $0x4e8] sm:$0xff]
    %v283 = vld [vmem:[#allocation3 + $0x4f0] sm:$0xff]
    %v284 = vld [vmem:[#allocation3 + $0x4f8] sm:$0xff]
    %v285 = vld [vmem:[#allocation3 + $0x500] sm:$0xff]
    %v286 = vld [vmem:[#allocation3 + $0x508] sm:$0xff]
    %v287 = vld [vmem:[#allocation3 + $0x510] sm:$0xff]
    %v288 = vld [vmem:[#allocation3 + $0x518] sm:$0xff]
    %v289 = vld [vmem:[#allocation3 + $0x520] sm:$0xff]
    %v290 = vld [vmem:[#allocation3 + $0x528] sm:$0xff]
    %v291 = vld [vmem:[#allocation3 + $0x530] sm:$0xff]
    %v292 = vld [vmem:[#allocation3 + $0x538] sm:$0xff]
    %v293 = vld [vmem:[#allocation3 + $0x540] sm:$0xff]
    %v294 = vld [vmem:[#allocation3 + $0x548] sm:$0xff]
    %v295 = vld [vmem:[#allocation3 + $0x550] sm:$0xff]
    %v296 = vld [vmem:[#allocation3 + $0x558] sm:$0xff]
    %v297 = vld [vmem:[#allocation3 + $0x560] sm:$0xff]
    %v298 = vld [vmem:[#allocation3 + $0x568] sm:$0xff]
    %v299 = vld [vmem:[#allocation3 + $0x570] sm:$0xff]
    %v300 = vld [vmem:[#allocation3 + $0x578] sm:$0xff]
    %v301 = vld [vmem:[#allocation3 + $0x580] sm:$0xff]
    %v302 = vld [vmem:[#allocation3 + $0x588] sm:$0xff]
    %v303 = vld [vmem:[#allocation3 + $0x590] sm:$0xff]
    %v304 = vld [vmem:[#allocation3 + $0x598] sm:$0xff]
    %v305 = vld [vmem:[#allocation3 + $0x5a0] sm:$0xff]
    %v306 = vld [vmem:[#allocation3 + $0x5a8] sm:$0xff]
    %v307 = vld [vmem:[#allocation3 + $0x5b0] sm:$0xff]
    %v308 = vld [vmem:[#allocation3 + $0x5b8] sm:$0xff]
    %v309 = vld [vmem:[#allocation3 + $0x5c0] sm:$0xff]
    %v310 = vld [vmem:[#allocation3 + $0x5c8] sm:$0xff]
    %v311 = vld [vmem:[#allocation3 + $0x5d0] sm:$0xff]
    %v312 = vld [vmem:[#allocation3 + $0x5d8] sm:$0xff]
    %v313 = vld [vmem:[#allocation3 + $0x5e0] sm:$0xff]
    %v314 = vld [vmem:[#allocation3 + $0x5e8] sm:$0xff]
    %v315 = vld [vmem:[#allocation3 + $0x5f0] sm:$0xff]
    %v316 = vld [vmem:[#allocation3 + $0x5f8] sm:$0xff]
    %v317 = vld [vmem:[#allocation3 + $0x600] sm:$0xff]
    %v318 = vld [vmem:[#allocation3 + $0x608] sm:$0xff]
    %v319 = vld [vmem:[#allocation3 + $0x610] sm:$0xff]
    %v320 = vld [vmem:[#allocation3 + $0x618] sm:$0xff]
    %v321 = vld [vmem:[#allocation3 + $0x620] sm:$0xff]
    %v322 = vld [vmem:[#allocation3 + $0x628] sm:$0xff]
    %v323 = vld [vmem:[#allocation3 + $0x630] sm:$0xff]
    %v324 = vld [vmem:[#allocation3 + $0x638] sm:$0xff]
    %v325 = vld [vmem:[#allocation3 + $0x640] sm:$0xff]
    %v326 = vld [vmem:[#allocation3 + $0x648] sm:$0xff]
    %v327 = vld [vmem:[#allocation3 + $0x650] sm:$0xff]
    %v328 = vld [vmem:[#allocation3 + $0x658] sm:$0xff]
    %v329 = vld [vmem:[#allocation3 + $0x660] sm:$0xff]
    %v330 = vld [vmem:[#allocation3 + $0x668] sm:$0xff]
    %v331 = vld [vmem:[#allocation3 + $0x670] sm:$0xff]
    %v332 = vld [vmem:[#allocation3 + $0x678] sm:$0xff]
    %v333 = vld [vmem:[#allocation3 + $0x680] sm:$0xff]
    %v334 = vld [vmem:[#allocation3 + $0x688] sm:$0xff]
    %v335 = vld [vmem:[#allocation3 + $0x690] sm:$0xff]
    %v336 = vld [vmem:[#allocation3 + $0x698] sm:$0xff]
    %v337 = vld [vmem:[#allocation3 + $0x6a0] sm:$0xff]
    %v338 = vld [vmem:[#allocation3 + $0x6a8] sm:$0xff]
    %v339 = vld [vmem:[#allocation3 + $0x6b0] sm:$0xff]
    %v340 = vld [vmem:[#allocation3 + $0x6b8] sm:$0xff]
    %v341 = vld [vmem:[#allocation3 + $0x6c0] sm:$0xff]
    %v342 = vld [vmem:[#allocation3 + $0x6c8] sm:$0xff]
    %v343 = vld [vmem:[#allocation3 + $0x6d0] sm:$0xff]
    %v344 = vld [vmem:[#allocation3 + $0x6d8] sm:$0xff]
    %v345 = vld [vmem:[#allocation3 + $0x6e0] sm:$0xff]
    %v346 = vld [vmem:[#allocation3 + $0x6e8] sm:$0xff]
    %v347 = vld [vmem:[#allocation3 + $0x6f0] sm:$0xff]
    %v348 = vld [vmem:[#allocation3 + $0x6f8] sm:$0xff]
    %v349 = vld [vmem:[#allocation3 + $0x700] sm:$0xff]
    %v350 = vld [vmem:[#allocation3 + $0x708] sm:$0xff]
    %v351 = vld [vmem:[#allocation3 + $0x710] sm:$0xff]
    %v352 = vld [vmem:[#allocation3 + $0x718] sm:$0xff]
    %v353 = vld [vmem:[#allocation3 + $0x720] sm:$0xff]
    %v354 = vld [vmem:[#allocation3 + $0x728] sm:$0xff]
    %v355 = vld [vmem:[#allocation3 + $0x730] sm:$0xff]
    %v356 = vld [vmem:[#allocation3 + $0x738] sm:$0xff]
    %v357 = vld [vmem:[#allocation3 + $0x740] sm:$0xff]
    %v358 = vld [vmem:[#allocation3 + $0x748] sm:$0xff]
    %v359 = vld [vmem:[#allocation3 + $0x750] sm:$0xff]
    %v360 = vld [vmem:[#allocation3 + $0x758] sm:$0xff]
    %v361 = vld [vmem:[#allocation3 + $0x760] sm:$0xff]
    %v362 = vld [vmem:[#allocation3 + $0x768] sm:$0xff]
    %v363 = vld [vmem:[#allocation3 + $0x770] sm:$0xff]
    %v364 = vld [vmem:[#allocation3 + $0x778] sm:$0xff]
    %v365 = vld [vmem:[#allocation3 + $0x780] sm:$0xff]
    %v366 = vld [vmem:[#allocation3 + $0x788] sm:$0xff]
    %v367 = vld [vmem:[#allocation3 + $0x790] sm:$0xff]
    %v368 = vld [vmem:[#allocation3 + $0x798] sm:$0xff]
    %v369 = vld [vmem:[#allocation3 + $0x7a0] sm:$0xff]
    %v370 = vld [vmem:[#allocation3 + $0x7a8] sm:$0xff]
    %v371 = vld [vmem:[#allocation3 + $0x7b0] sm:$0xff]
    %v372 = vld [vmem:[#allocation3 + $0x7b8] sm:$0xff]
    %v373 = vld [vmem:[#allocation3 + $0x7c0] sm:$0xff]
    %v374 = vld [vmem:[#allocation3 + $0x7c8] sm:$0xff]
    %v375 = vld [vmem:[#allocation3 + $0x7d0] sm:$0xff]
    %v376 = vld [vmem:[#allocation3 + $0x7d8] sm:$0xff]
    %v377 = vld [vmem:[#allocation3 + $0x7e0] sm:$0xff]
    %v378 = vld [vmem:[#allocation3 + $0x7e8] sm:$0xff]
    %v379 = vld [vmem:[#allocation3 + $0x7f0] sm:$0xff]
    %v380 = vld [vmem:[#allocation3 + $0x7f8] sm:$0xff]
    %v381 = vld [vmem:[#allocation3 + $0x800] sm:$0xff]
    %v382 = vld [vmem:[#allocation3 + $0x808] sm:$0xff]
    %v383 = vld [vmem:[#allocation3 + $0x810] sm:$0xff]
    %v384 = vld [vmem:[#allocation3 + $0x818] sm:$0xff]
    %v385 = vld [vmem:[#allocation3 + $0x820] sm:$0xff]
    %v386 = vld [vmem:[#allocation3 + $0x828] sm:$0xff]
    %v387 = vld [vmem:[#allocation3 + $0x830] sm:$0xff]
    %v388 = vld [vmem:[#allocation3 + $0x838] sm:$0xff]
    %v389 = vld [vmem:[#allocation3 + $0x840] sm:$0xff]
    %v390 = vld [vmem:[#allocation3 + $0x848] sm:$0xff]
    %v391 = vld [vmem:[#allocation3 + $0x850] sm:$0xff]
    %v392 = vld [vmem:[#allocation3 + $0x858] sm:$0xff]
    %v393 = vld [vmem:[#allocation3 + $0x860] sm:$0xff]
    %v394 = vld [vmem:[#allocation3 + $0x868] sm:$0xff]
    %v395 = vld [vmem:[#allocation3 + $0x870] sm:$0xff]
    %v396 = vld [vmem:[#allocation3 + $0x878] sm:$0xff]
    %v397 = vld [vmem:[#allocation3 + $0x880] sm:$0xff]
    %v398 = vld [vmem:[#allocation3 + $0x888] sm:$0xff]
    %v399 = vld [vmem:[#allocation3 + $0x890] sm:$0xff]
    %v400 = vld [vmem:[#allocation3 + $0x898] sm:$0xff]
    %v401 = vld [vmem:[#allocation3 + $0x8a0] sm:$0xff]
    %v402 = vld [vmem:[#allocation3 + $0x8a8] sm:$0xff]
    %v403 = vld [vmem:[#allocation3 + $0x8b0] sm:$0xff]
    %v404 = vld [vmem:[#allocation3 + $0x8b8] sm:$0xff]
    %v405 = vld [vmem:[#allocation3 + $0x8c0] sm:$0xff]
    %v406 = vld [vmem:[#allocation3 + $0x8c8] sm:$0xff]
    %v407 = vld [vmem:[#allocation3 + $0x8d0] sm:$0xff]
    %v408 = vld [vmem:[#allocation3 + $0x8d8] sm:$0xff]
    %v409 = vld [vmem:[#allocation3 + $0x8e0] sm:$0xff]
    %v410 = vld [vmem:[#allocation3 + $0x8e8] sm:$0xff]
    %v411 = vld [vmem:[#allocation3 + $0x8f0] sm:$0xff]
    %v412 = vld [vmem:[#allocation3 + $0x8f8] sm:$0xff]
    %v413 = vld [vmem:[#allocation3 + $0x900] sm:$0xff]
    %v414 = vld [vmem:[#allocation3 + $0x908] sm:$0xff]
    %v415 = vld [vmem:[#allocation3 + $0x910] sm:$0xff]
    %v416 = vld [vmem:[#allocation3 + $0x918] sm:$0xff]
    %v417 = vld [vmem:[#allocation3 + $0x920] sm:$0xff]
    %v418 = vld [vmem:[#allocation3 + $0x928] sm:$0xff]
    %v419 = vld [vmem:[#allocation3 + $0x930] sm:$0xff]
    %v420 = vld [vmem:[#allocation3 + $0x938] sm:$0xff]
    %v421 = vld [vmem:[#allocation3 + $0x940] sm:$0xff]
    %v422 = vld [vmem:[#allocation3 + $0x948] sm:$0xff]
    %v423 = vld [vmem:[#allocation3 + $0x950] sm:$0xff]
    %v424 = vld [vmem:[#allocation3 + $0x958] sm:$0xff]
    %v425 = vld [vmem:[#allocation3 + $0x960] sm:$0xff]
    %v426 = vld [vmem:[#allocation3 + $0x968] sm:$0xff]
    %v427 = vld [vmem:[#allocation3 + $0x970] sm:$0xff]
    %v428 = vld [vmem:[#allocation3 + $0x978] sm:$0xff]
    %v429 = vld [vmem:[#allocation3 + $0x980] sm:$0xff]
    %v430 = vld [vmem:[#allocation3 + $0x988] sm:$0xff]
    %v431 = vld [vmem:[#allocation3 + $0x990] sm:$0xff]
    %v432 = vld [vmem:[#allocation3 + $0x998] sm:$0xff]
    %v433 = vld [vmem:[#allocation3 + $0x9a0] sm:$0xff]
    %v434 = vld [vmem:[#allocation3 + $0x9a8] sm:$0xff]
    %v435 = vld [vmem:[#allocation3 + $0x9b0] sm:$0xff]
    %v436 = vld [vmem:[#allocation3 + $0x9b8] sm:$0xff]
    %v437 = vld [vmem:[#allocation3 + $0x9c0] sm:$0xff]
    %v438 = vld [vmem:[#allocation3 + $0x9c8] sm:$0xff]
    %v439 = vld [vmem:[#allocation3 + $0x9d0] sm:$0xff]
    %v440 = vld [vmem:[#allocation3 + $0x9d8] sm:$0xff]
    %v441 = vld [vmem:[#allocation3 + $0x9e0] sm:$0xff]
    %v442 = vld [vmem:[#allocation3 + $0x9e8] sm:$0xff]
    %v443 = vld [vmem:[#allocation3 + $0x9f0] sm:$0xff]
    %v444 = vld [vmem:[#allocation3 + $0x9f8] sm:$0xff]
    %v445 = vld [vmem:[#allocation3 + $0xa00] sm:$0xff]
    %v446 = vld [vmem:[#allocation3 + $0xa08] sm:$0xff]
    %v447 = vld [vmem:[#allocation3 + $0xa10] sm:$0xff]
    %v448 = vld [vmem:[#allocation3 + $0xa18] sm:$0xff]
    %v449 = vld [vmem:[#allocation3 + $0xa20] sm:$0xff]
    %v450 = vld [vmem:[#allocation3 + $0xa28] sm:$0xff]
    %v451 = vld [vmem:[#allocation3 + $0xa30] sm:$0xff]
    %v452 = vld [vmem:[#allocation3 + $0xa38] sm:$0xff]
    %v453 = vld [vmem:[#allocation3 + $0xa40] sm:$0xff]
    %v454 = vld [vmem:[#allocation3 + $0xa48] sm:$0xff]
    %v455 = vld [vmem:[#allocation3 + $0xa50] sm:$0xff]
    %v456 = vld [vmem:[#allocation3 + $0xa58] sm:$0xff]
    %v457 = vld [vmem:[#allocation3 + $0xa60] sm:$0xff]
    %v458 = vld [vmem:[#allocation3 + $0xa68] sm:$0xff]
    %v459 = vld [vmem:[#allocation3 + $0xa70] sm:$0xff]
    %v460 = vld [vmem:[#allocation3 + $0xa78] sm:$0xff]
    %v461 = vld [vmem:[#allocation3 + $0xa80] sm:$0xff]
    %v462 = vld [vmem:[#allocation3 + $0xa88] sm:$0xff]
    %v463 = vld [vmem:[#allocation3 + $0xa90] sm:$0xff]
    %v464 = vld [vmem:[#allocation3 + $0xa98] sm:$0xff]
    %v465 = vld [vmem:[#allocation3 + $0xaa0] sm:$0xff]
    %v466 = vld [vmem:[#allocation3 + $0xaa8] sm:$0xff]
    %v467 = vld [vmem:[#allocation3 + $0xab0] sm:$0xff]
    %v468 = vld [vmem:[#allocation3 + $0xab8] sm:$0xff]
    %v469 = vld [vmem:[#allocation3 + $0xac0] sm:$0xff]
    %v470 = vld [vmem:[#allocation3 + $0xac8] sm:$0xff]
    %v471 = vld [vmem:[#allocation3 + $0xad0] sm:$0xff]
    %v472 = vld [vmem:[#allocation3 + $0xad8] sm:$0xff]
    %v473 = vld [vmem:[#allocation3 + $0xae0] sm:$0xff]
    %v474 = vld [vmem:[#allocation3 + $0xae8] sm:$0xff]
    %v475 = vld [vmem:[#allocation3 + $0xaf0] sm:$0xff]
    %v476 = vld [vmem:[#allocation3 + $0xaf8] sm:$0xff]
    %v477 = vld [vmem:[#allocation3 + $0xb00] sm:$0xff]
    %v478 = vld [vmem:[#allocation3 + $0xb08] sm:$0xff]
    %v479 = vld [vmem:[#allocation3 + $0xb10] sm:$0xff]
    %v480 = vld [vmem:[#allocation3 + $0xb18] sm:$0xff]
    %v481 = vld [vmem:[#allocation3 + $0xb20] sm:$0xff]
    %v482 = vld [vmem:[#allocation3 + $0xb28] sm:$0xff]
    %v483 = vld [vmem:[#allocation3 + $0xb30] sm:$0xff]
    %v484 = vld [vmem:[#allocation3 + $0xb38] sm:$0xff]
    %v485 = vld [vmem:[#allocation3 + $0xb40] sm:$0xff]
    %v486 = vld [vmem:[#allocation3 + $0xb48] sm:$0xff]
    %v487 = vld [vmem:[#allocation3 + $0xb50] sm:$0xff]
    %v488 = vld [vmem:[#allocation3 + $0xb58] sm:$0xff]
    %v489 = vld [vmem:[#allocation3 + $0xb60] sm:$0xff]
    %v490 = vld [vmem:[#allocation3 + $0xb68] sm:$0xff]
    %v491 = vld [vmem:[#allocation3 + $0xb70] sm:$0xff]
    %v492 = vld [vmem:[#allocation3 + $0xb78] sm:$0xff]
    %v493 = vld [vmem:[#allocation3 + $0xb80] sm:$0xff]
    %v494 = vld [vmem:[#allocation3 + $0xb88] sm:$0xff]
    %v495 = vld [vmem:[#allocation3 + $0xb90] sm:$0xff]
    %v496 = vld [vmem:[#allocation3 + $0xb98] sm:$0xff]
    %v497 = vld [vmem:[#allocation3 + $0xba0] sm:$0xff]
    %v498 = vld [vmem:[#allocation3 + $0xba8] sm:$0xff]
    %v499 = vld [vmem:[#allocation3 + $0xbb0] sm:$0xff]
    %v500 = vld [vmem:[#allocation3 + $0xbb8] sm:$0xff]
    %v501 = vld [vmem:[#allocation3 + $0xbc0] sm:$0xff]
    %v502 = vld [vmem:[#allocation3 + $0xbc8] sm:$0xff]
    %v503 = vld [vmem:[#allocation3 + $0xbd0] sm:$0xff]
    %v504 = vld [vmem:[#allocation3 + $0xbd8] sm:$0xff]
    %v505 = vld [vmem:[#allocation3 + $0xbe0] sm:$0xff]
    %v506 = vld [vmem:[#allocation3 + $0xbe8] sm:$0xff]
    %v507 = vld [vmem:[#allocation3 + $0xbf0] sm:$0xff]
    %v508 = vld [vmem:[#allocation3 + $0xbf8] sm:$0xff]
    %v509 = vld [vmem:[%s2] sm:$0xff]
    %v510 = vld [vmem:[%s2 + $0x8] sm:$0xff]
    %v511 = vld [vmem:[%s2 + $0x10] sm:$0xff]
    %v512 = vld [vmem:[%s2 + $0x18] sm:$0xff]
    %v513 = vld [vmem:[%s2 + $0x20] sm:$0xff]
    %v514 = vld [vmem:[%s2 + $0x28] sm:$0xff]
    %v515 = vld [vmem:[%s2 + $0x30] sm:$0xff]
    %v516 = vld [vmem:[%s2 + $0x38] sm:$0xff]
    %v517 = vld [vmem:[%s2 + $0x40] sm:$0xff]
    %v518 = vld [vmem:[%s2 + $0x48] sm:$0xff]
    %v519 = vld [vmem:[%s2 + $0x50] sm:$0xff]
    %v520 = vld [vmem:[%s2 + $0x58] sm:$0xff]
    %v521 = vld [vmem:[%s2 + $0x60] sm:$0xff]
    %v522 = vld [vmem:[%s2 + $0x68] sm:$0xff]
    %v523 = vld [vmem:[%s2 + $0x70] sm:$0xff]
    %v524 = vld [vmem:[%s2 + $0x78] sm:$0xff]
    %v525 = vld [vmem:[%s2 + $0x80] sm:$0xff]
    %v526 = vld [vmem:[%s2 + $0x88] sm:$0xff]
    %v527 = vld [vmem:[%s2 + $0x90] sm:$0xff]
    %v528 = vld [vmem:[%s2 + $0x98] sm:$0xff]
    %v529 = vld [vmem:[%s2 + $0xa0] sm:$0xff]
    %v530 = vld [vmem:[%s2 + $0xa8] sm:$0xff]
    %v531 = vld [vmem:[%s2 + $0xb0] sm:$0xff]
    %v532 = vld [vmem:[%s2 + $0xb8] sm:$0xff]
    %v533 = vld [vmem:[%s2 + $0xc0] sm:$0xff]
    %v534 = vld [vmem:[%s2 + $0xc8] sm:$0xff]
    %v535 = vld [vmem:[%s2 + $0xd0] sm:$0xff]
    %v536 = vld [vmem:[%s2 + $0xd8] sm:$0xff]
    %v537 = vld [vmem:[%s2 + $0xe0] sm:$0xff]
    %v538 = vld [vmem:[%s2 + $0xe8] sm:$0xff]
    %v539 = vld [vmem:[%s2 + $0xf0] sm:$0xff]
    %v540 = vld [vmem:[%s2 + $0xf8] sm:$0xff]
    %v541 = vld [vmem:[%s2 + $0x100] sm:$0xff]
    %v542 = vld [vmem:[%s2 + $0x108] sm:$0xff]
    %v543 = vld [vmem:[%s2 + $0x110] sm:$0xff]
    %v544 = vld [vmem:[%s2 + $0x118] sm:$0xff]
    %v545 = vld [vmem:[%s2 + $0x120] sm:$0xff]
    %v546 = vld [vmem:[%s2 + $0x128] sm:$0xff]
    %v547 = vld [vmem:[%s2 + $0x130] sm:$0xff]
    %v548 = vld [vmem:[%s2 + $0x138] sm:$0xff]
    %v549 = vld [vmem:[%s2 + $0x140] sm:$0xff]
    %v550 = vld [vmem:[%s2 + $0x148] sm:$0xff]
    %v551 = vld [vmem:[%s2 + $0x150] sm:$0xff]
    %v552 = vld [vmem:[%s2 + $0x158] sm:$0xff]
    %v553 = vld [vmem:[%s2 + $0x160] sm:$0xff]
    %v554 = vld [vmem:[%s2 + $0x168] sm:$0xff]
    %v555 = vld [vmem:[%s2 + $0x170] sm:$0xff]
    %v556 = vld [vmem:[%s2 + $0x178] sm:$0xff]
    %v557 = vld [vmem:[%s2 + $0x180] sm:$0xff]
    %v558 = vld [vmem:[%s2 + $0x188] sm:$0xff]
    %v559 = vld [vmem:[%s2 + $0x190] sm:$0xff]
    %v560 = vld [vmem:[%s2 + $0x198] sm:$0xff]
    %v561 = vld [vmem:[%s2 + $0x1a0] sm:$0xff]
    %v562 = vld [vmem:[%s2 + $0x1a8] sm:$0xff]
    %v563 = vld [vmem:[%s2 + $0x1b0] sm:$0xff]
    %v564 = vld [vmem:[%s2 + $0x1b8] sm:$0xff]
    %v565 = vld [vmem:[%s2 + $0x1c0] sm:$0xff]
    %v566 = vld [vmem:[%s2 + $0x1c8] sm:$0xff]
    %v567 = vld [vmem:[%s2 + $0x1d0] sm:$0xff]
    %v568 = vld [vmem:[%s2 + $0x1d8] sm:$0xff]
    %v569 = vld [vmem:[%s2 + $0x1e0] sm:$0xff]
    %v570 = vld [vmem:[%s2 + $0x1e8] sm:$0xff]
    %v571 = vld [vmem:[%s2 + $0x1f0] sm:$0xff]
    %v572 = vld [vmem:[%s2 + $0x1f8] sm:$0xff]
    %v573 = vld [vmem:[%s2 + $0x200] sm:$0xff]
    %v574 = vld [vmem:[%s2 + $0x208] sm:$0xff]
    %v575 = vld [vmem:[%s2 + $0x210] sm:$0xff]
    %v576 = vld [vmem:[%s2 + $0x218] sm:$0xff]
    %v577 = vld [vmem:[%s2 + $0x220] sm:$0xff]
    %v578 = vld [vmem:[%s2 + $0x228] sm:$0xff]
    %v579 = vld [vmem:[%s2 + $0x230] sm:$0xff]
    %v580 = vld [vmem:[%s2 + $0x238] sm:$0xff]
    %v581 = vld [vmem:[%s2 + $0x240] sm:$0xff]
    %v582 = vld [vmem:[%s2 + $0x248] sm:$0xff]
    %v583 = vld [vmem:[%s2 + $0x250] sm:$0xff]
    %v584 = vld [vmem:[%s2 + $0x258] sm:$0xff]
    %v585 = vld [vmem:[%s2 + $0x260] sm:$0xff]
    %v586 = vld [vmem:[%s2 + $0x268] sm:$0xff]
    %v587 = vld [vmem:[%s2 + $0x270] sm:$0xff]
    %v588 = vld [vmem:[%s2 + $0x278] sm:$0xff]
    %v589 = vld [vmem:[%s2 + $0x280] sm:$0xff]
    %v590 = vld [vmem:[%s2 + $0x288] sm:$0xff]
    %v591 = vld [vmem:[%s2 + $0x290] sm:$0xff]
    %v592 = vld [vmem:[%s2 + $0x298] sm:$0xff]
    %v593 = vld [vmem:[%s2 + $0x2a0] sm:$0xff]
    %v594 = vld [vmem:[%s2 + $0x2a8] sm:$0xff]
    %v595 = vld [vmem:[%s2 + $0x2b0] sm:$0xff]
    %v596 = vld [vmem:[%s2 + $0x2b8] sm:$0xff]
    %v597 = vld [vmem:[%s2 + $0x2c0] sm:$0xff]
    %v598 = vld [vmem:[%s2 + $0x2c8] sm:$0xff]
    %v599 = vld [vmem:[%s2 + $0x2d0] sm:$0xff]
    %v600 = vld [vmem:[%s2 + $0x2d8] sm:$0xff]
    %v601 = vld [vmem:[%s2 + $0x2e0] sm:$0xff]
    %v602 = vld [vmem:[%s2 + $0x2e8] sm:$0xff]
    %v603 = vld [vmem:[%s2 + $0x2f0] sm:$0xff]
    %v604 = vld [vmem:[%s2 + $0x2f8] sm:$0xff]
    %v605 = vld [vmem:[%s2 + $0x300] sm:$0xff]
    %v606 = vld [vmem:[%s2 + $0x308] sm:$0xff]
    %v607 = vld [vmem:[%s2 + $0x310] sm:$0xff]
    %v608 = vld [vmem:[%s2 + $0x318] sm:$0xff]
    %v609 = vld [vmem:[%s2 + $0x320] sm:$0xff]
    %v610 = vld [vmem:[%s2 + $0x328] sm:$0xff]
    %v611 = vld [vmem:[%s2 + $0x330] sm:$0xff]
    %v612 = vld [vmem:[%s2 + $0x338] sm:$0xff]
    %v613 = vld [vmem:[%s2 + $0x340] sm:$0xff]
    %v614 = vld [vmem:[%s2 + $0x348] sm:$0xff]
    %v615 = vld [vmem:[%s2 + $0x350] sm:$0xff]
    %v616 = vld [vmem:[%s2 + $0x358] sm:$0xff]
    %v617 = vld [vmem:[%s2 + $0x360] sm:$0xff]
    %v618 = vld [vmem:[%s2 + $0x368] sm:$0xff]
    %v619 = vld [vmem:[%s2 + $0x370] sm:$0xff]
    %v620 = vld [vmem:[%s2 + $0x378] sm:$0xff]
    %v621 = vld [vmem:[%s2 + $0x380] sm:$0xff]
    %v622 = vld [vmem:[%s2 + $0x388] sm:$0xff]
    %v623 = vld [vmem:[%s2 + $0x390] sm:$0xff]
    %v624 = vld [vmem:[%s2 + $0x398] sm:$0xff]
    %v625 = vld [vmem:[%s2 + $0x3a0] sm:$0xff]
    %v626 = vld [vmem:[%s2 + $0x3a8] sm:$0xff]
    %v627 = vld [vmem:[%s2 + $0x3b0] sm:$0xff]
    %v628 = vld [vmem:[%s2 + $0x3b8] sm:$0xff]
    %v629 = vld [vmem:[%s2 + $0x3c0] sm:$0xff]
    %v630 = vld [vmem:[%s2 + $0x3c8] sm:$0xff]
    %v631 = vld [vmem:[%s2 + $0x3d0] sm:$0xff]
    %v632 = vld [vmem:[%s2 + $0x3d8] sm:$0xff]
    %v633 = vld [vmem:[%s2 + $0x3e0] sm:$0xff]
    %v634 = vld [vmem:[%s2 + $0x3e8] sm:$0xff]
    %v635 = vld [vmem:[%s2 + $0x3f0] sm:$0xff]
    %v636 = vld [vmem:[%s2 + $0x3f8] sm:$0xff]
    %v637 = vld [vmem:[%s2 + $0x400] sm:$0xff]
    %v638 = vld [vmem:[%s2 + $0x408] sm:$0xff]
    %v639 = vld [vmem:[%s2 + $0x410] sm:$0xff]
    %v640 = vld [vmem:[%s2 + $0x418] sm:$0xff]
    %v641 = vld [vmem:[%s2 + $0x420] sm:$0xff]
    %v642 = vld [vmem:[%s2 + $0x428] sm:$0xff]
    %v643 = vld [vmem:[%s2 + $0x430] sm:$0xff]
    %v644 = vld [vmem:[%s2 + $0x438] sm:$0xff]
    %v645 = vld [vmem:[%s2 + $0x440] sm:$0xff]
    %v646 = vld [vmem:[%s2 + $0x448] sm:$0xff]
    %v647 = vld [vmem:[%s2 + $0x450] sm:$0xff]
    %v648 = vld [vmem:[%s2 + $0x458] sm:$0xff]
    %v649 = vld [vmem:[%s2 + $0x460] sm:$0xff]
    %v650 = vld [vmem:[%s2 + $0x468] sm:$0xff]
    %v651 = vld [vmem:[%s2 + $0x470] sm:$0xff]
    %v652 = vld [vmem:[%s2 + $0x478] sm:$0xff]
    %v653 = vld [vmem:[%s2 + $0x480] sm:$0xff]
    %v654 = vld [vmem:[%s2 + $0x488] sm:$0xff]
    %v655 = vld [vmem:[%s2 + $0x490] sm:$0xff]
    %v656 = vld [vmem:[%s2 + $0x498] sm:$0xff]
    %v657 = vld [vmem:[%s2 + $0x4a0] sm:$0xff]
    %v658 = vld [vmem:[%s2 + $0x4a8] sm:$0xff]
    %v659 = vld [vmem:[%s2 + $0x4b0] sm:$0xff]
    %v660 = vld [vmem:[%s2 + $0x4b8] sm:$0xff]
    %v661 = vld [vmem:[%s2 + $0x4c0] sm:$0xff]
    %v662 = vld [vmem:[%s2 + $0x4c8] sm:$0xff]
    %v663 = vld [vmem:[%s2 + $0x4d0] sm:$0xff]
    %v664 = vld [vmem:[%s2 + $0x4d8] sm:$0xff]
    %v665 = vld [vmem:[%s2 + $0x4e0] sm:$0xff]
    %v666 = vld [vmem:[%s2 + $0x4e8] sm:$0xff]
    %v667 = vld [vmem:[%s2 + $0x4f0] sm:$0xff]
    %v668 = vld [vmem:[%s2 + $0x4f8] sm:$0xff]
    %v669 = vld [vmem:[%s2 + $0x500] sm:$0xff]
    %v670 = vld [vmem:[%s2 + $0x508] sm:$0xff]
    %v671 = vld [vmem:[%s2 + $0x510] sm:$0xff]
    %v672 = vld [vmem:[%s2 + $0x518] sm:$0xff]
    %v673 = vld [vmem:[%s2 + $0x520] sm:$0xff]
    %v674 = vld [vmem:[%s2 + $0x528] sm:$0xff]
    %v675 = vld [vmem:[%s2 + $0x530] sm:$0xff]
    %v676 = vld [vmem:[%s2 + $0x538] sm:$0xff]
    %v677 = vld [vmem:[%s2 + $0x540] sm:$0xff]
    %v678 = vld [vmem:[%s2 + $0x548] sm:$0xff]
    %v679 = vld [vmem:[%s2 + $0x550] sm:$0xff]
    %v680 = vld [vmem:[%s2 + $0x558] sm:$0xff]
    %v681 = vld [vmem:[%s2 + $0x560] sm:$0xff]
    %v682 = vld [vmem:[%s2 + $0x568] sm:$0xff]
    %v683 = vld [vmem:[%s2 + $0x570] sm:$0xff]
    %v684 = vld [vmem:[%s2 + $0x578] sm:$0xff]
    %v685 = vld [vmem:[%s2 + $0x580] sm:$0xff]
    %v686 = vld [vmem:[%s2 + $0x588] sm:$0xff]
    %v687 = vld [vmem:[%s2 + $0x590] sm:$0xff]
    %v688 = vld [vmem:[%s2 + $0x598] sm:$0xff]
    %v689 = vld [vmem:[%s2 + $0x5a0] sm:$0xff]
    %v690 = vld [vmem:[%s2 + $0x5a8] sm:$0xff]
    %v691 = vld [vmem:[%s2 + $0x5b0] sm:$0xff]
    %v692 = vld [vmem:[%s2 + $0x5b8] sm:$0xff]
    %v693 = vld [vmem:[%s2 + $0x5c0] sm:$0xff]
    %v694 = vld [vmem:[%s2 + $0x5c8] sm:$0xff]
    %v695 = vld [vmem:[%s2 + $0x5d0] sm:$0xff]
    %v696 = vld [vmem:[%s2 + $0x5d8] sm:$0xff]
    %v697 = vld [vmem:[%s2 + $0x5e0] sm:$0xff]
    %v698 = vld [vmem:[%s2 + $0x5e8] sm:$0xff]
    %v699 = vld [vmem:[%s2 + $0x5f0] sm:$0xff]
    %v700 = vld [vmem:[%s2 + $0x5f8] sm:$0xff]
    %702 = vset.pattern.permute.xlu0 0
    %703 = vperm.xlu0 %702, %v509
    %v704 = vpop.permute.xlu0 %703
    %707 = vset.pattern.permute.xlu0 0
    %708 = vperm.xlu0 %707, %v510
    %v709 = vpop.permute.xlu0 %708
    %712 = vset.pattern.permute.xlu0 0
    %713 = vperm.xlu0 %712, %v511
    %v714 = vpop.permute.xlu0 %713
    %717 = vset.pattern.permute.xlu0 0
    %718 = vperm.xlu0 %717, %v512
    %v719 = vpop.permute.xlu0 %718
    %722 = vset.pattern.permute.xlu0 0
    %723 = vperm.xlu0 %722, %v513
    %v724 = vpop.permute.xlu0 %723
    %727 = vset.pattern.permute.xlu0 0
    %728 = vperm.xlu0 %727, %v514
    %v729 = vpop.permute.xlu0 %728
    %732 = vset.pattern.permute.xlu0 0
    %733 = vperm.xlu0 %732, %v515
    %v734 = vpop.permute.xlu0 %733
    %737 = vset.pattern.permute.xlu0 0
    %738 = vperm.xlu0 %737, %v516
    %v739 = vpop.permute.xlu0 %738
    %742 = vset.pattern.permute.xlu0 0
    %743 = vperm.xlu0 %742, %v517
    %v744 = vpop.permute.xlu0 %743
    %747 = vset.pattern.permute.xlu0 0
    %748 = vperm.xlu0 %747, %v518
    %v749 = vpop.permute.xlu0 %748
    %752 = vset.pattern.permute.xlu0 0
    %753 = vperm.xlu0 %752, %v519
    %v754 = vpop.permute.xlu0 %753
    %757 = vset.pattern.permute.xlu0 0
    %758 = vperm.xlu0 %757, %v520
    %v759 = vpop.permute.xlu0 %758
    %762 = vset.pattern.permute.xlu0 0
    %763 = vperm.xlu0 %762, %v521
    %v764 = vpop.permute.xlu0 %763
    %767 = vset.pattern.permute.xlu0 0
    %768 = vperm.xlu0 %767, %v522
    %v769 = vpop.permute.xlu0 %768
    %772 = vset.pattern.permute.xlu0 0
    %773 = vperm.xlu0 %772, %v523
    %v774 = vpop.permute.xlu0 %773
    %777 = vset.pattern.permute.xlu0 0
    %778 = vperm.xlu0 %777, %v524
    %v779 = vpop.permute.xlu0 %778
    %782 = vset.pattern.permute.xlu0 0
    %783 = vperm.xlu0 %782, %v525
    %v784 = vpop.permute.xlu0 %783
    %787 = vset.pattern.permute.xlu0 0
    %788 = vperm.xlu0 %787, %v526
    %v789 = vpop.permute.xlu0 %788
    %792 = vset.pattern.permute.xlu0 0
    %793 = vperm.xlu0 %792, %v527
    %v794 = vpop.permute.xlu0 %793
    %797 = vset.pattern.permute.xlu0 0
    %798 = vperm.xlu0 %797, %v528
    %v799 = vpop.permute.xlu0 %798
    %802 = vset.pattern.permute.xlu0 0
    %803 = vperm.xlu0 %802, %v529
    %v804 = vpop.permute.xlu0 %803
    %807 = vset.pattern.permute.xlu0 0
    %808 = vperm.xlu0 %807, %v530
    %v809 = vpop.permute.xlu0 %808
    %812 = vset.pattern.permute.xlu0 0
    %813 = vperm.xlu0 %812, %v531
    %v814 = vpop.permute.xlu0 %813
    %817 = vset.pattern.permute.xlu0 0
    %818 = vperm.xlu0 %817, %v532
    %v819 = vpop.permute.xlu0 %818
    %822 = vset.pattern.permute.xlu0 0
    %823 = vperm.xlu0 %822, %v533
    %v824 = vpop.permute.xlu0 %823
    %827 = vset.pattern.permute.xlu0 0
    %828 = vperm.xlu0 %827, %v534
    %v829 = vpop.permute.xlu0 %828
    %832 = vset.pattern.permute.xlu0 0
    %833 = vperm.xlu0 %832, %v535
    %v834 = vpop.permute.xlu0 %833
    %837 = vset.pattern.permute.xlu0 0
    %838 = vperm.xlu0 %837, %v536
    %v839 = vpop.permute.xlu0 %838
    %842 = vset.pattern.permute.xlu0 0
    %843 = vperm.xlu0 %842, %v537
    %v844 = vpop.permute.xlu0 %843
    %847 = vset.pattern.permute.xlu0 0
    %848 = vperm.xlu0 %847, %v538
    %v849 = vpop.permute.xlu0 %848
    %852 = vset.pattern.permute.xlu0 0
    %853 = vperm.xlu0 %852, %v539
    %v854 = vpop.permute.xlu0 %853
    %857 = vset.pattern.permute.xlu0 0
    %858 = vperm.xlu0 %857, %v540
    %v859 = vpop.permute.xlu0 %858
    %862 = vset.pattern.permute.xlu0 0
    %863 = vperm.xlu0 %862, %v541
    %v864 = vpop.permute.xlu0 %863
    %867 = vset.pattern.permute.xlu0 0
    %868 = vperm.xlu0 %867, %v542
    %v869 = vpop.permute.xlu0 %868
    %872 = vset.pattern.permute.xlu0 0
    %873 = vperm.xlu0 %872, %v543
    %v874 = vpop.permute.xlu0 %873
    %877 = vset.pattern.permute.xlu0 0
    %878 = vperm.xlu0 %877, %v544
    %v879 = vpop.permute.xlu0 %878
    %882 = vset.pattern.permute.xlu0 0
    %883 = vperm.xlu0 %882, %v545
    %v884 = vpop.permute.xlu0 %883
    %887 = vset.pattern.permute.xlu0 0
    %888 = vperm.xlu0 %887, %v546
    %v889 = vpop.permute.xlu0 %888
    %892 = vset.pattern.permute.xlu0 0
    %893 = vperm.xlu0 %892, %v547
    %v894 = vpop.permute.xlu0 %893
    %897 = vset.pattern.permute.xlu0 0
    %898 = vperm.xlu0 %897, %v548
    %v899 = vpop.permute.xlu0 %898
    %902 = vset.pattern.permute.xlu0 0
    %903 = vperm.xlu0 %902, %v549
    %v904 = vpop.permute.xlu0 %903
    %907 = vset.pattern.permute.xlu0 0
    %908 = vperm.xlu0 %907, %v550
    %v909 = vpop.permute.xlu0 %908
    %912 = vset.pattern.permute.xlu0 0
    %913 = vperm.xlu0 %912, %v551
    %v914 = vpop.permute.xlu0 %913
    %917 = vset.pattern.permute.xlu0 0
    %918 = vperm.xlu0 %917, %v552
    %v919 = vpop.permute.xlu0 %918
    %922 = vset.pattern.permute.xlu0 0
    %923 = vperm.xlu0 %922, %v553
    %v924 = vpop.permute.xlu0 %923
    %927 = vset.pattern.permute.xlu0 0
    %928 = vperm.xlu0 %927, %v554
    %v929 = vpop.permute.xlu0 %928
    %932 = vset.pattern.permute.xlu0 0
    %933 = vperm.xlu0 %932, %v555
    %v934 = vpop.permute.xlu0 %933
    %937 = vset.pattern.permute.xlu0 0
    %938 = vperm.xlu0 %937, %v556
    %v939 = vpop.permute.xlu0 %938
    %942 = vset.pattern.permute.xlu0 0
    %943 = vperm.xlu0 %942, %v557
    %v944 = vpop.permute.xlu0 %943
    %947 = vset.pattern.permute.xlu0 0
    %948 = vperm.xlu0 %947, %v558
    %v949 = vpop.permute.xlu0 %948
    %952 = vset.pattern.permute.xlu0 0
    %953 = vperm.xlu0 %952, %v559
    %v954 = vpop.permute.xlu0 %953
    %957 = vset.pattern.permute.xlu0 0
    %958 = vperm.xlu0 %957, %v560
    %v959 = vpop.permute.xlu0 %958
    %962 = vset.pattern.permute.xlu0 0
    %963 = vperm.xlu0 %962, %v561
    %v964 = vpop.permute.xlu0 %963
    %967 = vset.pattern.permute.xlu0 0
    %968 = vperm.xlu0 %967, %v562
    %v969 = vpop.permute.xlu0 %968
    %972 = vset.pattern.permute.xlu0 0
    %973 = vperm.xlu0 %972, %v563
    %v974 = vpop.permute.xlu0 %973
    %977 = vset.pattern.permute.xlu0 0
    %978 = vperm.xlu0 %977, %v564
    %v979 = vpop.permute.xlu0 %978
    %982 = vset.pattern.permute.xlu0 0
    %983 = vperm.xlu0 %982, %v565
    %v984 = vpop.permute.xlu0 %983
    %987 = vset.pattern.permute.xlu0 0
    %988 = vperm.xlu0 %987, %v566
    %v989 = vpop.permute.xlu0 %988
    %992 = vset.pattern.permute.xlu0 0
    %993 = vperm.xlu0 %992, %v567
    %v994 = vpop.permute.xlu0 %993
    %997 = vset.pattern.permute.xlu0 0
    %998 = vperm.xlu0 %997, %v568
    %v999 = vpop.permute.xlu0 %998
    %1002 = vset.pattern.permute.xlu0 0
    %1003 = vperm.xlu0 %1002, %v569
    %v1004 = vpop.permute.xlu0 %1003
    %1007 = vset.pattern.permute.xlu0 0
    %1008 = vperm.xlu0 %1007, %v570
    %v1009 = vpop.permute.xlu0 %1008
    %1012 = vset.pattern.permute.xlu0 0
    %1013 = vperm.xlu0 %1012, %v571
    %v1014 = vpop.permute.xlu0 %1013
    %1017 = vset.pattern.permute.xlu0 0
    %1018 = vperm.xlu0 %1017, %v572
    %v1019 = vpop.permute.xlu0 %1018
    %1022 = vset.pattern.permute.xlu0 0
    %1023 = vperm.xlu0 %1022, %v573
    %v1024 = vpop.permute.xlu0 %1023
    %1027 = vset.pattern.permute.xlu0 0
    %1028 = vperm.xlu0 %1027, %v574
    %v1029 = vpop.permute.xlu0 %1028
    %1032 = vset.pattern.permute.xlu0 0
    %1033 = vperm.xlu0 %1032, %v575
    %v1034 = vpop.permute.xlu0 %1033
    %1037 = vset.pattern.permute.xlu0 0
    %1038 = vperm.xlu0 %1037, %v576
    %v1039 = vpop.permute.xlu0 %1038
    %1042 = vset.pattern.permute.xlu0 0
    %1043 = vperm.xlu0 %1042, %v577
    %v1044 = vpop.permute.xlu0 %1043
    %1047 = vset.pattern.permute.xlu0 0
    %1048 = vperm.xlu0 %1047, %v578
    %v1049 = vpop.permute.xlu0 %1048
    %1052 = vset.pattern.permute.xlu0 0
    %1053 = vperm.xlu0 %1052, %v579
    %v1054 = vpop.permute.xlu0 %1053
    %1057 = vset.pattern.permute.xlu0 0
    %1058 = vperm.xlu0 %1057, %v580
    %v1059 = vpop.permute.xlu0 %1058
    %1062 = vset.pattern.permute.xlu0 0
    %1063 = vperm.xlu0 %1062, %v581
    %v1064 = vpop.permute.xlu0 %1063
    %1067 = vset.pattern.permute.xlu0 0
    %1068 = vperm.xlu0 %1067, %v582
    %v1069 = vpop.permute.xlu0 %1068
    %1072 = vset.pattern.permute.xlu0 0
    %1073 = vperm.xlu0 %1072, %v583
    %v1074 = vpop.permute.xlu0 %1073
    %1077 = vset.pattern.permute.xlu0 0
    %1078 = vperm.xlu0 %1077, %v584
    %v1079 = vpop.permute.xlu0 %1078
    %1082 = vset.pattern.permute.xlu0 0
    %1083 = vperm.xlu0 %1082, %v585
    %v1084 = vpop.permute.xlu0 %1083
    %1087 = vset.pattern.permute.xlu0 0
    %1088 = vperm.xlu0 %1087, %v586
    %v1089 = vpop.permute.xlu0 %1088
    %1092 = vset.pattern.permute.xlu0 0
    %1093 = vperm.xlu0 %1092, %v587
    %v1094 = vpop.permute.xlu0 %1093
    %1097 = vset.pattern.permute.xlu0 0
    %1098 = vperm.xlu0 %1097, %v588
    %v1099 = vpop.permute.xlu0 %1098
    %1102 = vset.pattern.permute.xlu0 0
    %1103 = vperm.xlu0 %1102, %v589
    %v1104 = vpop.permute.xlu0 %1103
    %1107 = vset.pattern.permute.xlu0 0
    %1108 = vperm.xlu0 %1107, %v590
    %v1109 = vpop.permute.xlu0 %1108
    %1112 = vset.pattern.permute.xlu0 0
    %1113 = vperm.xlu0 %1112, %v591
    %v1114 = vpop.permute.xlu0 %1113
    %1117 = vset.pattern.permute.xlu0 0
    %1118 = vperm.xlu0 %1117, %v592
    %v1119 = vpop.permute.xlu0 %1118
    %1122 = vset.pattern.permute.xlu0 0
    %1123 = vperm.xlu0 %1122, %v593
    %v1124 = vpop.permute.xlu0 %1123
    %1127 = vset.pattern.permute.xlu0 0
    %1128 = vperm.xlu0 %1127, %v594
    %v1129 = vpop.permute.xlu0 %1128
    %1132 = vset.pattern.permute.xlu0 0
    %1133 = vperm.xlu0 %1132, %v595
    %v1134 = vpop.permute.xlu0 %1133
    %1137 = vset.pattern.permute.xlu0 0
    %1138 = vperm.xlu0 %1137, %v596
    %v1139 = vpop.permute.xlu0 %1138
    %1142 = vset.pattern.permute.xlu0 0
    %1143 = vperm.xlu0 %1142, %v597
    %v1144 = vpop.permute.xlu0 %1143
    %1147 = vset.pattern.permute.xlu0 0
    %1148 = vperm.xlu0 %1147, %v598
    %v1149 = vpop.permute.xlu0 %1148
    %1152 = vset.pattern.permute.xlu0 0
    %1153 = vperm.xlu0 %1152, %v599
    %v1154 = vpop.permute.xlu0 %1153
    %1157 = vset.pattern.permute.xlu0 0
    %1158 = vperm.xlu0 %1157, %v600
    %v1159 = vpop.permute.xlu0 %1158
    %1162 = vset.pattern.permute.xlu0 0
    %1163 = vperm.xlu0 %1162, %v601
    %v1164 = vpop.permute.xlu0 %1163
    %1167 = vset.pattern.permute.xlu0 0
    %1168 = vperm.xlu0 %1167, %v602
    %v1169 = vpop.permute.xlu0 %1168
    %1172 = vset.pattern.permute.xlu0 0
    %1173 = vperm.xlu0 %1172, %v603
    %v1174 = vpop.permute.xlu0 %1173
    %1177 = vset.pattern.permute.xlu0 0
    %1178 = vperm.xlu0 %1177, %v604
    %v1179 = vpop.permute.xlu0 %1178
    %1182 = vset.pattern.permute.xlu0 0
    %1183 = vperm.xlu0 %1182, %v605
    %v1184 = vpop.permute.xlu0 %1183
    %1187 = vset.pattern.permute.xlu0 0
    %1188 = vperm.xlu0 %1187, %v606
    %v1189 = vpop.permute.xlu0 %1188
    %1192 = vset.pattern.permute.xlu0 0
    %1193 = vperm.xlu0 %1192, %v607
    %v1194 = vpop.permute.xlu0 %1193
    %1197 = vset.pattern.permute.xlu0 0
    %1198 = vperm.xlu0 %1197, %v608
    %v1199 = vpop.permute.xlu0 %1198
    %1202 = vset.pattern.permute.xlu0 0
    %1203 = vperm.xlu0 %1202, %v609
    %v1204 = vpop.permute.xlu0 %1203
    %1207 = vset.pattern.permute.xlu0 0
    %1208 = vperm.xlu0 %1207, %v610
    %v1209 = vpop.permute.xlu0 %1208
    %1212 = vset.pattern.permute.xlu0 0
    %1213 = vperm.xlu0 %1212, %v611
    %v1214 = vpop.permute.xlu0 %1213
    %1217 = vset.pattern.permute.xlu0 0
    %1218 = vperm.xlu0 %1217, %v612
    %v1219 = vpop.permute.xlu0 %1218
    %1222 = vset.pattern.permute.xlu0 0
    %1223 = vperm.xlu0 %1222, %v613
    %v1224 = vpop.permute.xlu0 %1223
    %1227 = vset.pattern.permute.xlu0 0
    %1228 = vperm.xlu0 %1227, %v614
    %v1229 = vpop.permute.xlu0 %1228
    %1232 = vset.pattern.permute.xlu0 0
    %1233 = vperm.xlu0 %1232, %v615
    %v1234 = vpop.permute.xlu0 %1233
    %1237 = vset.pattern.permute.xlu0 0
    %1238 = vperm.xlu0 %1237, %v616
    %v1239 = vpop.permute.xlu0 %1238
    %1242 = vset.pattern.permute.xlu0 0
    %1243 = vperm.xlu0 %1242, %v617
    %v1244 = vpop.permute.xlu0 %1243
    %1247 = vset.pattern.permute.xlu0 0
    %1248 = vperm.xlu0 %1247, %v618
    %v1249 = vpop.permute.xlu0 %1248
    %1252 = vset.pattern.permute.xlu0 0
    %1253 = vperm.xlu0 %1252, %v619
    %v1254 = vpop.permute.xlu0 %1253
    %1257 = vset.pattern.permute.xlu0 0
    %1258 = vperm.xlu0 %1257, %v620
    %v1259 = vpop.permute.xlu0 %1258
    %1262 = vset.pattern.permute.xlu0 0
    %1263 = vperm.xlu0 %1262, %v621
    %v1264 = vpop.permute.xlu0 %1263
    %1267 = vset.pattern.permute.xlu0 0
    %1268 = vperm.xlu0 %1267, %v622
    %v1269 = vpop.permute.xlu0 %1268
    %1272 = vset.pattern.permute.xlu0 0
    %1273 = vperm.xlu0 %1272, %v623
    %v1274 = vpop.permute.xlu0 %1273
    %1277 = vset.pattern.permute.xlu0 0
    %1278 = vperm.xlu0 %1277, %v624
    %v1279 = vpop.permute.xlu0 %1278
    %1282 = vset.pattern.permute.xlu0 0
    %1283 = vperm.xlu0 %1282, %v625
    %v1284 = vpop.permute.xlu0 %1283
    %1287 = vset.pattern.permute.xlu0 0
    %1288 = vperm.xlu0 %1287, %v626
    %v1289 = vpop.permute.xlu0 %1288
    %1292 = vset.pattern.permute.xlu0 0
    %1293 = vperm.xlu0 %1292, %v627
    %v1294 = vpop.permute.xlu0 %1293
    %1297 = vset.pattern.permute.xlu0 0
    %1298 = vperm.xlu0 %1297, %v628
    %v1299 = vpop.permute.xlu0 %1298
    %1302 = vset.pattern.permute.xlu0 0
    %1303 = vperm.xlu0 %1302, %v629
    %v1304 = vpop.permute.xlu0 %1303
    %1307 = vset.pattern.permute.xlu0 0
    %1308 = vperm.xlu0 %1307, %v630
    %v1309 = vpop.permute.xlu0 %1308
    %1312 = vset.pattern.permute.xlu0 0
    %1313 = vperm.xlu0 %1312, %v631
    %v1314 = vpop.permute.xlu0 %1313
    %1317 = vset.pattern.permute.xlu0 0
    %1318 = vperm.xlu0 %1317, %v632
    %v1319 = vpop.permute.xlu0 %1318
    %1322 = vset.pattern.permute.xlu0 0
    %1323 = vperm.xlu0 %1322, %v633
    %v1324 = vpop.permute.xlu0 %1323
    %1327 = vset.pattern.permute.xlu0 0
    %1328 = vperm.xlu0 %1327, %v634
    %v1329 = vpop.permute.xlu0 %1328
    %1332 = vset.pattern.permute.xlu0 0
    %1333 = vperm.xlu0 %1332, %v635
    %v1334 = vpop.permute.xlu0 %1333
    %1337 = vset.pattern.permute.xlu0 0
    %1338 = vperm.xlu0 %1337, %v636
    %v1339 = vpop.permute.xlu0 %1338
    %1342 = vset.pattern.permute.xlu0 0
    %1343 = vperm.xlu0 %1342, %v637
    %v1344 = vpop.permute.xlu0 %1343
    %1347 = vset.pattern.permute.xlu0 0
    %1348 = vperm.xlu0 %1347, %v638
    %v1349 = vpop.permute.xlu0 %1348
    %1352 = vset.pattern.permute.xlu0 0
    %1353 = vperm.xlu0 %1352, %v639
    %v1354 = vpop.permute.xlu0 %1353
    %1357 = vset.pattern.permute.xlu0 0
    %1358 = vperm.xlu0 %1357, %v640
    %v1359 = vpop.permute.xlu0 %1358
    %1362 = vset.pattern.permute.xlu0 0
    %1363 = vperm.xlu0 %1362, %v641
    %v1364 = vpop.permute.xlu0 %1363
    %1367 = vset.pattern.permute.xlu0 0
    %1368 = vperm.xlu0 %1367, %v642
    %v1369 = vpop.permute.xlu0 %1368
    %1372 = vset.pattern.permute.xlu0 0
    %1373 = vperm.xlu0 %1372, %v643
    %v1374 = vpop.permute.xlu0 %1373
    %1377 = vset.pattern.permute.xlu0 0
    %1378 = vperm.xlu0 %1377, %v644
    %v1379 = vpop.permute.xlu0 %1378
    %1382 = vset.pattern.permute.xlu0 0
    %1383 = vperm.xlu0 %1382, %v645
    %v1384 = vpop.permute.xlu0 %1383
    %1387 = vset.pattern.permute.xlu0 0
    %1388 = vperm.xlu0 %1387, %v646
    %v1389 = vpop.permute.xlu0 %1388
    %1392 = vset.pattern.permute.xlu0 0
    %1393 = vperm.xlu0 %1392, %v647
    %v1394 = vpop.permute.xlu0 %1393
    %1397 = vset.pattern.permute.xlu0 0
    %1398 = vperm.xlu0 %1397, %v648
    %v1399 = vpop.permute.xlu0 %1398
    %1402 = vset.pattern.permute.xlu0 0
    %1403 = vperm.xlu0 %1402, %v649
    %v1404 = vpop.permute.xlu0 %1403
    %1407 = vset.pattern.permute.xlu0 0
    %1408 = vperm.xlu0 %1407, %v650
    %v1409 = vpop.permute.xlu0 %1408
    %1412 = vset.pattern.permute.xlu0 0
    %1413 = vperm.xlu0 %1412, %v651
    %v1414 = vpop.permute.xlu0 %1413
    %1417 = vset.pattern.permute.xlu0 0
    %1418 = vperm.xlu0 %1417, %v652
    %v1419 = vpop.permute.xlu0 %1418
    %1422 = vset.pattern.permute.xlu0 0
    %1423 = vperm.xlu0 %1422, %v653
    %v1424 = vpop.permute.xlu0 %1423
    %1427 = vset.pattern.permute.xlu0 0
    %1428 = vperm.xlu0 %1427, %v654
    %v1429 = vpop.permute.xlu0 %1428
    %1432 = vset.pattern.permute.xlu0 0
    %1433 = vperm.xlu0 %1432, %v655
    %v1434 = vpop.permute.xlu0 %1433
    %1437 = vset.pattern.permute.xlu0 0
    %1438 = vperm.xlu0 %1437, %v656
    %v1439 = vpop.permute.xlu0 %1438
    %1442 = vset.pattern.permute.xlu0 0
    %1443 = vperm.xlu0 %1442, %v657
    %v1444 = vpop.permute.xlu0 %1443
    %1447 = vset.pattern.permute.xlu0 0
    %1448 = vperm.xlu0 %1447, %v658
    %v1449 = vpop.permute.xlu0 %1448
    %1452 = vset.pattern.permute.xlu0 0
    %1453 = vperm.xlu0 %1452, %v659
    %v1454 = vpop.permute.xlu0 %1453
    %1457 = vset.pattern.permute.xlu0 0
    %1458 = vperm.xlu0 %1457, %v660
    %v1459 = vpop.permute.xlu0 %1458
    %1462 = vset.pattern.permute.xlu0 0
    %1463 = vperm.xlu0 %1462, %v661
    %v1464 = vpop.permute.xlu0 %1463
    %1467 = vset.pattern.permute.xlu0 0
    %1468 = vperm.xlu0 %1467, %v662
    %v1469 = vpop.permute.xlu0 %1468
    %1472 = vset.pattern.permute.xlu0 0
    %1473 = vperm.xlu0 %1472, %v663
    %v1474 = vpop.permute.xlu0 %1473
    %1477 = vset.pattern.permute.xlu0 0
    %1478 = vperm.xlu0 %1477, %v664
    %v1479 = vpop.permute.xlu0 %1478
    %1482 = vset.pattern.permute.xlu0 0
    %1483 = vperm.xlu0 %1482, %v665
    %v1484 = vpop.permute.xlu0 %1483
    %1487 = vset.pattern.permute.xlu0 0
    %1488 = vperm.xlu0 %1487, %v666
    %v1489 = vpop.permute.xlu0 %1488
    %1492 = vset.pattern.permute.xlu0 0
    %1493 = vperm.xlu0 %1492, %v667
    %v1494 = vpop.permute.xlu0 %1493
    %1497 = vset.pattern.permute.xlu0 0
    %1498 = vperm.xlu0 %1497, %v668
    %v1499 = vpop.permute.xlu0 %1498
    %1502 = vset.pattern.permute.xlu0 0
    %1503 = vperm.xlu0 %1502, %v669
    %v1504 = vpop.permute.xlu0 %1503
    %1507 = vset.pattern.permute.xlu0 0
    %1508 = vperm.xlu0 %1507, %v670
    %v1509 = vpop.permute.xlu0 %1508
    %1512 = vset.pattern.permute.xlu0 0
    %1513 = vperm.xlu0 %1512, %v671
    %v1514 = vpop.permute.xlu0 %1513
    %1517 = vset.pattern.permute.xlu0 0
    %1518 = vperm.xlu0 %1517, %v672
    %v1519 = vpop.permute.xlu0 %1518
    %1522 = vset.pattern.permute.xlu0 0
    %1523 = vperm.xlu0 %1522, %v673
    %v1524 = vpop.permute.xlu0 %1523
    %1527 = vset.pattern.permute.xlu0 0
    %1528 = vperm.xlu0 %1527, %v674
    %v1529 = vpop.permute.xlu0 %1528
    %1532 = vset.pattern.permute.xlu0 0
    %1533 = vperm.xlu0 %1532, %v675
    %v1534 = vpop.permute.xlu0 %1533
    %1537 = vset.pattern.permute.xlu0 0
    %1538 = vperm.xlu0 %1537, %v676
    %v1539 = vpop.permute.xlu0 %1538
    %1542 = vset.pattern.permute.xlu0 0
    %1543 = vperm.xlu0 %1542, %v677
    %v1544 = vpop.permute.xlu0 %1543
    %1547 = vset.pattern.permute.xlu0 0
    %1548 = vperm.xlu0 %1547, %v678
    %v1549 = vpop.permute.xlu0 %1548
    %1552 = vset.pattern.permute.xlu0 0
    %1553 = vperm.xlu0 %1552, %v679
    %v1554 = vpop.permute.xlu0 %1553
    %1557 = vset.pattern.permute.xlu0 0
    %1558 = vperm.xlu0 %1557, %v680
    %v1559 = vpop.permute.xlu0 %1558
    %1562 = vset.pattern.permute.xlu0 0
    %1563 = vperm.xlu0 %1562, %v681
    %v1564 = vpop.permute.xlu0 %1563
    %1567 = vset.pattern.permute.xlu0 0
    %1568 = vperm.xlu0 %1567, %v682
    %v1569 = vpop.permute.xlu0 %1568
    %1572 = vset.pattern.permute.xlu0 0
    %1573 = vperm.xlu0 %1572, %v683
    %v1574 = vpop.permute.xlu0 %1573
    %1577 = vset.pattern.permute.xlu0 0
    %1578 = vperm.xlu0 %1577, %v684
    %v1579 = vpop.permute.xlu0 %1578
    %1582 = vset.pattern.permute.xlu0 0
    %1583 = vperm.xlu0 %1582, %v685
    %v1584 = vpop.permute.xlu0 %1583
    %1587 = vset.pattern.permute.xlu0 0
    %1588 = vperm.xlu0 %1587, %v686
    %v1589 = vpop.permute.xlu0 %1588
    %1592 = vset.pattern.permute.xlu0 0
    %1593 = vperm.xlu0 %1592, %v687
    %v1594 = vpop.permute.xlu0 %1593
    %1597 = vset.pattern.permute.xlu0 0
    %1598 = vperm.xlu0 %1597, %v688
    %v1599 = vpop.permute.xlu0 %1598
    %1602 = vset.pattern.permute.xlu0 0
    %1603 = vperm.xlu0 %1602, %v689
    %v1604 = vpop.permute.xlu0 %1603
    %1607 = vset.pattern.permute.xlu0 0
    %1608 = vperm.xlu0 %1607, %v690
    %v1609 = vpop.permute.xlu0 %1608
    %1612 = vset.pattern.permute.xlu0 0
    %1613 = vperm.xlu0 %1612, %v691
    %v1614 = vpop.permute.xlu0 %1613
    %1617 = vset.pattern.permute.xlu0 0
    %1618 = vperm.xlu0 %1617, %v692
    %v1619 = vpop.permute.xlu0 %1618
    %1622 = vset.pattern.permute.xlu0 0
    %1623 = vperm.xlu0 %1622, %v693
    %v1624 = vpop.permute.xlu0 %1623
    %1627 = vset.pattern.permute.xlu0 0
    %1628 = vperm.xlu0 %1627, %v694
    %v1629 = vpop.permute.xlu0 %1628
    %1632 = vset.pattern.permute.xlu0 0
    %1633 = vperm.xlu0 %1632, %v695
    %v1634 = vpop.permute.xlu0 %1633
    %1637 = vset.pattern.permute.xlu0 0
    %1638 = vperm.xlu0 %1637, %v696
    %v1639 = vpop.permute.xlu0 %1638
    %1642 = vset.pattern.permute.xlu0 0
    %1643 = vperm.xlu0 %1642, %v697
    %v1644 = vpop.permute.xlu0 %1643
    %1647 = vset.pattern.permute.xlu0 0
    %1648 = vperm.xlu0 %1647, %v698
    %v1649 = vpop.permute.xlu0 %1648
    %1652 = vset.pattern.permute.xlu0 0
    %1653 = vperm.xlu0 %1652, %v699
    %v1654 = vpop.permute.xlu0 %1653
    %1657 = vset.pattern.permute.xlu0 0
    %1658 = vperm.xlu0 %1657, %v700
    %v1659 = vpop.permute.xlu0 %1658
    %1661 = vmatprep.subr.mxu0 0.0
    %1662 = vmatpush1.msra.mxu0 %v93
    %1663 = vmatprep.subr.mxu0 0.0
    %1664 = vmatpush1.msra.mxu0 %v94
    %1665 = vmatprep.subr.mxu0 0.0
    %1666 = vmatpush1.msra.mxu0 %v95
    %1667 = vmatprep.subr.mxu0 0.0
    %1668 = vmatpush1.msra.mxu0 %v96
    %1669 = vmatprep.subr.mxu0 0.0
    %1670 = vmatpush1.msra.mxu0 %v97
    %1671 = vmatprep.subr.mxu0 0.0
    %1672 = vmatpush1.msra.mxu0 %v98
    %1673 = vmatprep.subr.mxu0 0.0
    %1674 = vmatpush1.msra.mxu0 %v99
    %1675 = vmatprep.subr.mxu0 0.0
    %1676 = vmatpush1.msra.mxu0 %v100
    %1677 = vmatprep.subr.mxu0 0.0
    %1678 = vmatpush1.msra.mxu0 %v101
    %1679 = vmatprep.subr.mxu0 0.0
    %1680 = vmatpush1.msra.mxu0 %v102
    %1681 = vmatprep.subr.mxu0 0.0
    %1682 = vmatpush1.msra.mxu0 %v103
    %1683 = vmatprep.subr.mxu0 0.0
    %1684 = vmatpush1.msra.mxu0 %v104
    %1685 = vmatprep.subr.mxu0 0.0
    %1686 = vmatpush1.msra.mxu0 %v105
    %1687 = vmatprep.subr.mxu0 0.0
    %1688 = vmatpush1.msra.mxu0 %v106
    %1689 = vmatprep.subr.mxu0 0.0
    %1690 = vmatpush1.msra.mxu0 %v107
    %1691 = vmatprep.subr.mxu0 0.0
    %1692 = vmatpush1.msra.mxu0 %v108
    %1693 = vmatprep.subr.mxu0 0.0
    %1694 = vmatpush1.msra.mxu0 %v109
    %1695 = vmatprep.subr.mxu0 0.0
    %1696 = vmatpush1.msra.mxu0 %v110
    %1697 = vmatprep.subr.mxu0 0.0
    %1698 = vmatpush1.msra.mxu0 %v111
    %1699 = vmatprep.subr.mxu0 0.0
    %1700 = vmatpush1.msra.mxu0 %v112
    %1701 = vmatprep.subr.mxu0 0.0
    %1702 = vmatpush1.msra.mxu0 %v113
    %1703 = vmatprep.subr.mxu0 0.0
    %1704 = vmatpush1.msra.mxu0 %v114
    %1705 = vmatprep.subr.mxu0 0.0
    %1706 = vmatpush1.msra.mxu0 %v115
    %1707 = vmatprep.subr.mxu0 0.0
    %1708 = vmatpush1.msra.mxu0 %v116
    %1709 = vmatprep.subr.mxu0 0.0
    %1710 = vmatpush1.msra.mxu0 %v117
    %1711 = vmatprep.subr.mxu0 0.0
    %1712 = vmatpush1.msra.mxu0 %v118
    %1713 = vmatprep.subr.mxu0 0.0
    %1714 = vmatpush1.msra.mxu0 %v119
    %1715 = vmatprep.subr.mxu0 0.0
    %1716 = vmatpush1.msra.mxu0 %v120
    %1717 = vmatprep.subr.mxu0 0.0
    %1718 = vmatpush1.msra.mxu0 %v121
    %1719 = vmatprep.subr.mxu0 0.0
    %1720 = vmatpush1.msra.mxu0 %v122
    %1721 = vmatprep.subr.mxu0 0.0
    %1722 = vmatpush1.msra.mxu0 %v123
    %1723 = vmatprep.subr.mxu0 0.0
    %1724 = vmatpush1.msra.mxu0 %v124
    %1725 = vmatprep.mubr.f32.mxu0 %v126
    %1726 = vmatmul.mubr.f32.gmra.mrb[0].mxu0 %v125
    %v1727 = vpop.f32.mrb[0].mxu0
    %v1728 = vadd.f32 %v704, %v1727
    %v1729 = vpop.f32.mrb[0].mxu0
    %1730 = vmatprep.mubr.f32.mxu0 %v128
    %1731 = vmatmul.mubr.f32.gmra.mrb[0].mxu0 %v127
    %v1732 = vpop.f32.mrb[0].mxu0
    %v1733 = vadd.f32 %v709, %v1732
    %v1734 = vpop.f32.mrb[0].mxu0
    %1735 = vmatprep.mubr.f32.mxu0 %v130
    %1736 = vmatmul.mubr.f32.gmra.mrb[0].mxu0 %v129
    %v1737 = vpop.f32.mrb[0].mxu0
    %v1738 = vadd.f32 %v714, %v1737
    %v1739 = vpop.f32.mrb[0].mxu0
    %1740 = vmatprep.mubr.f32.mxu0 %v132
    %1741 = vmatmul.mubr.f32.gmra.mrb[0].mxu0 %v131
    %v1742 = vpop.f32.mrb[0].mxu0
    %v1743 = vadd.f32 %v719, %v1742
    %v1744 = vpop.f32.mrb[0].mxu0
    %1745 = vmatprep.mubr.f32.mxu0 %v134
    %1746 = vmatmul.mubr.f32.gmra.mrb[0].mxu0 %v133
    %v1747 = vpop.f32.mrb[0].mxu0
    %v1748 = vadd.f32 %v724, %v1747
    %v1749 = vpop.f32.mrb[0].mxu0
    %1750 = vmatprep.mubr.f32.mxu0 %v136
    %1751 = vmatmul.mubr.f32.gmra.mrb[0].mxu0 %v135
    %v1752 = vpop.f32.mrb[0].mxu0
    %v1753 = vadd.f32 %v729, %v1752
    %v1754 = vpop.f32.mrb[0].mxu0
    %1755 = vmatprep.mubr.f32.mxu0 %v138
    %1756 = vmatmul.mubr.f32.gmra.mrb[0].mxu0 %v137
    %v1757 = vpop.f32.mrb[0].mxu0
    %v1758 = vadd.f32 %v734, %v1757
    %v1759 = vpop.f32.mrb[0].mxu0
    %1760 = vmatprep.mubr.f32.mxu0 %v140
    %1761 = vmatmul.mubr.f32.gmra.mrb[0].mxu0 %v139
    %v1762 = vpop.f32.mrb[0].mxu0
    %v1763 = vadd.f32 %v739, %v1762
    %v1764 = vpop.f32.mrb[0].mxu0
    %1765 = vmatprep.mubr.f32.mxu0 %v142
    %1766 = vmatmul.mubr.f32.gmra.mrb[0].mxu0 %v141
    %v1767 = vpop.f32.mrb[0].mxu0
    %v1768 = vadd.f32 %v744, %v1767
    %v1769 = vpop.f32.mrb[0].mxu0
    %1770 = vmatprep.mubr.f32.mxu0 %v144
    %1771 = vmatmul.mubr.f32.gmra.mrb[0].mxu0 %v143
    %v1772 = vpop.f32.mrb[0].mxu0
    %v1773 = vadd.f32 %v749, %v1772
    %v1774 = vpop.f32.mrb[0].mxu0
    %1775 = vmatprep.mubr.f32.mxu0 %v146
    %1776 = vmatmul.mubr.f32.gmra.mrb[0].mxu0 %v145
    %v1777 = vpop.f32.mrb[0].mxu0
    %v1778 = vadd.f32 %v754, %v1777
    %v1779 = vpop.f32.mrb[0].mxu0
    %1780 = vmatprep.mubr.f32.mxu0 %v148
    %1781 = vmatmul.mubr.f32.gmra.mrb[0].mxu0 %v147
    %v1782 = vpop.f32.mrb[0].mxu0
    %v1783 = vadd.f32 %v759, %v1782
    %v1784 = vpop.f32.mrb[0].mxu0
    %1785 = vmatprep.mubr.f32.mxu0 %v150
    %1786 = vmatmul.mubr.f32.gmra.mrb[0].mxu0 %v149
    %v1787 = vpop.f32.mrb[0].mxu0
    %v1788 = vadd.f32 %v764, %v1787
    %v1789 = vpop.f32.mrb[0].mxu0
    %1790 = vmatprep.mubr.f32.mxu0 %v152
    %1791 = vmatmul.mubr.f32.gmra.mrb[0].mxu0 %v151
    %v1792 = vpop.f32.mrb[0].mxu0
    %v1793 = vadd.f32 %v769, %v1792
    %v1794 = vpop.f32.mrb[0].mxu0
    %1795 = vmatprep.mubr.f32.mxu0 %v154
    %1796 = vmatmul.mubr.f32.gmra.mrb[0].mxu0 %v153
    %v1797 = vpop.f32.mrb[0].mxu0
    %v1798 = vadd.f32 %v774, %v1797
    %v1799 = vpop.f32.mrb[0].mxu0
    %1800 = vmatprep.mubr.f32.mxu0 %v156
    %1801 = vmatmul.mubr.f32.gmra.mrb[0].mxu0 %v155
    %v1802 = vpop.f32.mrb[0].mxu0
    %v1803 = vadd.f32 %v779, %v1802
    %v1804 = vpop.f32.mrb[0].mxu0
    %1805 = vmatprep.mubr.f32.mxu0 %v158
    %1806 = vmatmul.mubr.f32.gmra.mrb[0].mxu0 %v157
    %v1807 = vpop.f32.mrb[0].mxu0
    %v1808 = vadd.f32 %v784, %v1807
    %v1809 = vpop.f32.mrb[0].mxu0
    %1810 = vmatprep.mubr.f32.mxu0 %v160
    %1811 = vmatmul.mubr.f32.gmra.mrb[0].mxu0 %v159
    %v1812 = vpop.f32.mrb[0].mxu0
    %v1813 = vadd.f32 %v789, %v1812
    %v1814 = vpop.f32.mrb[0].mxu0
    %1815 = vmatprep.mubr.f32.mxu0 %v162
    %1816 = vmatmul.mubr.f32.gmra.mrb[0].mxu0 %v161
    %v1817 = vpop.f32.mrb[0].mxu0
    %v1818 = vadd.f32 %v794, %v1817
    %v1819 = vpop.f32.mrb[0].mxu0
    %1820 = vmatprep.mubr.f32.mxu0 %v164
    %1821 = vmatmul.mubr.f32.gmra.mrb[0].mxu0 %v163
    %v1822 = vpop.f32.mrb[0].mxu0
    %v1823 = vadd.f32 %v799, %v1822
    %v1824 = vpop.f32.mrb[0].mxu0
    %1825 = vmatprep.mubr.f32.mxu0 %v166
    %1826 = vmatmul.mubr.f32.gmra.mrb[0].mxu0 %v165
    %v1827 = vpop.f32.mrb[0].mxu0
    %v1828 = vadd.f32 %v804, %v1827
    %v1829 = vpop.f32.mrb[0].mxu0
    %1830 = vmatprep.mubr.f32.mxu0 %v168
    %1831 = vmatmul.mubr.f32.gmra.mrb[0].mxu0 %v167
    %v1832 = vpop.f32.mrb[0].mxu0
    %v1833 = vadd.f32 %v809, %v1832
    %v1834 = vpop.f32.mrb[0].mxu0
    %1835 = vmatprep.mubr.f32.mxu0 %v170
    %1836 = vmatmul.mubr.f32.gmra.mrb[0].mxu0 %v169
    %v1837 = vpop.f32.mrb[0].mxu0
    %v1838 = vadd.f32 %v814, %v1837
    %v1839 = vpop.f32.mrb[0].mxu0
    %1840 = vmatprep.mubr.f32.mxu0 %v172
    %1841 = vmatmul.mubr.f32.gmra.mrb[0].mxu0 %v171
    %v1842 = vpop.f32.mrb[0].mxu0
    %v1843 = vadd.f32 %v819, %v1842
    %v1844 = vpop.f32.mrb[0].mxu0
    %1845 = vmatprep.mubr.f32.mxu0 %v174
    %1846 = vmatmul.mubr.f32.gmra.mrb[0].mxu0 %v173
    %v1847 = vpop.f32.mrb[0].mxu0
    %v1848 = vadd.f32 %v824, %v1847
    %v1849 = vpop.f32.mrb[0].mxu0
    %1850 = vmatprep.mubr.f32.mxu0 %v176
    %1851 = vmatmul.mubr.f32.gmra.mrb[0].mxu0 %v175
    %v1852 = vpop.f32.mrb[0].mxu0
    %v1853 = vadd.f32 %v829, %v1852
    %v1854 = vpop.f32.mrb[0].mxu0
    %1855 = vmatprep.mubr.f32.mxu0 %v178
    %1856 = vmatmul.mubr.f32.gmra.mrb[0].mxu0 %v177
    %v1857 = vpop.f32.mrb[0].mxu0
    %v1858 = vadd.f32 %v834, %v1857
    %v1859 = vpop.f32.mrb[0].mxu0
    %1860 = vmatprep.mubr.f32.mxu0 %v180
    %1861 = vmatmul.mubr.f32.gmra.mrb[0].mxu0 %v179
    %v1862 = vpop.f32.mrb[0].mxu0
    %v1863 = vadd.f32 %v839, %v1862
    %v1864 = vpop.f32.mrb[0].mxu0
    %1865 = vmatprep.mubr.f32.mxu0 %v182
    %1866 = vmatmul.mubr.f32.gmra.mrb[0].mxu0 %v181
    %v1867 = vpop.f32.mrb[0].mxu0
    %v1868 = vadd.f32 %v844, %v1867
    %v1869 = vpop.f32.mrb[0].mxu0
    %1870 = vmatprep.mubr.f32.mxu0 %v184
    %1871 = vmatmul.mubr.f32.gmra.mrb[0].mxu0 %v183
    %v1872 = vpop.f32.mrb[0].mxu0
    %v1873 = vadd.f32 %v849, %v1872
    %v1874 = vpop.f32.mrb[0].mxu0
    %1875 = vmatprep.mubr.f32.mxu0 %v186
    %1876 = vmatmul.mubr.f32.gmra.mrb[0].mxu0 %v185
    %v1877 = vpop.f32.mrb[0].mxu0
    %v1878 = vadd.f32 %v854, %v1877
    %v1879 = vpop.f32.mrb[0].mxu0
    %1880 = vmatprep.mubr.f32.mxu0 %v188
    %1881 = vmatmul.mubr.f32.gmra.mrb[0].mxu0 %v187
    %v1882 = vpop.f32.mrb[0].mxu0
    %v1883 = vadd.f32 %v859, %v1882
    %v1884 = vpop.f32.mrb[0].mxu0
    %1885 = vmatprep.mubr.f32.mxu0 %v190
    %1886 = vmatmul.mubr.f32.gmra.mrb[0].mxu0 %v189
    %v1887 = vpop.f32.mrb[0].mxu0
    %v1888 = vadd.f32 %v864, %v1887
    %v1889 = vpop.f32.mrb[0].mxu0
    %1890 = vmatprep.mubr.f32.mxu0 %v192
    %1891 = vmatmul.mubr.f32.gmra.mrb[0].mxu0 %v191
    %v1892 = vpop.f32.mrb[0].mxu0
    %v1893 = vadd.f32 %v869, %v1892
    %v1894 = vpop.f32.mrb[0].mxu0
    %1895 = vmatprep.mubr.f32.mxu0 %v194
    %1896 = vmatmul.mubr.f32.gmra.mrb[0].mxu0 %v193
    %v1897 = vpop.f32.mrb[0].mxu0
    %v1898 = vadd.f32 %v874, %v1897
    %v1899 = vpop.f32.mrb[0].mxu0
    %1900 = vmatprep.mubr.f32.mxu0 %v196
    %1901 = vmatmul.mubr.f32.gmra.mrb[0].mxu0 %v195
    %v1902 = vpop.f32.mrb[0].mxu0
    %v1903 = vadd.f32 %v879, %v1902
    %v1904 = vpop.f32.mrb[0].mxu0
    %1905 = vmatprep.mubr.f32.mxu0 %v198
    %1906 = vmatmul.mubr.f32.gmra.mrb[0].mxu0 %v197
    %v1907 = vpop.f32.mrb[0].mxu0
    %v1908 = vadd.f32 %v884, %v1907
    %v1909 = vpop.f32.mrb[0].mxu0
    %1910 = vmatprep.mubr.f32.mxu0 %v200
    %1911 = vmatmul.mubr.f32.gmra.mrb[0].mxu0 %v199
    %v1912 = vpop.f32.mrb[0].mxu0
    %v1913 = vadd.f32 %v889, %v1912
    %v1914 = vpop.f32.mrb[0].mxu0
    %1915 = vmatprep.mubr.f32.mxu0 %v202
    %1916 = vmatmul.mubr.f32.gmra.mrb[0].mxu0 %v201
    %v1917 = vpop.f32.mrb[0].mxu0
    %v1918 = vadd.f32 %v894, %v1917
    %v1919 = vpop.f32.mrb[0].mxu0
    %1920 = vmatprep.mubr.f32.mxu0 %v204
    %1921 = vmatmul.mubr.f32.gmra.mrb[0].mxu0 %v203
    %v1922 = vpop.f32.mrb[0].mxu0
    %v1923 = vadd.f32 %v899, %v1922
    %v1924 = vpop.f32.mrb[0].mxu0
    %1925 = vmatprep.mubr.f32.mxu0 %v206
    %1926 = vmatmul.mubr.f32.gmra.mrb[0].mxu0 %v205
    %v1927 = vpop.f32.mrb[0].mxu0
    %v1928 = vadd.f32 %v904, %v1927
    %v1929 = vpop.f32.mrb[0].mxu0
    %1930 = vmatprep.mubr.f32.mxu0 %v208
    %1931 = vmatmul.mubr.f32.gmra.mrb[0].mxu0 %v207
    %v1932 = vpop.f32.mrb[0].mxu0
    %v1933 = vadd.f32 %v909, %v1932
    %v1934 = vpop.f32.mrb[0].mxu0
    %1935 = vmatprep.mubr.f32.mxu0 %v210
    %1936 = vmatmul.mubr.f32.gmra.mrb[0].mxu0 %v209
    %v1937 = vpop.f32.mrb[0].mxu0
    %v1938 = vadd.f32 %v914, %v1937
    %v1939 = vpop.f32.mrb[0].mxu0
    %1940 = vmatprep.mubr.f32.mxu0 %v212
    %1941 = vmatmul.mubr.f32.gmra.mrb[0].mxu0 %v211
    %v1942 = vpop.f32.mrb[0].mxu0
    %v1943 = vadd.f32 %v919, %v1942
    %v1944 = vpop.f32.mrb[0].mxu0
    %1945 = vmatprep.mubr.f32.mxu0 %v214
    %1946 = vmatmul.mubr.f32.gmra.mrb[0].mxu0 %v213
    %v1947 = vpop.f32.mrb[0].mxu0
    %v1948 = vadd.f32 %v924, %v1947
    %v1949 = vpop.f32.mrb[0].mxu0
    %1950 = vmatprep.mubr.f32.mxu0 %v216
    %1951 = vmatmul.mubr.f32.gmra.mrb[0].mxu0 %v215
    %v1952 = vpop.f32.mrb[0].mxu0
    %v1953 = vadd.f32 %v929, %v1952
    %v1954 = vpop.f32.mrb[0].mxu0
    %1955 = vmatprep.mubr.f32.mxu0 %v218
    %1956 = vmatmul.mubr.f32.gmra.mrb[0].mxu0 %v217
    %v1957 = vpop.f32.mrb[0].mxu0
    %v1958 = vadd.f32 %v934, %v1957
    %v1959 = vpop.f32.mrb[0].mxu0
    %1960 = vmatprep.mubr.f32.mxu0 %v220
    %1961 = vmatmul.mubr.f32.gmra.mrb[0].mxu0 %v219
    %v1962 = vpop.f32.mrb[0].mxu0
    %v1963 = vadd.f32 %v939, %v1962
    %v1964 = vpop.f32.mrb[0].mxu0
    %1965 = vmatprep.mubr.f32.mxu0 %v222
    %1966 = vmatmul.mubr.f32.gmra.mrb[0].mxu0 %v221
    %v1967 = vpop.f32.mrb[0].mxu0
    %v1968 = vadd.f32 %v944, %v1967
    %v1969 = vpop.f32.mrb[0].mxu0
    %1970 = vmatprep.mubr.f32.mxu0 %v224
    %1971 = vmatmul.mubr.f32.gmra.mrb[0].mxu0 %v223
    %v1972 = vpop.f32.mrb[0].mxu0
    %v1973 = vadd.f32 %v949, %v1972
    %v1974 = vpop.f32.mrb[0].mxu0
    %1975 = vmatprep.mubr.f32.mxu0 %v226
    %1976 = vmatmul.mubr.f32.gmra.mrb[0].mxu0 %v225
    %v1977 = vpop.f32.mrb[0].mxu0
    %v1978 = vadd.f32 %v954, %v1977
    %v1979 = vpop.f32.mrb[0].mxu0
    %1980 = vmatprep.mubr.f32.mxu0 %v228
    %1981 = vmatmul.mubr.f32.gmra.mrb[0].mxu0 %v227
    %v1982 = vpop.f32.mrb[0].mxu0
    %v1983 = vadd.f32 %v959, %v1982
    %v1984 = vpop.f32.mrb[0].mxu0
    %1985 = vmatprep.mubr.f32.mxu0 %v230
    %1986 = vmatmul.mubr.f32.gmra.mrb[0].mxu0 %v229
    %v1987 = vpop.f32.mrb[0].mxu0
    %v1988 = vadd.f32 %v964, %v1987
    %v1989 = vpop.f32.mrb[0].mxu0
    %1990 = vmatprep.mubr.f32.mxu0 %v232
    %1991 = vmatmul.mubr.f32.gmra.mrb[0].mxu0 %v231
    %v1992 = vpop.f32.mrb[0].mxu0
    %v1993 = vadd.f32 %v969, %v1992
    %v1994 = vpop.f32.mrb[0].mxu0
    %1995 = vmatprep.mubr.f32.mxu0 %v234
    %1996 = vmatmul.mubr.f32.gmra.mrb[0].mxu0 %v233
    %v1997 = vpop.f32.mrb[0].mxu0
    %v1998 = vadd.f32 %v974, %v1997
    %v1999 = vpop.f32.mrb[0].mxu0
    %2000 = vmatprep.mubr.f32.mxu0 %v236
    %2001 = vmatmul.mubr.f32.gmra.mrb[0].mxu0 %v235
    %v2002 = vpop.f32.mrb[0].mxu0
    %v2003 = vadd.f32 %v979, %v2002
    %v2004 = vpop.f32.mrb[0].mxu0
    %2005 = vmatprep.mubr.f32.mxu0 %v238
    %2006 = vmatmul.mubr.f32.gmra.mrb[0].mxu0 %v237
    %v2007 = vpop.f32.mrb[0].mxu0
    %v2008 = vadd.f32 %v984, %v2007
    %v2009 = vpop.f32.mrb[0].mxu0
    %2010 = vmatprep.mubr.f32.mxu0 %v240
    %2011 = vmatmul.mubr.f32.gmra.mrb[0].mxu0 %v239
    %v2012 = vpop.f32.mrb[0].mxu0
    %v2013 = vadd.f32 %v989, %v2012
    %v2014 = vpop.f32.mrb[0].mxu0
    %2015 = vmatprep.mubr.f32.mxu0 %v242
    %2016 = vmatmul.mubr.f32.gmra.mrb[0].mxu0 %v241
    %v2017 = vpop.f32.mrb[0].mxu0
    %v2018 = vadd.f32 %v994, %v2017
    %v2019 = vpop.f32.mrb[0].mxu0
    %2020 = vmatprep.mubr.f32.mxu0 %v244
    %2021 = vmatmul.mubr.f32.gmra.mrb[0].mxu0 %v243
    %v2022 = vpop.f32.mrb[0].mxu0
    %v2023 = vadd.f32 %v999, %v2022
    %v2024 = vpop.f32.mrb[0].mxu0
    %2025 = vmatprep.mubr.f32.mxu0 %v246
    %2026 = vmatmul.mubr.f32.gmra.mrb[0].mxu0 %v245
    %v2027 = vpop.f32.mrb[0].mxu0
    %v2028 = vadd.f32 %v1004, %v2027
    %v2029 = vpop.f32.mrb[0].mxu0
    %2030 = vmatprep.mubr.f32.mxu0 %v248
    %2031 = vmatmul.mubr.f32.gmra.mrb[0].mxu0 %v247
    %v2032 = vpop.f32.mrb[0].mxu0
    %v2033 = vadd.f32 %v1009, %v2032
    %v2034 = vpop.f32.mrb[0].mxu0
    %2035 = vmatprep.mubr.f32.mxu0 %v250
    %2036 = vmatmul.mubr.f32.gmra.mrb[0].mxu0 %v249
    %v2037 = vpop.f32.mrb[0].mxu0
    %v2038 = vadd.f32 %v1014, %v2037
    %v2039 = vpop.f32.mrb[0].mxu0
    %2040 = vmatprep.mubr.f32.mxu0 %v252
    %2041 = vmatmul.mubr.f32.gmra.mrb[0].mxu0 %v251
    %v2042 = vpop.f32.mrb[0].mxu0
    %v2043 = vadd.f32 %v1019, %v2042
    %v2044 = vpop.f32.mrb[0].mxu0
    %2045 = vmatprep.mubr.f32.mxu0 %v254
    %2046 = vmatmul.mubr.f32.gmra.mrb[0].mxu0 %v253
    %v2047 = vpop.f32.mrb[0].mxu0
    %v2048 = vadd.f32 %v1024, %v2047
    %v2049 = vpop.f32.mrb[0].mxu0
    %2050 = vmatprep.mubr.f32.mxu0 %v256
    %2051 = vmatmul.mubr.f32.gmra.mrb[0].mxu0 %v255
    %v2052 = vpop.f32.mrb[0].mxu0
    %v2053 = vadd.f32 %v1029, %v2052
    %v2054 = vpop.f32.mrb[0].mxu0
    %2055 = vmatprep.mubr.f32.mxu0 %v258
    %2056 = vmatmul.mubr.f32.gmra.mrb[0].mxu0 %v257
    %v2057 = vpop.f32.mrb[0].mxu0
    %v2058 = vadd.f32 %v1034, %v2057
    %v2059 = vpop.f32.mrb[0].mxu0
    %2060 = vmatprep.mubr.f32.mxu0 %v260
    %2061 = vmatmul.mubr.f32.gmra.mrb[0].mxu0 %v259
    %v2062 = vpop.f32.mrb[0].mxu0
    %v2063 = vadd.f32 %v1039, %v2062
    %v2064 = vpop.f32.mrb[0].mxu0
    %2065 = vmatprep.mubr.f32.mxu0 %v262
    %2066 = vmatmul.mubr.f32.gmra.mrb[0].mxu0 %v261
    %v2067 = vpop.f32.mrb[0].mxu0
    %v2068 = vadd.f32 %v1044, %v2067
    %v2069 = vpop.f32.mrb[0].mxu0
    %2070 = vmatprep.mubr.f32.mxu0 %v264
    %2071 = vmatmul.mubr.f32.gmra.mrb[0].mxu0 %v263
    %v2072 = vpop.f32.mrb[0].mxu0
    %v2073 = vadd.f32 %v1049, %v2072
    %v2074 = vpop.f32.mrb[0].mxu0
    %2075 = vmatprep.mubr.f32.mxu0 %v266
    %2076 = vmatmul.mubr.f32.gmra.mrb[0].mxu0 %v265
    %v2077 = vpop.f32.mrb[0].mxu0
    %v2078 = vadd.f32 %v1054, %v2077
    %v2079 = vpop.f32.mrb[0].mxu0
    %2080 = vmatprep.mubr.f32.mxu0 %v268
    %2081 = vmatmul.mubr.f32.gmra.mrb[0].mxu0 %v267
    %v2082 = vpop.f32.mrb[0].mxu0
    %v2083 = vadd.f32 %v1059, %v2082
    %v2084 = vpop.f32.mrb[0].mxu0
    %2085 = vmatprep.mubr.f32.mxu0 %v270
    %2086 = vmatmul.mubr.f32.gmra.mrb[0].mxu0 %v269
    %v2087 = vpop.f32.mrb[0].mxu0
    %v2088 = vadd.f32 %v1064, %v2087
    %v2089 = vpop.f32.mrb[0].mxu0
    %2090 = vmatprep.mubr.f32.mxu0 %v272
    %2091 = vmatmul.mubr.f32.gmra.mrb[0].mxu0 %v271
    %v2092 = vpop.f32.mrb[0].mxu0
    %v2093 = vadd.f32 %v1069, %v2092
    %v2094 = vpop.f32.mrb[0].mxu0
    %2095 = vmatprep.mubr.f32.mxu0 %v274
    %2096 = vmatmul.mubr.f32.gmra.mrb[0].mxu0 %v273
    %v2097 = vpop.f32.mrb[0].mxu0
    %v2098 = vadd.f32 %v1074, %v2097
    %v2099 = vpop.f32.mrb[0].mxu0
    %2100 = vmatprep.mubr.f32.mxu0 %v276
    %2101 = vmatmul.mubr.f32.gmra.mrb[0].mxu0 %v275
    %v2102 = vpop.f32.mrb[0].mxu0
    %v2103 = vadd.f32 %v1079, %v2102
    %v2104 = vpop.f32.mrb[0].mxu0
    %2105 = vmatprep.mubr.f32.mxu0 %v278
    %2106 = vmatmul.mubr.f32.gmra.mrb[0].mxu0 %v277
    %v2107 = vpop.f32.mrb[0].mxu0
    %v2108 = vadd.f32 %v1084, %v2107
    %v2109 = vpop.f32.mrb[0].mxu0
    %2110 = vmatprep.mubr.f32.mxu0 %v280
    %2111 = vmatmul.mubr.f32.gmra.mrb[0].mxu0 %v279
    %v2112 = vpop.f32.mrb[0].mxu0
    %v2113 = vadd.f32 %v1089, %v2112
    %v2114 = vpop.f32.mrb[0].mxu0
    %2115 = vmatprep.mubr.f32.mxu0 %v282
    %2116 = vmatmul.mubr.f32.gmra.mrb[0].mxu0 %v281
    %v2117 = vpop.f32.mrb[0].mxu0
    %v2118 = vadd.f32 %v1094, %v2117
    %v2119 = vpop.f32.mrb[0].mxu0
    %2120 = vmatprep.mubr.f32.mxu0 %v284
    %2121 = vmatmul.mubr.f32.gmra.mrb[0].mxu0 %v283
    %v2122 = vpop.f32.mrb[0].mxu0
    %v2123 = vadd.f32 %v1099, %v2122
    %v2124 = vpop.f32.mrb[0].mxu0
    %2125 = vmatprep.mubr.f32.mxu0 %v286
    %2126 = vmatmul.mubr.f32.gmra.mrb[0].mxu0 %v285
    %v2127 = vpop.f32.mrb[0].mxu0
    %v2128 = vadd.f32 %v1104, %v2127
    %v2129 = vpop.f32.mrb[0].mxu0
    %2130 = vmatprep.mubr.f32.mxu0 %v288
    %2131 = vmatmul.mubr.f32.gmra.mrb[0].mxu0 %v287
    %v2132 = vpop.f32.mrb[0].mxu0
    %v2133 = vadd.f32 %v1109, %v2132
    %v2134 = vpop.f32.mrb[0].mxu0
    %2135 = vmatprep.mubr.f32.mxu0 %v290
    %2136 = vmatmul.mubr.f32.gmra.mrb[0].mxu0 %v289
    %v2137 = vpop.f32.mrb[0].mxu0
    %v2138 = vadd.f32 %v1114, %v2137
    %v2139 = vpop.f32.mrb[0].mxu0
    %2140 = vmatprep.mubr.f32.mxu0 %v292
    %2141 = vmatmul.mubr.f32.gmra.mrb[0].mxu0 %v291
    %v2142 = vpop.f32.mrb[0].mxu0
    %v2143 = vadd.f32 %v1119, %v2142
    %v2144 = vpop.f32.mrb[0].mxu0
    %2145 = vmatprep.mubr.f32.mxu0 %v294
    %2146 = vmatmul.mubr.f32.gmra.mrb[0].mxu0 %v293
    %v2147 = vpop.f32.mrb[0].mxu0
    %v2148 = vadd.f32 %v1124, %v2147
    %v2149 = vpop.f32.mrb[0].mxu0
    %2150 = vmatprep.mubr.f32.mxu0 %v296
    %2151 = vmatmul.mubr.f32.gmra.mrb[0].mxu0 %v295
    %v2152 = vpop.f32.mrb[0].mxu0
    %v2153 = vadd.f32 %v1129, %v2152
    %v2154 = vpop.f32.mrb[0].mxu0
    %2155 = vmatprep.mubr.f32.mxu0 %v298
    %2156 = vmatmul.mubr.f32.gmra.mrb[0].mxu0 %v297
    %v2157 = vpop.f32.mrb[0].mxu0
    %v2158 = vadd.f32 %v1134, %v2157
    %v2159 = vpop.f32.mrb[0].mxu0
    %2160 = vmatprep.mubr.f32.mxu0 %v300
    %2161 = vmatmul.mubr.f32.gmra.mrb[0].mxu0 %v299
    %v2162 = vpop.f32.mrb[0].mxu0
    %v2163 = vadd.f32 %v1139, %v2162
    %v2164 = vpop.f32.mrb[0].mxu0
    %2165 = vmatprep.mubr.f32.mxu0 %v302
    %2166 = vmatmul.mubr.f32.gmra.mrb[0].mxu0 %v301
    %v2167 = vpop.f32.mrb[0].mxu0
    %v2168 = vadd.f32 %v1144, %v2167
    %v2169 = vpop.f32.mrb[0].mxu0
    %2170 = vmatprep.mubr.f32.mxu0 %v304
    %2171 = vmatmul.mubr.f32.gmra.mrb[0].mxu0 %v303
    %v2172 = vpop.f32.mrb[0].mxu0
    %v2173 = vadd.f32 %v1149, %v2172
    %v2174 = vpop.f32.mrb[0].mxu0
    %2175 = vmatprep.mubr.f32.mxu0 %v306
    %2176 = vmatmul.mubr.f32.gmra.mrb[0].mxu0 %v305
    %v2177 = vpop.f32.mrb[0].mxu0
    %v2178 = vadd.f32 %v1154, %v2177
    %v2179 = vpop.f32.mrb[0].mxu0
    %2180 = vmatprep.mubr.f32.mxu0 %v308
    %2181 = vmatmul.mubr.f32.gmra.mrb[0].mxu0 %v307
    %v2182 = vpop.f32.mrb[0].mxu0
    %v2183 = vadd.f32 %v1159, %v2182
    %v2184 = vpop.f32.mrb[0].mxu0
    %2185 = vmatprep.mubr.f32.mxu0 %v310
    %2186 = vmatmul.mubr.f32.gmra.mrb[0].mxu0 %v309
    %v2187 = vpop.f32.mrb[0].mxu0
    %v2188 = vadd.f32 %v1164, %v2187
    %v2189 = vpop.f32.mrb[0].mxu0
    %2190 = vmatprep.mubr.f32.mxu0 %v312
    %2191 = vmatmul.mubr.f32.gmra.mrb[0].mxu0 %v311
    %v2192 = vpop.f32.mrb[0].mxu0
    %v2193 = vadd.f32 %v1169, %v2192
    %v2194 = vpop.f32.mrb[0].mxu0
    %2195 = vmatprep.mubr.f32.mxu0 %v314
    %2196 = vmatmul.mubr.f32.gmra.mrb[0].mxu0 %v313
    %v2197 = vpop.f32.mrb[0].mxu0
    %v2198 = vadd.f32 %v1174, %v2197
    %v2199 = vpop.f32.mrb[0].mxu0
    %2200 = vmatprep.mubr.f32.mxu0 %v316
    %2201 = vmatmul.mubr.f32.gmra.mrb[0].mxu0 %v315
    %v2202 = vpop.f32.mrb[0].mxu0
    %v2203 = vadd.f32 %v1179, %v2202
    %v2204 = vpop.f32.mrb[0].mxu0
    %2205 = vmatprep.mubr.f32.mxu0 %v318
    %2206 = vmatmul.mubr.f32.gmra.mrb[0].mxu0 %v317
    %v2207 = vpop.f32.mrb[0].mxu0
    %v2208 = vadd.f32 %v1184, %v2207
    %v2209 = vpop.f32.mrb[0].mxu0
    %2210 = vmatprep.mubr.f32.mxu0 %v320
    %2211 = vmatmul.mubr.f32.gmra.mrb[0].mxu0 %v319
    %v2212 = vpop.f32.mrb[0].mxu0
    %v2213 = vadd.f32 %v1189, %v2212
    %v2214 = vpop.f32.mrb[0].mxu0
    %2215 = vmatprep.mubr.f32.mxu0 %v322
    %2216 = vmatmul.mubr.f32.gmra.mrb[0].mxu0 %v321
    %v2217 = vpop.f32.mrb[0].mxu0
    %v2218 = vadd.f32 %v1194, %v2217
    %v2219 = vpop.f32.mrb[0].mxu0
    %2220 = vmatprep.mubr.f32.mxu0 %v324
    %2221 = vmatmul.mubr.f32.gmra.mrb[0].mxu0 %v323
    %v2222 = vpop.f32.mrb[0].mxu0
    %v2223 = vadd.f32 %v1199, %v2222
    %v2224 = vpop.f32.mrb[0].mxu0
    %2225 = vmatprep.mubr.f32.mxu0 %v326
    %2226 = vmatmul.mubr.f32.gmra.mrb[0].mxu0 %v325
    %v2227 = vpop.f32.mrb[0].mxu0
    %v2228 = vadd.f32 %v1204, %v2227
    %v2229 = vpop.f32.mrb[0].mxu0
    %2230 = vmatprep.mubr.f32.mxu0 %v328
    %2231 = vmatmul.mubr.f32.gmra.mrb[0].mxu0 %v327
    %v2232 = vpop.f32.mrb[0].mxu0
    %v2233 = vadd.f32 %v1209, %v2232
    %v2234 = vpop.f32.mrb[0].mxu0
    %2235 = vmatprep.mubr.f32.mxu0 %v330
    %2236 = vmatmul.mubr.f32.gmra.mrb[0].mxu0 %v329
    %v2237 = vpop.f32.mrb[0].mxu0
    %v2238 = vadd.f32 %v1214, %v2237
    %v2239 = vpop.f32.mrb[0].mxu0
    %2240 = vmatprep.mubr.f32.mxu0 %v332
    %2241 = vmatmul.mubr.f32.gmra.mrb[0].mxu0 %v331
    %v2242 = vpop.f32.mrb[0].mxu0
    %v2243 = vadd.f32 %v1219, %v2242
    %v2244 = vpop.f32.mrb[0].mxu0
    %2245 = vmatprep.mubr.f32.mxu0 %v334
    %2246 = vmatmul.mubr.f32.gmra.mrb[0].mxu0 %v333
    %v2247 = vpop.f32.mrb[0].mxu0
    %v2248 = vadd.f32 %v1224, %v2247
    %v2249 = vpop.f32.mrb[0].mxu0
    %2250 = vmatprep.mubr.f32.mxu0 %v336
    %2251 = vmatmul.mubr.f32.gmra.mrb[0].mxu0 %v335
    %v2252 = vpop.f32.mrb[0].mxu0
    %v2253 = vadd.f32 %v1229, %v2252
    %v2254 = vpop.f32.mrb[0].mxu0
    %2255 = vmatprep.mubr.f32.mxu0 %v338
    %2256 = vmatmul.mubr.f32.gmra.mrb[0].mxu0 %v337
    %v2257 = vpop.f32.mrb[0].mxu0
    %v2258 = vadd.f32 %v1234, %v2257
    %v2259 = vpop.f32.mrb[0].mxu0
    %2260 = vmatprep.mubr.f32.mxu0 %v340
    %2261 = vmatmul.mubr.f32.gmra.mrb[0].mxu0 %v339
    %v2262 = vpop.f32.mrb[0].mxu0
    %v2263 = vadd.f32 %v1239, %v2262
    %v2264 = vpop.f32.mrb[0].mxu0
    %2265 = vmatprep.mubr.f32.mxu0 %v342
    %2266 = vmatmul.mubr.f32.gmra.mrb[0].mxu0 %v341
    %v2267 = vpop.f32.mrb[0].mxu0
    %v2268 = vadd.f32 %v1244, %v2267
    %v2269 = vpop.f32.mrb[0].mxu0
    %2270 = vmatprep.mubr.f32.mxu0 %v344
    %2271 = vmatmul.mubr.f32.gmra.mrb[0].mxu0 %v343
    %v2272 = vpop.f32.mrb[0].mxu0
    %v2273 = vadd.f32 %v1249, %v2272
    %v2274 = vpop.f32.mrb[0].mxu0
    %2275 = vmatprep.mubr.f32.mxu0 %v346
    %2276 = vmatmul.mubr.f32.gmra.mrb[0].mxu0 %v345
    %v2277 = vpop.f32.mrb[0].mxu0
    %v2278 = vadd.f32 %v1254, %v2277
    %v2279 = vpop.f32.mrb[0].mxu0
    %2280 = vmatprep.mubr.f32.mxu0 %v348
    %2281 = vmatmul.mubr.f32.gmra.mrb[0].mxu0 %v347
    %v2282 = vpop.f32.mrb[0].mxu0
    %v2283 = vadd.f32 %v1259, %v2282
    %v2284 = vpop.f32.mrb[0].mxu0
    %2285 = vmatprep.mubr.f32.mxu0 %v350
    %2286 = vmatmul.mubr.f32.gmra.mrb[0].mxu0 %v349
    %v2287 = vpop.f32.mrb[0].mxu0
    %v2288 = vadd.f32 %v1264, %v2287
    %v2289 = vpop.f32.mrb[0].mxu0
    %2290 = vmatprep.mubr.f32.mxu0 %v352
    %2291 = vmatmul.mubr.f32.gmra.mrb[0].mxu0 %v351
    %v2292 = vpop.f32.mrb[0].mxu0
    %v2293 = vadd.f32 %v1269, %v2292
    %v2294 = vpop.f32.mrb[0].mxu0
    %2295 = vmatprep.mubr.f32.mxu0 %v354
    %2296 = vmatmul.mubr.f32.gmra.mrb[0].mxu0 %v353
    %v2297 = vpop.f32.mrb[0].mxu0
    %v2298 = vadd.f32 %v1274, %v2297
    %v2299 = vpop.f32.mrb[0].mxu0
    %2300 = vmatprep.mubr.f32.mxu0 %v356
    %2301 = vmatmul.mubr.f32.gmra.mrb[0].mxu0 %v355
    %v2302 = vpop.f32.mrb[0].mxu0
    %v2303 = vadd.f32 %v1279, %v2302
    %v2304 = vpop.f32.mrb[0].mxu0
    %2305 = vmatprep.mubr.f32.mxu0 %v358
    %2306 = vmatmul.mubr.f32.gmra.mrb[0].mxu0 %v357
    %v2307 = vpop.f32.mrb[0].mxu0
    %v2308 = vadd.f32 %v1284, %v2307
    %v2309 = vpop.f32.mrb[0].mxu0
    %2310 = vmatprep.mubr.f32.mxu0 %v360
    %2311 = vmatmul.mubr.f32.gmra.mrb[0].mxu0 %v359
    %v2312 = vpop.f32.mrb[0].mxu0
    %v2313 = vadd.f32 %v1289, %v2312
    %v2314 = vpop.f32.mrb[0].mxu0
    %2315 = vmatprep.mubr.f32.mxu0 %v362
    %2316 = vmatmul.mubr.f32.gmra.mrb[0].mxu0 %v361
    %v2317 = vpop.f32.mrb[0].mxu0
    %v2318 = vadd.f32 %v1294, %v2317
    %v2319 = vpop.f32.mrb[0].mxu0
    %2320 = vmatprep.mubr.f32.mxu0 %v364
    %2321 = vmatmul.mubr.f32.gmra.mrb[0].mxu0 %v363
    %v2322 = vpop.f32.mrb[0].mxu0
    %v2323 = vadd.f32 %v1299, %v2322
    %v2324 = vpop.f32.mrb[0].mxu0
    %2325 = vmatprep.mubr.f32.mxu0 %v366
    %2326 = vmatmul.mubr.f32.gmra.mrb[0].mxu0 %v365
    %v2327 = vpop.f32.mrb[0].mxu0
    %v2328 = vadd.f32 %v1304, %v2327
    %v2329 = vpop.f32.mrb[0].mxu0
    %2330 = vmatprep.mubr.f32.mxu0 %v368
    %2331 = vmatmul.mubr.f32.gmra.mrb[0].mxu0 %v367
    %v2332 = vpop.f32.mrb[0].mxu0
    %v2333 = vadd.f32 %v1309, %v2332
    %v2334 = vpop.f32.mrb[0].mxu0
    %2335 = vmatprep.mubr.f32.mxu0 %v370
    %2336 = vmatmul.mubr.f32.gmra.mrb[0].mxu0 %v369
    %v2337 = vpop.f32.mrb[0].mxu0
    %v2338 = vadd.f32 %v1314, %v2337
    %v2339 = vpop.f32.mrb[0].mxu0
    %2340 = vmatprep.mubr.f32.mxu0 %v372
    %2341 = vmatmul.mubr.f32.gmra.mrb[0].mxu0 %v371
    %v2342 = vpop.f32.mrb[0].mxu0
    %v2343 = vadd.f32 %v1319, %v2342
    %v2344 = vpop.f32.mrb[0].mxu0
    %2345 = vmatprep.mubr.f32.mxu0 %v374
    %2346 = vmatmul.mubr.f32.gmra.mrb[0].mxu0 %v373
    %v2347 = vpop.f32.mrb[0].mxu0
    %v2348 = vadd.f32 %v1324, %v2347
    %v2349 = vpop.f32.mrb[0].mxu0
    %2350 = vmatprep.mubr.f32.mxu0 %v376
    %2351 = vmatmul.mubr.f32.gmra.mrb[0].mxu0 %v375
    %v2352 = vpop.f32.mrb[0].mxu0
    %v2353 = vadd.f32 %v1329, %v2352
    %v2354 = vpop.f32.mrb[0].mxu0
    %2355 = vmatprep.mubr.f32.mxu0 %v378
    %2356 = vmatmul.mubr.f32.gmra.mrb[0].mxu0 %v377
    %v2357 = vpop.f32.mrb[0].mxu0
    %v2358 = vadd.f32 %v1334, %v2357
    %v2359 = vpop.f32.mrb[0].mxu0
    %2360 = vmatprep.mubr.f32.mxu0 %v380
    %2361 = vmatmul.mubr.f32.gmra.mrb[0].mxu0 %v379
    %v2362 = vpop.f32.mrb[0].mxu0
    %v2363 = vadd.f32 %v1339, %v2362
    %v2364 = vpop.f32.mrb[0].mxu0
    %2365 = vmatprep.mubr.f32.mxu0 %v382
    %2366 = vmatmul.mubr.f32.gmra.mrb[0].mxu0 %v381
    %v2367 = vpop.f32.mrb[0].mxu0
    %v2368 = vadd.f32 %v1344, %v2367
    %v2369 = vpop.f32.mrb[0].mxu0
    %2370 = vmatprep.mubr.f32.mxu0 %v384
    %2371 = vmatmul.mubr.f32.gmra.mrb[0].mxu0 %v383
    %v2372 = vpop.f32.mrb[0].mxu0
    %v2373 = vadd.f32 %v1349, %v2372
    %v2374 = vpop.f32.mrb[0].mxu0
    %2375 = vmatprep.mubr.f32.mxu0 %v386
    %2376 = vmatmul.mubr.f32.gmra.mrb[0].mxu0 %v385
    %v2377 = vpop.f32.mrb[0].mxu0
    %v2378 = vadd.f32 %v1354, %v2377
    %v2379 = vpop.f32.mrb[0].mxu0
    %2380 = vmatprep.mubr.f32.mxu0 %v388
    %2381 = vmatmul.mubr.f32.gmra.mrb[0].mxu0 %v387
    %v2382 = vpop.f32.mrb[0].mxu0
    %v2383 = vadd.f32 %v1359, %v2382
    %v2384 = vpop.f32.mrb[0].mxu0
    %2385 = vmatprep.mubr.f32.mxu0 %v390
    %2386 = vmatmul.mubr.f32.gmra.mrb[0].mxu0 %v389
    %v2387 = vpop.f32.mrb[0].mxu0
    %v2388 = vadd.f32 %v1364, %v2387
    %v2389 = vpop.f32.mrb[0].mxu0
    %2390 = vmatprep.mubr.f32.mxu0 %v392
    %2391 = vmatmul.mubr.f32.gmra.mrb[0].mxu0 %v391
    %v2392 = vpop.f32.mrb[0].mxu0
    %v2393 = vadd.f32 %v1369, %v2392
    %v2394 = vpop.f32.mrb[0].mxu0
    %2395 = vmatprep.mubr.f32.mxu0 %v394
    %2396 = vmatmul.mubr.f32.gmra.mrb[0].mxu0 %v393
    %v2397 = vpop.f32.mrb[0].mxu0
    %v2398 = vadd.f32 %v1374, %v2397
    %v2399 = vpop.f32.mrb[0].mxu0
    %2400 = vmatprep.mubr.f32.mxu0 %v396
    %2401 = vmatmul.mubr.f32.gmra.mrb[0].mxu0 %v395
    %v2402 = vpop.f32.mrb[0].mxu0
    %v2403 = vadd.f32 %v1379, %v2402
    %v2404 = vpop.f32.mrb[0].mxu0
    %2405 = vmatprep.mubr.f32.mxu0 %v398
    %2406 = vmatmul.mubr.f32.gmra.mrb[0].mxu0 %v397
    %v2407 = vpop.f32.mrb[0].mxu0
    %v2408 = vadd.f32 %v1384, %v2407
    %v2409 = vpop.f32.mrb[0].mxu0
    %2410 = vmatprep.mubr.f32.mxu0 %v400
    %2411 = vmatmul.mubr.f32.gmra.mrb[0].mxu0 %v399
    %v2412 = vpop.f32.mrb[0].mxu0
    %v2413 = vadd.f32 %v1389, %v2412
    %v2414 = vpop.f32.mrb[0].mxu0
    %2415 = vmatprep.mubr.f32.mxu0 %v402
    %2416 = vmatmul.mubr.f32.gmra.mrb[0].mxu0 %v401
    %v2417 = vpop.f32.mrb[0].mxu0
    %v2418 = vadd.f32 %v1394, %v2417
    %v2419 = vpop.f32.mrb[0].mxu0
    %2420 = vmatprep.mubr.f32.mxu0 %v404
    %2421 = vmatmul.mubr.f32.gmra.mrb[0].mxu0 %v403
    %v2422 = vpop.f32.mrb[0].mxu0
    %v2423 = vadd.f32 %v1399, %v2422
    %v2424 = vpop.f32.mrb[0].mxu0
    %2425 = vmatprep.mubr.f32.mxu0 %v406
    %2426 = vmatmul.mubr.f32.gmra.mrb[0].mxu0 %v405
    %v2427 = vpop.f32.mrb[0].mxu0
    %v2428 = vadd.f32 %v1404, %v2427
    %v2429 = vpop.f32.mrb[0].mxu0
    %2430 = vmatprep.mubr.f32.mxu0 %v408
    %2431 = vmatmul.mubr.f32.gmra.mrb[0].mxu0 %v407
    %v2432 = vpop.f32.mrb[0].mxu0
    %v2433 = vadd.f32 %v1409, %v2432
    %v2434 = vpop.f32.mrb[0].mxu0
    %2435 = vmatprep.mubr.f32.mxu0 %v410
    %2436 = vmatmul.mubr.f32.gmra.mrb[0].mxu0 %v409
    %v2437 = vpop.f32.mrb[0].mxu0
    %v2438 = vadd.f32 %v1414, %v2437
    %v2439 = vpop.f32.mrb[0].mxu0
    %2440 = vmatprep.mubr.f32.mxu0 %v412
    %2441 = vmatmul.mubr.f32.gmra.mrb[0].mxu0 %v411
    %v2442 = vpop.f32.mrb[0].mxu0
    %v2443 = vadd.f32 %v1419, %v2442
    %v2444 = vpop.f32.mrb[0].mxu0
    %2445 = vmatprep.mubr.f32.mxu0 %v414
    %2446 = vmatmul.mubr.f32.gmra.mrb[0].mxu0 %v413
    %v2447 = vpop.f32.mrb[0].mxu0
    %v2448 = vadd.f32 %v1424, %v2447
    %v2449 = vpop.f32.mrb[0].mxu0
    %2450 = vmatprep.mubr.f32.mxu0 %v416
    %2451 = vmatmul.mubr.f32.gmra.mrb[0].mxu0 %v415
    %v2452 = vpop.f32.mrb[0].mxu0
    %v2453 = vadd.f32 %v1429, %v2452
    %v2454 = vpop.f32.mrb[0].mxu0
    %2455 = vmatprep.mubr.f32.mxu0 %v418
    %2456 = vmatmul.mubr.f32.gmra.mrb[0].mxu0 %v417
    %v2457 = vpop.f32.mrb[0].mxu0
    %v2458 = vadd.f32 %v1434, %v2457
    %v2459 = vpop.f32.mrb[0].mxu0
    %2460 = vmatprep.mubr.f32.mxu0 %v420
    %2461 = vmatmul.mubr.f32.gmra.mrb[0].mxu0 %v419
    %v2462 = vpop.f32.mrb[0].mxu0
    %v2463 = vadd.f32 %v1439, %v2462
    %v2464 = vpop.f32.mrb[0].mxu0
    %2465 = vmatprep.mubr.f32.mxu0 %v422
    %2466 = vmatmul.mubr.f32.gmra.mrb[0].mxu0 %v421
    %v2467 = vpop.f32.mrb[0].mxu0
    %v2468 = vadd.f32 %v1444, %v2467
    %v2469 = vpop.f32.mrb[0].mxu0
    %2470 = vmatprep.mubr.f32.mxu0 %v424
    %2471 = vmatmul.mubr.f32.gmra.mrb[0].mxu0 %v423
    %v2472 = vpop.f32.mrb[0].mxu0
    %v2473 = vadd.f32 %v1449, %v2472
    %v2474 = vpop.f32.mrb[0].mxu0
    %2475 = vmatprep.mubr.f32.mxu0 %v426
    %2476 = vmatmul.mubr.f32.gmra.mrb[0].mxu0 %v425
    %v2477 = vpop.f32.mrb[0].mxu0
    %v2478 = vadd.f32 %v1454, %v2477
    %v2479 = vpop.f32.mrb[0].mxu0
    %2480 = vmatprep.mubr.f32.mxu0 %v428
    %2481 = vmatmul.mubr.f32.gmra.mrb[0].mxu0 %v427
    %v2482 = vpop.f32.mrb[0].mxu0
    %v2483 = vadd.f32 %v1459, %v2482
    %v2484 = vpop.f32.mrb[0].mxu0
    %2485 = vmatprep.mubr.f32.mxu0 %v430
    %2486 = vmatmul.mubr.f32.gmra.mrb[0].mxu0 %v429
    %v2487 = vpop.f32.mrb[0].mxu0
    %v2488 = vadd.f32 %v1464, %v2487
    %v2489 = vpop.f32.mrb[0].mxu0
    %2490 = vmatprep.mubr.f32.mxu0 %v432
    %2491 = vmatmul.mubr.f32.gmra.mrb[0].mxu0 %v431
    %v2492 = vpop.f32.mrb[0].mxu0
    %v2493 = vadd.f32 %v1469, %v2492
    %v2494 = vpop.f32.mrb[0].mxu0
    %2495 = vmatprep.mubr.f32.mxu0 %v434
    %2496 = vmatmul.mubr.f32.gmra.mrb[0].mxu0 %v433
    %v2497 = vpop.f32.mrb[0].mxu0
    %v2498 = vadd.f32 %v1474, %v2497
    %v2499 = vpop.f32.mrb[0].mxu0
    %2500 = vmatprep.mubr.f32.mxu0 %v436
    %2501 = vmatmul.mubr.f32.gmra.mrb[0].mxu0 %v435
    %v2502 = vpop.f32.mrb[0].mxu0
    %v2503 = vadd.f32 %v1479, %v2502
    %v2504 = vpop.f32.mrb[0].mxu0
    %2505 = vmatprep.mubr.f32.mxu0 %v438
    %2506 = vmatmul.mubr.f32.gmra.mrb[0].mxu0 %v437
    %v2507 = vpop.f32.mrb[0].mxu0
    %v2508 = vadd.f32 %v1484, %v2507
    %v2509 = vpop.f32.mrb[0].mxu0
    %2510 = vmatprep.mubr.f32.mxu0 %v440
    %2511 = vmatmul.mubr.f32.gmra.mrb[0].mxu0 %v439
    %v2512 = vpop.f32.mrb[0].mxu0
    %v2513 = vadd.f32 %v1489, %v2512
    %v2514 = vpop.f32.mrb[0].mxu0
    %2515 = vmatprep.mubr.f32.mxu0 %v442
    %2516 = vmatmul.mubr.f32.gmra.mrb[0].mxu0 %v441
    %v2517 = vpop.f32.mrb[0].mxu0
    %v2518 = vadd.f32 %v1494, %v2517
    %v2519 = vpop.f32.mrb[0].mxu0
    %2520 = vmatprep.mubr.f32.mxu0 %v444
    %2521 = vmatmul.mubr.f32.gmra.mrb[0].mxu0 %v443
    %v2522 = vpop.f32.mrb[0].mxu0
    %v2523 = vadd.f32 %v1499, %v2522
    %v2524 = vpop.f32.mrb[0].mxu0
    %2525 = vmatprep.mubr.f32.mxu0 %v446
    %2526 = vmatmul.mubr.f32.gmra.mrb[0].mxu0 %v445
    %v2527 = vpop.f32.mrb[0].mxu0
    %v2528 = vadd.f32 %v1504, %v2527
    %v2529 = vpop.f32.mrb[0].mxu0
    %2530 = vmatprep.mubr.f32.mxu0 %v448
    %2531 = vmatmul.mubr.f32.gmra.mrb[0].mxu0 %v447
    %v2532 = vpop.f32.mrb[0].mxu0
    %v2533 = vadd.f32 %v1509, %v2532
    %v2534 = vpop.f32.mrb[0].mxu0
    %2535 = vmatprep.mubr.f32.mxu0 %v450
    %2536 = vmatmul.mubr.f32.gmra.mrb[0].mxu0 %v449
    %v2537 = vpop.f32.mrb[0].mxu0
    %v2538 = vadd.f32 %v1514, %v2537
    %v2539 = vpop.f32.mrb[0].mxu0
    %2540 = vmatprep.mubr.f32.mxu0 %v452
    %2541 = vmatmul.mubr.f32.gmra.mrb[0].mxu0 %v451
    %v2542 = vpop.f32.mrb[0].mxu0
    %v2543 = vadd.f32 %v1519, %v2542
    %v2544 = vpop.f32.mrb[0].mxu0
    %2545 = vmatprep.mubr.f32.mxu0 %v454
    %2546 = vmatmul.mubr.f32.gmra.mrb[0].mxu0 %v453
    %v2547 = vpop.f32.mrb[0].mxu0
    %v2548 = vadd.f32 %v1524, %v2547
    %v2549 = vpop.f32.mrb[0].mxu0
    %2550 = vmatprep.mubr.f32.mxu0 %v456
    %2551 = vmatmul.mubr.f32.gmra.mrb[0].mxu0 %v455
    %v2552 = vpop.f32.mrb[0].mxu0
    %v2553 = vadd.f32 %v1529, %v2552
    %v2554 = vpop.f32.mrb[0].mxu0
    %2555 = vmatprep.mubr.f32.mxu0 %v458
    %2556 = vmatmul.mubr.f32.gmra.mrb[0].mxu0 %v457
    %v2557 = vpop.f32.mrb[0].mxu0
    %v2558 = vadd.f32 %v1534, %v2557
    %v2559 = vpop.f32.mrb[0].mxu0
    %2560 = vmatprep.mubr.f32.mxu0 %v460
    %2561 = vmatmul.mubr.f32.gmra.mrb[0].mxu0 %v459
    %v2562 = vpop.f32.mrb[0].mxu0
    %v2563 = vadd.f32 %v1539, %v2562
    %v2564 = vpop.f32.mrb[0].mxu0
    %2565 = vmatprep.mubr.f32.mxu0 %v462
    %2566 = vmatmul.mubr.f32.gmra.mrb[0].mxu0 %v461
    %v2567 = vpop.f32.mrb[0].mxu0
    %v2568 = vadd.f32 %v1544, %v2567
    %v2569 = vpop.f32.mrb[0].mxu0
    %2570 = vmatprep.mubr.f32.mxu0 %v464
    %2571 = vmatmul.mubr.f32.gmra.mrb[0].mxu0 %v463
    %v2572 = vpop.f32.mrb[0].mxu0
    %v2573 = vadd.f32 %v1549, %v2572
    %v2574 = vpop.f32.mrb[0].mxu0
    %2575 = vmatprep.mubr.f32.mxu0 %v466
    %2576 = vmatmul.mubr.f32.gmra.mrb[0].mxu0 %v465
    %v2577 = vpop.f32.mrb[0].mxu0
    %v2578 = vadd.f32 %v1554, %v2577
    %v2579 = vpop.f32.mrb[0].mxu0
    %2580 = vmatprep.mubr.f32.mxu0 %v468
    %2581 = vmatmul.mubr.f32.gmra.mrb[0].mxu0 %v467
    %v2582 = vpop.f32.mrb[0].mxu0
    %v2583 = vadd.f32 %v1559, %v2582
    %v2584 = vpop.f32.mrb[0].mxu0
    %2585 = vmatprep.mubr.f32.mxu0 %v470
    %2586 = vmatmul.mubr.f32.gmra.mrb[0].mxu0 %v469
    %v2587 = vpop.f32.mrb[0].mxu0
    %v2588 = vadd.f32 %v1564, %v2587
    %v2589 = vpop.f32.mrb[0].mxu0
    %2590 = vmatprep.mubr.f32.mxu0 %v472
    %2591 = vmatmul.mubr.f32.gmra.mrb[0].mxu0 %v471
    %v2592 = vpop.f32.mrb[0].mxu0
    %v2593 = vadd.f32 %v1569, %v2592
    %v2594 = vpop.f32.mrb[0].mxu0
    %2595 = vmatprep.mubr.f32.mxu0 %v474
    %2596 = vmatmul.mubr.f32.gmra.mrb[0].mxu0 %v473
    %v2597 = vpop.f32.mrb[0].mxu0
    %v2598 = vadd.f32 %v1574, %v2597
    %v2599 = vpop.f32.mrb[0].mxu0
    %2600 = vmatprep.mubr.f32.mxu0 %v476
    %2601 = vmatmul.mubr.f32.gmra.mrb[0].mxu0 %v475
    %v2602 = vpop.f32.mrb[0].mxu0
    %v2603 = vadd.f32 %v1579, %v2602
    %v2604 = vpop.f32.mrb[0].mxu0
    %2605 = vmatprep.mubr.f32.mxu0 %v478
    %2606 = vmatmul.mubr.f32.gmra.mrb[0].mxu0 %v477
    %v2607 = vpop.f32.mrb[0].mxu0
    %v2608 = vadd.f32 %v1584, %v2607
    %v2609 = vpop.f32.mrb[0].mxu0
    %2610 = vmatprep.mubr.f32.mxu0 %v480
    %2611 = vmatmul.mubr.f32.gmra.mrb[0].mxu0 %v479
    %v2612 = vpop.f32.mrb[0].mxu0
    %v2613 = vadd.f32 %v1589, %v2612
    %v2614 = vpop.f32.mrb[0].mxu0
    %2615 = vmatprep.mubr.f32.mxu0 %v482
    %2616 = vmatmul.mubr.f32.gmra.mrb[0].mxu0 %v481
    %v2617 = vpop.f32.mrb[0].mxu0
    %v2618 = vadd.f32 %v1594, %v2617
    %v2619 = vpop.f32.mrb[0].mxu0
    %2620 = vmatprep.mubr.f32.mxu0 %v484
    %2621 = vmatmul.mubr.f32.gmra.mrb[0].mxu0 %v483
    %v2622 = vpop.f32.mrb[0].mxu0
    %v2623 = vadd.f32 %v1599, %v2622
    %v2624 = vpop.f32.mrb[0].mxu0
    %2625 = vmatprep.mubr.f32.mxu0 %v486
    %2626 = vmatmul.mubr.f32.gmra.mrb[0].mxu0 %v485
    %v2627 = vpop.f32.mrb[0].mxu0
    %v2628 = vadd.f32 %v1604, %v2627
    %v2629 = vpop.f32.mrb[0].mxu0
    %2630 = vmatprep.mubr.f32.mxu0 %v488
    %2631 = vmatmul.mubr.f32.gmra.mrb[0].mxu0 %v487
    %v2632 = vpop.f32.mrb[0].mxu0
    %v2633 = vadd.f32 %v1609, %v2632
    %v2634 = vpop.f32.mrb[0].mxu0
    %2635 = vmatprep.mubr.f32.mxu0 %v490
    %2636 = vmatmul.mubr.f32.gmra.mrb[0].mxu0 %v489
    %v2637 = vpop.f32.mrb[0].mxu0
    %v2638 = vadd.f32 %v1614, %v2637
    %v2639 = vpop.f32.mrb[0].mxu0
    %2640 = vmatprep.mubr.f32.mxu0 %v492
    %2641 = vmatmul.mubr.f32.gmra.mrb[0].mxu0 %v491
    %v2642 = vpop.f32.mrb[0].mxu0
    %v2643 = vadd.f32 %v1619, %v2642
    %v2644 = vpop.f32.mrb[0].mxu0
    %2645 = vmatprep.mubr.f32.mxu0 %v494
    %2646 = vmatmul.mubr.f32.gmra.mrb[0].mxu0 %v493
    %v2647 = vpop.f32.mrb[0].mxu0
    %v2648 = vadd.f32 %v1624, %v2647
    %v2649 = vpop.f32.mrb[0].mxu0
    %2650 = vmatprep.mubr.f32.mxu0 %v496
    %2651 = vmatmul.mubr.f32.gmra.mrb[0].mxu0 %v495
    %v2652 = vpop.f32.mrb[0].mxu0
    %v2653 = vadd.f32 %v1629, %v2652
    %v2654 = vpop.f32.mrb[0].mxu0
    %2655 = vmatprep.mubr.f32.mxu0 %v498
    %2656 = vmatmul.mubr.f32.gmra.mrb[0].mxu0 %v497
    %v2657 = vpop.f32.mrb[0].mxu0
    %v2658 = vadd.f32 %v1634, %v2657
    %v2659 = vpop.f32.mrb[0].mxu0
    %2660 = vmatprep.mubr.f32.mxu0 %v500
    %2661 = vmatmul.mubr.f32.gmra.mrb[0].mxu0 %v499
    %v2662 = vpop.f32.mrb[0].mxu0
    %v2663 = vadd.f32 %v1639, %v2662
    %v2664 = vpop.f32.mrb[0].mxu0
    %2665 = vmatprep.mubr.f32.mxu0 %v502
    %2666 = vmatmul.mubr.f32.gmra.mrb[0].mxu0 %v501
    %v2667 = vpop.f32.mrb[0].mxu0
    %v2668 = vadd.f32 %v1644, %v2667
    %v2669 = vpop.f32.mrb[0].mxu0
    %2670 = vmatprep.mubr.f32.mxu0 %v504
    %2671 = vmatmul.mubr.f32.gmra.mrb[0].mxu0 %v503
    %v2672 = vpop.f32.mrb[0].mxu0
    %v2673 = vadd.f32 %v1649, %v2672
    %v2674 = vpop.f32.mrb[0].mxu0
    %2675 = vmatprep.mubr.f32.mxu0 %v506
    %2676 = vmatmul.mubr.f32.gmra.mrb[0].mxu0 %v505
    %v2677 = vpop.f32.mrb[0].mxu0
    %v2678 = vadd.f32 %v1654, %v2677
    %v2679 = vpop.f32.mrb[0].mxu0
    %2680 = vmatprep.mubr.f32.mxu0 %v508
    %2681 = vmatmul.mubr.f32.gmra.mrb[0].mxu0 %v507
    %v2682 = vpop.f32.mrb[0].mxu0
    %v2683 = vadd.f32 %v1659, %v2682
    %v2684 = vpop.f32.mrb[0].mxu0
    %2685 = vdwg.mxu0
    %vm2686 = vcmp.ge.f32.partialorder %v1728, 0.0
    %vm2687 = vcmp.ge.f32.partialorder %v1733, 0.0
    %vm2688 = vcmp.ge.f32.partialorder %v1738, 0.0
    %vm2689 = vcmp.ge.f32.partialorder %v1743, 0.0
    %vm2690 = vcmp.ge.f32.partialorder %v1748, 0.0
    %vm2691 = vcmp.ge.f32.partialorder %v1753, 0.0
    %vm2692 = vcmp.ge.f32.partialorder %v1758, 0.0
    %vm2693 = vcmp.ge.f32.partialorder %v1763, 0.0
    %vm2694 = vcmp.ge.f32.partialorder %v1768, 0.0
    %vm2695 = vcmp.ge.f32.partialorder %v1773, 0.0
    %vm2696 = vcmp.ge.f32.partialorder %v1778, 0.0
    %vm2697 = vcmp.ge.f32.partialorder %v1783, 0.0
    %vm2698 = vcmp.ge.f32.partialorder %v1788, 0.0
    %vm2699 = vcmp.ge.f32.partialorder %v1793, 0.0
    %vm2700 = vcmp.ge.f32.partialorder %v1798, 0.0
    %vm2701 = vcmp.ge.f32.partialorder %v1803, 0.0
    %vm2702 = vcmp.ge.f32.partialorder %v1808, 0.0
    %vm2703 = vcmp.ge.f32.partialorder %v1813, 0.0
    %vm2704 = vcmp.ge.f32.partialorder %v1818, 0.0
    %vm2705 = vcmp.ge.f32.partialorder %v1823, 0.0
    %vm2706 = vcmp.ge.f32.partialorder %v1828, 0.0
    %vm2707 = vcmp.ge.f32.partialorder %v1833, 0.0
    %vm2708 = vcmp.ge.f32.partialorder %v1838, 0.0
    %vm2709 = vcmp.ge.f32.partialorder %v1843, 0.0
    %vm2710 = vcmp.ge.f32.partialorder %v1848, 0.0
    %vm2711 = vcmp.ge.f32.partialorder %v1853, 0.0
    %vm2712 = vcmp.ge.f32.partialorder %v1858, 0.0
    %vm2713 = vcmp.ge.f32.partialorder %v1863, 0.0
    %vm2714 = vcmp.ge.f32.partialorder %v1868, 0.0
    %vm2715 = vcmp.ge.f32.partialorder %v1873, 0.0
    %vm2716 = vcmp.ge.f32.partialorder %v1878, 0.0
    %vm2717 = vcmp.ge.f32.partialorder %v1883, 0.0
    %vm2718 = vcmp.ge.f32.partialorder %v1888, 0.0
    %vm2719 = vcmp.ge.f32.partialorder %v1893, 0.0
    %vm2720 = vcmp.ge.f32.partialorder %v1898, 0.0
    %vm2721 = vcmp.ge.f32.partialorder %v1903, 0.0
    %vm2722 = vcmp.ge.f32.partialorder %v1908, 0.0
    %vm2723 = vcmp.ge.f32.partialorder %v1913, 0.0
    %vm2724 = vcmp.ge.f32.partialorder %v1918, 0.0
    %vm2725 = vcmp.ge.f32.partialorder %v1923, 0.0
    %vm2726 = vcmp.ge.f32.partialorder %v1928, 0.0
    %vm2727 = vcmp.ge.f32.partialorder %v1933, 0.0
    %vm2728 = vcmp.ge.f32.partialorder %v1938, 0.0
    %vm2729 = vcmp.ge.f32.partialorder %v1943, 0.0
    %vm2730 = vcmp.ge.f32.partialorder %v1948, 0.0
    %vm2731 = vcmp.ge.f32.partialorder %v1953, 0.0
    %vm2732 = vcmp.ge.f32.partialorder %v1958, 0.0
    %vm2733 = vcmp.ge.f32.partialorder %v1963, 0.0
    %vm2734 = vcmp.ge.f32.partialorder %v1968, 0.0
    %vm2735 = vcmp.ge.f32.partialorder %v1973, 0.0
    %vm2736 = vcmp.ge.f32.partialorder %v1978, 0.0
    %vm2737 = vcmp.ge.f32.partialorder %v1983, 0.0
    %vm2738 = vcmp.ge.f32.partialorder %v1988, 0.0
    %vm2739 = vcmp.ge.f32.partialorder %v1993, 0.0
    %vm2740 = vcmp.ge.f32.partialorder %v1998, 0.0
    %vm2741 = vcmp.ge.f32.partialorder %v2003, 0.0
    %vm2742 = vcmp.ge.f32.partialorder %v2008, 0.0
    %vm2743 = vcmp.ge.f32.partialorder %v2013, 0.0
    %vm2744 = vcmp.ge.f32.partialorder %v2018, 0.0
    %vm2745 = vcmp.ge.f32.partialorder %v2023, 0.0
    %vm2746 = vcmp.ge.f32.partialorder %v2028, 0.0
    %vm2747 = vcmp.ge.f32.partialorder %v2033, 0.0
    %vm2748 = vcmp.ge.f32.partialorder %v2038, 0.0
    %vm2749 = vcmp.ge.f32.partialorder %v2043, 0.0
    %vm2750 = vcmp.ge.f32.partialorder %v2048, 0.0
    %vm2751 = vcmp.ge.f32.partialorder %v2053, 0.0
    %vm2752 = vcmp.ge.f32.partialorder %v2058, 0.0
    %vm2753 = vcmp.ge.f32.partialorder %v2063, 0.0
    %vm2754 = vcmp.ge.f32.partialorder %v2068, 0.0
    %vm2755 = vcmp.ge.f32.partialorder %v2073, 0.0
    %vm2756 = vcmp.ge.f32.partialorder %v2078, 0.0
    %vm2757 = vcmp.ge.f32.partialorder %v2083, 0.0
    %vm2758 = vcmp.ge.f32.partialorder %v2088, 0.0
    %vm2759 = vcmp.ge.f32.partialorder %v2093, 0.0
    %vm2760 = vcmp.ge.f32.partialorder %v2098, 0.0
    %vm2761 = vcmp.ge.f32.partialorder %v2103, 0.0
    %vm2762 = vcmp.ge.f32.partialorder %v2108, 0.0
    %vm2763 = vcmp.ge.f32.partialorder %v2113, 0.0
    %vm2764 = vcmp.ge.f32.partialorder %v2118, 0.0
    %vm2765 = vcmp.ge.f32.partialorder %v2123, 0.0
    %vm2766 = vcmp.ge.f32.partialorder %v2128, 0.0
    %vm2767 = vcmp.ge.f32.partialorder %v2133, 0.0
    %vm2768 = vcmp.ge.f32.partialorder %v2138, 0.0
    %vm2769 = vcmp.ge.f32.partialorder %v2143, 0.0
    %vm2770 = vcmp.ge.f32.partialorder %v2148, 0.0
    %vm2771 = vcmp.ge.f32.partialorder %v2153, 0.0
    %vm2772 = vcmp.ge.f32.partialorder %v2158, 0.0
    %vm2773 = vcmp.ge.f32.partialorder %v2163, 0.0
    %vm2774 = vcmp.ge.f32.partialorder %v2168, 0.0
    %vm2775 = vcmp.ge.f32.partialorder %v2173, 0.0
    %vm2776 = vcmp.ge.f32.partialorder %v2178, 0.0
    %vm2777 = vcmp.ge.f32.partialorder %v2183, 0.0
    %vm2778 = vcmp.ge.f32.partialorder %v2188, 0.0
    %vm2779 = vcmp.ge.f32.partialorder %v2193, 0.0
    %vm2780 = vcmp.ge.f32.partialorder %v2198, 0.0
    %vm2781 = vcmp.ge.f32.partialorder %v2203, 0.0
    %vm2782 = vcmp.ge.f32.partialorder %v2208, 0.0
    %vm2783 = vcmp.ge.f32.partialorder %v2213, 0.0
    %vm2784 = vcmp.ge.f32.partialorder %v2218, 0.0
    %vm2785 = vcmp.ge.f32.partialorder %v2223, 0.0
    %vm2786 = vcmp.ge.f32.partialorder %v2228, 0.0
    %vm2787 = vcmp.ge.f32.partialorder %v2233, 0.0
    %vm2788 = vcmp.ge.f32.partialorder %v2238, 0.0
    %vm2789 = vcmp.ge.f32.partialorder %v2243, 0.0
    %vm2790 = vcmp.ge.f32.partialorder %v2248, 0.0
    %vm2791 = vcmp.ge.f32.partialorder %v2253, 0.0
    %vm2792 = vcmp.ge.f32.partialorder %v2258, 0.0
    %vm2793 = vcmp.ge.f32.partialorder %v2263, 0.0
    %vm2794 = vcmp.ge.f32.partialorder %v2268, 0.0
    %vm2795 = vcmp.ge.f32.partialorder %v2273, 0.0
    %vm2796 = vcmp.ge.f32.partialorder %v2278, 0.0
    %vm2797 = vcmp.ge.f32.partialorder %v2283, 0.0
    %vm2798 = vcmp.ge.f32.partialorder %v2288, 0.0
    %vm2799 = vcmp.ge.f32.partialorder %v2293, 0.0
    %vm2800 = vcmp.ge.f32.partialorder %v2298, 0.0
    %vm2801 = vcmp.ge.f32.partialorder %v2303, 0.0
    %vm2802 = vcmp.ge.f32.partialorder %v2308, 0.0
    %vm2803 = vcmp.ge.f32.partialorder %v2313, 0.0
    %vm2804 = vcmp.ge.f32.partialorder %v2318, 0.0
    %vm2805 = vcmp.ge.f32.partialorder %v2323, 0.0
    %vm2806 = vcmp.ge.f32.partialorder %v2328, 0.0
    %vm2807 = vcmp.ge.f32.partialorder %v2333, 0.0
    %vm2808 = vcmp.ge.f32.partialorder %v2338, 0.0
    %vm2809 = vcmp.ge.f32.partialorder %v2343, 0.0
    %vm2810 = vcmp.ge.f32.partialorder %v2348, 0.0
    %vm2811 = vcmp.ge.f32.partialorder %v2353, 0.0
    %vm2812 = vcmp.ge.f32.partialorder %v2358, 0.0
    %vm2813 = vcmp.ge.f32.partialorder %v2363, 0.0
    %vm2814 = vcmp.ge.f32.partialorder %v2368, 0.0
    %vm2815 = vcmp.ge.f32.partialorder %v2373, 0.0
    %vm2816 = vcmp.ge.f32.partialorder %v2378, 0.0
    %vm2817 = vcmp.ge.f32.partialorder %v2383, 0.0
    %vm2818 = vcmp.ge.f32.partialorder %v2388, 0.0
    %vm2819 = vcmp.ge.f32.partialorder %v2393, 0.0
    %vm2820 = vcmp.ge.f32.partialorder %v2398, 0.0
    %vm2821 = vcmp.ge.f32.partialorder %v2403, 0.0
    %vm2822 = vcmp.ge.f32.partialorder %v2408, 0.0
    %vm2823 = vcmp.ge.f32.partialorder %v2413, 0.0
    %vm2824 = vcmp.ge.f32.partialorder %v2418, 0.0
    %vm2825 = vcmp.ge.f32.partialorder %v2423, 0.0
    %vm2826 = vcmp.ge.f32.partialorder %v2428, 0.0
    %vm2827 = vcmp.ge.f32.partialorder %v2433, 0.0
    %vm2828 = vcmp.ge.f32.partialorder %v2438, 0.0
    %vm2829 = vcmp.ge.f32.partialorder %v2443, 0.0
    %vm2830 = vcmp.ge.f32.partialorder %v2448, 0.0
    %vm2831 = vcmp.ge.f32.partialorder %v2453, 0.0
    %vm2832 = vcmp.ge.f32.partialorder %v2458, 0.0
    %vm2833 = vcmp.ge.f32.partialorder %v2463, 0.0
    %vm2834 = vcmp.ge.f32.partialorder %v2468, 0.0
    %vm2835 = vcmp.ge.f32.partialorder %v2473, 0.0
    %vm2836 = vcmp.ge.f32.partialorder %v2478, 0.0
    %vm2837 = vcmp.ge.f32.partialorder %v2483, 0.0
    %vm2838 = vcmp.ge.f32.partialorder %v2488, 0.0
    %vm2839 = vcmp.ge.f32.partialorder %v2493, 0.0
    %vm2840 = vcmp.ge.f32.partialorder %v2498, 0.0
    %vm2841 = vcmp.ge.f32.partialorder %v2503, 0.0
    %vm2842 = vcmp.ge.f32.partialorder %v2508, 0.0
    %vm2843 = vcmp.ge.f32.partialorder %v2513, 0.0
    %vm2844 = vcmp.ge.f32.partialorder %v2518, 0.0
    %vm2845 = vcmp.ge.f32.partialorder %v2523, 0.0
    %vm2846 = vcmp.ge.f32.partialorder %v2528, 0.0
    %vm2847 = vcmp.ge.f32.partialorder %v2533, 0.0
    %vm2848 = vcmp.ge.f32.partialorder %v2538, 0.0
    %vm2849 = vcmp.ge.f32.partialorder %v2543, 0.0
    %vm2850 = vcmp.ge.f32.partialorder %v2548, 0.0
    %vm2851 = vcmp.ge.f32.partialorder %v2553, 0.0
    %vm2852 = vcmp.ge.f32.partialorder %v2558, 0.0
    %vm2853 = vcmp.ge.f32.partialorder %v2563, 0.0
    %vm2854 = vcmp.ge.f32.partialorder %v2568, 0.0
    %vm2855 = vcmp.ge.f32.partialorder %v2573, 0.0
    %vm2856 = vcmp.ge.f32.partialorder %v2578, 0.0
    %vm2857 = vcmp.ge.f32.partialorder %v2583, 0.0
    %vm2858 = vcmp.ge.f32.partialorder %v2588, 0.0
    %vm2859 = vcmp.ge.f32.partialorder %v2593, 0.0
    %vm2860 = vcmp.ge.f32.partialorder %v2598, 0.0
    %vm2861 = vcmp.ge.f32.partialorder %v2603, 0.0
    %vm2862 = vcmp.ge.f32.partialorder %v2608, 0.0
    %vm2863 = vcmp.ge.f32.partialorder %v2613, 0.0
    %vm2864 = vcmp.ge.f32.partialorder %v2618, 0.0
    %vm2865 = vcmp.ge.f32.partialorder %v2623, 0.0
    %vm2866 = vcmp.ge.f32.partialorder %v2628, 0.0
    %vm2867 = vcmp.ge.f32.partialorder %v2633, 0.0
    %vm2868 = vcmp.ge.f32.partialorder %v2638, 0.0
    %vm2869 = vcmp.ge.f32.partialorder %v2643, 0.0
    %vm2870 = vcmp.ge.f32.partialorder %v2648, 0.0
    %vm2871 = vcmp.ge.f32.partialorder %v2653, 0.0
    %vm2872 = vcmp.ge.f32.partialorder %v2658, 0.0
    %vm2873 = vcmp.ge.f32.partialorder %v2663, 0.0
    %vm2874 = vcmp.ge.f32.partialorder %v2668, 0.0
    %vm2875 = vcmp.ge.f32.partialorder %v2673, 0.0
    %vm2876 = vcmp.ge.f32.partialorder %v2678, 0.0
    %vm2877 = vcmp.ge.f32.partialorder %v2683, 0.0
    %v2878 = vmul.f32 %v1728, 0.01
    %v2879 = vmul.f32 %v1733, 0.01
    %v2880 = vmul.f32 %v1738, 0.01
    %v2881 = vmul.f32 %v1743, 0.01
    %v2882 = vmul.f32 %v1748, 0.01
    %v2883 = vmul.f32 %v1753, 0.01
    %v2884 = vmul.f32 %v1758, 0.01
    %v2885 = vmul.f32 %v1763, 0.01
    %v2886 = vmul.f32 %v1768, 0.01
    %v2887 = vmul.f32 %v1773, 0.01
    %v2888 = vmul.f32 %v1778, 0.01
    %v2889 = vmul.f32 %v1783, 0.01
    %v2890 = vmul.f32 %v1788, 0.01
    %v2891 = vmul.f32 %v1793, 0.01
    %v2892 = vmul.f32 %v1798, 0.01
    %v2893 = vmul.f32 %v1803, 0.01
    %v2894 = vmul.f32 %v1808, 0.01
    %v2895 = vmul.f32 %v1813, 0.01
    %v2896 = vmul.f32 %v1818, 0.01
    %v2897 = vmul.f32 %v1823, 0.01
    %v2898 = vmul.f32 %v1828, 0.01
    %v2899 = vmul.f32 %v1833, 0.01
    %v2900 = vmul.f32 %v1838, 0.01
    %v2901 = vmul.f32 %v1843, 0.01
    %v2902 = vmul.f32 %v1848, 0.01
    %v2903 = vmul.f32 %v1853, 0.01
    %v2904 = vmul.f32 %v1858, 0.01
    %v2905 = vmul.f32 %v1863, 0.01
    %v2906 = vmul.f32 %v1868, 0.01
    %v2907 = vmul.f32 %v1873, 0.01
    %v2908 = vmul.f32 %v1878, 0.01
    %v2909 = vmul.f32 %v1883, 0.01
    %v2910 = vmul.f32 %v1888, 0.01
    %v2911 = vmul.f32 %v1893, 0.01
    %v2912 = vmul.f32 %v1898, 0.01
    %v2913 = vmul.f32 %v1903, 0.01
    %v2914 = vmul.f32 %v1908, 0.01
    %v2915 = vmul.f32 %v1913, 0.01
    %v2916 = vmul.f32 %v1918, 0.01
    %v2917 = vmul.f32 %v1923, 0.01
    %v2918 = vmul.f32 %v1928, 0.01
    %v2919 = vmul.f32 %v1933, 0.01
    %v2920 = vmul.f32 %v1938, 0.01
    %v2921 = vmul.f32 %v1943, 0.01
    %v2922 = vmul.f32 %v1948, 0.01
    %v2923 = vmul.f32 %v1953, 0.01
    %v2924 = vmul.f32 %v1958, 0.01
    %v2925 = vmul.f32 %v1963, 0.01
    %v2926 = vmul.f32 %v1968, 0.01
    %v2927 = vmul.f32 %v1973, 0.01
    %v2928 = vmul.f32 %v1978, 0.01
    %v2929 = vmul.f32 %v1983, 0.01
    %v2930 = vmul.f32 %v1988, 0.01
    %v2931 = vmul.f32 %v1993, 0.01
    %v2932 = vmul.f32 %v1998, 0.01
    %v2933 = vmul.f32 %v2003, 0.01
    %v2934 = vmul.f32 %v2008, 0.01
    %v2935 = vmul.f32 %v2013, 0.01
    %v2936 = vmul.f32 %v2018, 0.01
    %v2937 = vmul.f32 %v2023, 0.01
    %v2938 = vmul.f32 %v2028, 0.01
    %v2939 = vmul.f32 %v2033, 0.01
    %v2940 = vmul.f32 %v2038, 0.01
    %v2941 = vmul.f32 %v2043, 0.01
    %v2942 = vmul.f32 %v2048, 0.01
    %v2943 = vmul.f32 %v2053, 0.01
    %v2944 = vmul.f32 %v2058, 0.01
    %v2945 = vmul.f32 %v2063, 0.01
    %v2946 = vmul.f32 %v2068, 0.01
    %v2947 = vmul.f32 %v2073, 0.01
    %v2948 = vmul.f32 %v2078, 0.01
    %v2949 = vmul.f32 %v2083, 0.01
    %v2950 = vmul.f32 %v2088, 0.01
    %v2951 = vmul.f32 %v2093, 0.01
    %v2952 = vmul.f32 %v2098, 0.01
    %v2953 = vmul.f32 %v2103, 0.01
    %v2954 = vmul.f32 %v2108, 0.01
    %v2955 = vmul.f32 %v2113, 0.01
    %v2956 = vmul.f32 %v2118, 0.01
    %v2957 = vmul.f32 %v2123, 0.01
    %v2958 = vmul.f32 %v2128, 0.01
    %v2959 = vmul.f32 %v2133, 0.01
    %v2960 = vmul.f32 %v2138, 0.01
    %v2961 = vmul.f32 %v2143, 0.01
    %v2962 = vmul.f32 %v2148, 0.01
    %v2963 = vmul.f32 %v2153, 0.01
    %v2964 = vmul.f32 %v2158, 0.01
    %v2965 = vmul.f32 %v2163, 0.01
    %v2966 = vmul.f32 %v2168, 0.01
    %v2967 = vmul.f32 %v2173, 0.01
    %v2968 = vmul.f32 %v2178, 0.01
    %v2969 = vmul.f32 %v2183, 0.01
    %v2970 = vmul.f32 %v2188, 0.01
    %v2971 = vmul.f32 %v2193, 0.01
    %v2972 = vmul.f32 %v2198, 0.01
    %v2973 = vmul.f32 %v2203, 0.01
    %v2974 = vmul.f32 %v2208, 0.01
    %v2975 = vmul.f32 %v2213, 0.01
    %v2976 = vmul.f32 %v2218, 0.01
    %v2977 = vmul.f32 %v2223, 0.01
    %v2978 = vmul.f32 %v2228, 0.01
    %v2979 = vmul.f32 %v2233, 0.01
    %v2980 = vmul.f32 %v2238, 0.01
    %v2981 = vmul.f32 %v2243, 0.01
    %v2982 = vmul.f32 %v2248, 0.01
    %v2983 = vmul.f32 %v2253, 0.01
    %v2984 = vmul.f32 %v2258, 0.01
    %v2985 = vmul.f32 %v2263, 0.01
    %v2986 = vmul.f32 %v2268, 0.01
    %v2987 = vmul.f32 %v2273, 0.01
    %v2988 = vmul.f32 %v2278, 0.01
    %v2989 = vmul.f32 %v2283, 0.01
    %v2990 = vmul.f32 %v2288, 0.01
    %v2991 = vmul.f32 %v2293, 0.01
    %v2992 = vmul.f32 %v2298, 0.01
    %v2993 = vmul.f32 %v2303, 0.01
    %v2994 = vmul.f32 %v2308, 0.01
    %v2995 = vmul.f32 %v2313, 0.01
    %v2996 = vmul.f32 %v2318, 0.01
    %v2997 = vmul.f32 %v2323, 0.01
    %v2998 = vmul.f32 %v2328, 0.01
    %v2999 = vmul.f32 %v2333, 0.01
    %v3000 = vmul.f32 %v2338, 0.01
    %v3001 = vmul.f32 %v2343, 0.01
    %v3002 = vmul.f32 %v2348, 0.01
    %v3003 = vmul.f32 %v2353, 0.01
    %v3004 = vmul.f32 %v2358, 0.01
    %v3005 = vmul.f32 %v2363, 0.01
    %v3006 = vmul.f32 %v2368, 0.01
    %v3007 = vmul.f32 %v2373, 0.01
    %v3008 = vmul.f32 %v2378, 0.01
    %v3009 = vmul.f32 %v2383, 0.01
    %v3010 = vmul.f32 %v2388, 0.01
    %v3011 = vmul.f32 %v2393, 0.01
    %v3012 = vmul.f32 %v2398, 0.01
    %v3013 = vmul.f32 %v2403, 0.01
    %v3014 = vmul.f32 %v2408, 0.01
    %v3015 = vmul.f32 %v2413, 0.01
    %v3016 = vmul.f32 %v2418, 0.01
    %v3017 = vmul.f32 %v2423, 0.01
    %v3018 = vmul.f32 %v2428, 0.01
    %v3019 = vmul.f32 %v2433, 0.01
    %v3020 = vmul.f32 %v2438, 0.01
    %v3021 = vmul.f32 %v2443, 0.01
    %v3022 = vmul.f32 %v2448, 0.01
    %v3023 = vmul.f32 %v2453, 0.01
    %v3024 = vmul.f32 %v2458, 0.01
    %v3025 = vmul.f32 %v2463, 0.01
    %v3026 = vmul.f32 %v2468, 0.01
    %v3027 = vmul.f32 %v2473, 0.01
    %v3028 = vmul.f32 %v2478, 0.01
    %v3029 = vmul.f32 %v2483, 0.01
    %v3030 = vmul.f32 %v2488, 0.01
    %v3031 = vmul.f32 %v2493, 0.01
    %v3032 = vmul.f32 %v2498, 0.01
    %v3033 = vmul.f32 %v2503, 0.01
    %v3034 = vmul.f32 %v2508, 0.01
    %v3035 = vmul.f32 %v2513, 0.01
    %v3036 = vmul.f32 %v2518, 0.01
    %v3037 = vmul.f32 %v2523, 0.01
    %v3038 = vmul.f32 %v2528, 0.01
    %v3039 = vmul.f32 %v2533, 0.01
    %v3040 = vmul.f32 %v2538, 0.01
    %v3041 = vmul.f32 %v2543, 0.01
    %v3042 = vmul.f32 %v2548, 0.01
    %v3043 = vmul.f32 %v2553, 0.01
    %v3044 = vmul.f32 %v2558, 0.01
    %v3045 = vmul.f32 %v2563, 0.01
    %v3046 = vmul.f32 %v2568, 0.01
    %v3047 = vmul.f32 %v2573, 0.01
    %v3048 = vmul.f32 %v2578, 0.01
    %v3049 = vmul.f32 %v2583, 0.01
    %v3050 = vmul.f32 %v2588, 0.01
    %v3051 = vmul.f32 %v2593, 0.01
    %v3052 = vmul.f32 %v2598, 0.01
    %v3053 = vmul.f32 %v2603, 0.01
    %v3054 = vmul.f32 %v2608, 0.01
    %v3055 = vmul.f32 %v2613, 0.01
    %v3056 = vmul.f32 %v2618, 0.01
    %v3057 = vmul.f32 %v2623, 0.01
    %v3058 = vmul.f32 %v2628, 0.01
    %v3059 = vmul.f32 %v2633, 0.01
    %v3060 = vmul.f32 %v2638, 0.01
    %v3061 = vmul.f32 %v2643, 0.01
    %v3062 = vmul.f32 %v2648, 0.01
    %v3063 = vmul.f32 %v2653, 0.01
    %v3064 = vmul.f32 %v2658, 0.01
    %v3065 = vmul.f32 %v2663, 0.01
    %v3066 = vmul.f32 %v2668, 0.01
    %v3067 = vmul.f32 %v2673, 0.01
    %v3068 = vmul.f32 %v2678, 0.01
    %v3069 = vmul.f32 %v2683, 0.01
    %v3070 = vsel %vm2686, %v1728, %v2878
    %v3071 = vsel %vm2687, %v1733, %v2879
    %v3072 = vsel %vm2688, %v1738, %v2880
    %v3073 = vsel %vm2689, %v1743, %v2881
    %v3074 = vsel %vm2690, %v1748, %v2882
    %v3075 = vsel %vm2691, %v1753, %v2883
    %v3076 = vsel %vm2692, %v1758, %v2884
    %v3077 = vsel %vm2693, %v1763, %v2885
    %v3078 = vsel %vm2694, %v1768, %v2886
    %v3079 = vsel %vm2695, %v1773, %v2887
    %v3080 = vsel %vm2696, %v1778, %v2888
    %v3081 = vsel %vm2697, %v1783, %v2889
    %v3082 = vsel %vm2698, %v1788, %v2890
    %v3083 = vsel %vm2699, %v1793, %v2891
    %v3084 = vsel %vm2700, %v1798, %v2892
    %v3085 = vsel %vm2701, %v1803, %v2893
    %v3086 = vsel %vm2702, %v1808, %v2894
    %v3087 = vsel %vm2703, %v1813, %v2895
    %v3088 = vsel %vm2704, %v1818, %v2896
    %v3089 = vsel %vm2705, %v1823, %v2897
    %v3090 = vsel %vm2706, %v1828, %v2898
    %v3091 = vsel %vm2707, %v1833, %v2899
    %v3092 = vsel %vm2708, %v1838, %v2900
    %v3093 = vsel %vm2709, %v1843, %v2901
    %v3094 = vsel %vm2710, %v1848, %v2902
    %v3095 = vsel %vm2711, %v1853, %v2903
    %v3096 = vsel %vm2712, %v1858, %v2904
    %v3097 = vsel %vm2713, %v1863, %v2905
    %v3098 = vsel %vm2714, %v1868, %v2906
    %v3099 = vsel %vm2715, %v1873, %v2907
    %v3100 = vsel %vm2716, %v1878, %v2908
    %v3101 = vsel %vm2717, %v1883, %v2909
    %v3102 = vsel %vm2718, %v1888, %v2910
    %v3103 = vsel %vm2719, %v1893, %v2911
    %v3104 = vsel %vm2720, %v1898, %v2912
    %v3105 = vsel %vm2721, %v1903, %v2913
    %v3106 = vsel %vm2722, %v1908, %v2914
    %v3107 = vsel %vm2723, %v1913, %v2915
    %v3108 = vsel %vm2724, %v1918, %v2916
    %v3109 = vsel %vm2725, %v1923, %v2917
    %v3110 = vsel %vm2726, %v1928, %v2918
    %v3111 = vsel %vm2727, %v1933, %v2919
    %v3112 = vsel %vm2728, %v1938, %v2920
    %v3113 = vsel %vm2729, %v1943, %v2921
    %v3114 = vsel %vm2730, %v1948, %v2922
    %v3115 = vsel %vm2731, %v1953, %v2923
    %v3116 = vsel %vm2732, %v1958, %v2924
    %v3117 = vsel %vm2733, %v1963, %v2925
    %v3118 = vsel %vm2734, %v1968, %v2926
    %v3119 = vsel %vm2735, %v1973, %v2927
    %v3120 = vsel %vm2736, %v1978, %v2928
    %v3121 = vsel %vm2737, %v1983, %v2929
    %v3122 = vsel %vm2738, %v1988, %v2930
    %v3123 = vsel %vm2739, %v1993, %v2931
    %v3124 = vsel %vm2740, %v1998, %v2932
    %v3125 = vsel %vm2741, %v2003, %v2933
    %v3126 = vsel %vm2742, %v2008, %v2934
    %v3127 = vsel %vm2743, %v2013, %v2935
    %v3128 = vsel %vm2744, %v2018, %v2936
    %v3129 = vsel %vm2745, %v2023, %v2937
    %v3130 = vsel %vm2746, %v2028, %v2938
    %v3131 = vsel %vm2747, %v2033, %v2939
    %v3132 = vsel %vm2748, %v2038, %v2940
    %v3133 = vsel %vm2749, %v2043, %v2941
    %v3134 = vsel %vm2750, %v2048, %v2942
    %v3135 = vsel %vm2751, %v2053, %v2943
    %v3136 = vsel %vm2752, %v2058, %v2944
    %v3137 = vsel %vm2753, %v2063, %v2945
    %v3138 = vsel %vm2754, %v2068, %v2946
    %v3139 = vsel %vm2755, %v2073, %v2947
    %v3140 = vsel %vm2756, %v2078, %v2948
    %v3141 = vsel %vm2757, %v2083, %v2949
    %v3142 = vsel %vm2758, %v2088, %v2950
    %v3143 = vsel %vm2759, %v2093, %v2951
    %v3144 = vsel %vm2760, %v2098, %v2952
    %v3145 = vsel %vm2761, %v2103, %v2953
    %v3146 = vsel %vm2762, %v2108, %v2954
    %v3147 = vsel %vm2763, %v2113, %v2955
    %v3148 = vsel %vm2764, %v2118, %v2956
    %v3149 = vsel %vm2765, %v2123, %v2957
    %v3150 = vsel %vm2766, %v2128, %v2958
    %v3151 = vsel %vm2767, %v2133, %v2959
    %v3152 = vsel %vm2768, %v2138, %v2960
    %v3153 = vsel %vm2769, %v2143, %v2961
    %v3154 = vsel %vm2770, %v2148, %v2962
    %v3155 = vsel %vm2771, %v2153, %v2963
    %v3156 = vsel %vm2772, %v2158, %v2964
    %v3157 = vsel %vm2773, %v2163, %v2965
    %v3158 = vsel %vm2774, %v2168, %v2966
    %v3159 = vsel %vm2775, %v2173, %v2967
    %v3160 = vsel %vm2776, %v2178, %v2968
    %v3161 = vsel %vm2777, %v2183, %v2969
    %v3162 = vsel %vm2778, %v2188, %v2970
    %v3163 = vsel %vm2779, %v2193, %v2971
    %v3164 = vsel %vm2780, %v2198, %v2972
    %v3165 = vsel %vm2781, %v2203, %v2973
    %v3166 = vsel %vm2782, %v2208, %v2974
    %v3167 = vsel %vm2783, %v2213, %v2975
    %v3168 = vsel %vm2784, %v2218, %v2976
    %v3169 = vsel %vm2785, %v2223, %v2977
    %v3170 = vsel %vm2786, %v2228, %v2978
    %v3171 = vsel %vm2787, %v2233, %v2979
    %v3172 = vsel %vm2788, %v2238, %v2980
    %v3173 = vsel %vm2789, %v2243, %v2981
    %v3174 = vsel %vm2790, %v2248, %v2982
    %v3175 = vsel %vm2791, %v2253, %v2983
    %v3176 = vsel %vm2792, %v2258, %v2984
    %v3177 = vsel %vm2793, %v2263, %v2985
    %v3178 = vsel %vm2794, %v2268, %v2986
    %v3179 = vsel %vm2795, %v2273, %v2987
    %v3180 = vsel %vm2796, %v2278, %v2988
    %v3181 = vsel %vm2797, %v2283, %v2989
    %v3182 = vsel %vm2798, %v2288, %v2990
    %v3183 = vsel %vm2799, %v2293, %v2991
    %v3184 = vsel %vm2800, %v2298, %v2992
    %v3185 = vsel %vm2801, %v2303, %v2993
    %v3186 = vsel %vm2802, %v2308, %v2994
    %v3187 = vsel %vm2803, %v2313, %v2995
    %v3188 = vsel %vm2804, %v2318, %v2996
    %v3189 = vsel %vm2805, %v2323, %v2997
    %v3190 = vsel %vm2806, %v2328, %v2998
    %v3191 = vsel %vm2807, %v2333, %v2999
    %v3192 = vsel %vm2808, %v2338, %v3000
    %v3193 = vsel %vm2809, %v2343, %v3001
    %v3194 = vsel %vm2810, %v2348, %v3002
    %v3195 = vsel %vm2811, %v2353, %v3003
    %v3196 = vsel %vm2812, %v2358, %v3004
    %v3197 = vsel %vm2813, %v2363, %v3005
    %v3198 = vsel %vm2814, %v2368, %v3006
    %v3199 = vsel %vm2815, %v2373, %v3007
    %v3200 = vsel %vm2816, %v2378, %v3008
    %v3201 = vsel %vm2817, %v2383, %v3009
    %v3202 = vsel %vm2818, %v2388, %v3010
    %v3203 = vsel %vm2819, %v2393, %v3011
    %v3204 = vsel %vm2820, %v2398, %v3012
    %v3205 = vsel %vm2821, %v2403, %v3013
    %v3206 = vsel %vm2822, %v2408, %v3014
    %v3207 = vsel %vm2823, %v2413, %v3015
    %v3208 = vsel %vm2824, %v2418, %v3016
    %v3209 = vsel %vm2825, %v2423, %v3017
    %v3210 = vsel %vm2826, %v2428, %v3018
    %v3211 = vsel %vm2827, %v2433, %v3019
    %v3212 = vsel %vm2828, %v2438, %v3020
    %v3213 = vsel %vm2829, %v2443, %v3021
    %v3214 = vsel %vm2830, %v2448, %v3022
    %v3215 = vsel %vm2831, %v2453, %v3023
    %v3216 = vsel %vm2832, %v2458, %v3024
    %v3217 = vsel %vm2833, %v2463, %v3025
    %v3218 = vsel %vm2834, %v2468, %v3026
    %v3219 = vsel %vm2835, %v2473, %v3027
    %v3220 = vsel %vm2836, %v2478, %v3028
    %v3221 = vsel %vm2837, %v2483, %v3029
    %v3222 = vsel %vm2838, %v2488, %v3030
    %v3223 = vsel %vm2839, %v2493, %v3031
    %v3224 = vsel %vm2840, %v2498, %v3032
    %v3225 = vsel %vm2841, %v2503, %v3033
    %v3226 = vsel %vm2842, %v2508, %v3034
    %v3227 = vsel %vm2843, %v2513, %v3035
    %v3228 = vsel %vm2844, %v2518, %v3036
    %v3229 = vsel %vm2845, %v2523, %v3037
    %v3230 = vsel %vm2846, %v2528, %v3038
    %v3231 = vsel %vm2847, %v2533, %v3039
    %v3232 = vsel %vm2848, %v2538, %v3040
    %v3233 = vsel %vm2849, %v2543, %v3041
    %v3234 = vsel %vm2850, %v2548, %v3042
    %v3235 = vsel %vm2851, %v2553, %v3043
    %v3236 = vsel %vm2852, %v2558, %v3044
    %v3237 = vsel %vm2853, %v2563, %v3045
    %v3238 = vsel %vm2854, %v2568, %v3046
    %v3239 = vsel %vm2855, %v2573, %v3047
    %v3240 = vsel %vm2856, %v2578, %v3048
    %v3241 = vsel %vm2857, %v2583, %v3049
    %v3242 = vsel %vm2858, %v2588, %v3050
    %v3243 = vsel %vm2859, %v2593, %v3051
    %v3244 = vsel %vm2860, %v2598, %v3052
    %v3245 = vsel %vm2861, %v2603, %v3053
    %v3246 = vsel %vm2862, %v2608, %v3054
    %v3247 = vsel %vm2863, %v2613, %v3055
    %v3248 = vsel %vm2864, %v2618, %v3056
    %v3249 = vsel %vm2865, %v2623, %v3057
    %v3250 = vsel %vm2866, %v2628, %v3058
    %v3251 = vsel %vm2867, %v2633, %v3059
    %v3252 = vsel %vm2868, %v2638, %v3060
    %v3253 = vsel %vm2869, %v2643, %v3061
    %v3254 = vsel %vm2870, %v2648, %v3062
    %v3255 = vsel %vm2871, %v2653, %v3063
    %v3256 = vsel %vm2872, %v2658, %v3064
    %v3257 = vsel %vm2873, %v2663, %v3065
    %v3258 = vsel %vm2874, %v2668, %v3066
    %v3259 = vsel %vm2875, %v2673, %v3067
    %v3260 = vsel %vm2876, %v2678, %v3068
    %v3261 = vsel %vm2877, %v2683, %v3069
    %v3262 = vmax.f32 %v3070, %v3118
    %v3263 = vmax.f32 %v3071, %v3119
    %v3264 = vmax.f32 %v3072, %v3120
    %v3265 = vmax.f32 %v3073, %v3121
    %v3266 = vmax.f32 %v3074, %v3122
    %v3267 = vmax.f32 %v3075, %v3123
    %v3268 = vmax.f32 %v3076, %v3124
    %v3269 = vmax.f32 %v3077, %v3125
    %v3270 = vmax.f32 %v3078, %v3126
    %v3271 = vmax.f32 %v3079, %v3127
    %v3272 = vmax.f32 %v3080, %v3128
    %v3273 = vmax.f32 %v3081, %v3129
    %v3274 = vmax.f32 %v3082, %v3130
    %v3275 = vmax.f32 %v3083, %v3131
    %v3276 = vmax.f32 %v3084, %v3132
    %v3277 = vmax.f32 %v3085, %v3133
    %v3278 = vmax.f32 %v3086, %v3134
    %v3279 = vmax.f32 %v3087, %v3135
    %v3280 = vmax.f32 %v3088, %v3136
    %v3281 = vmax.f32 %v3089, %v3137
    %v3282 = vmax.f32 %v3090, %v3138
    %v3283 = vmax.f32 %v3091, %v3139
    %v3284 = vmax.f32 %v3092, %v3140
    %v3285 = vmax.f32 %v3093, %v3141
    %v3286 = vmax.f32 %v3094, %v3142
    %v3287 = vmax.f32 %v3095, %v3143
    %v3288 = vmax.f32 %v3096, %v3144
    %v3289 = vmax.f32 %v3097, %v3145
    %v3290 = vmax.f32 %v3098, %v3146
    %v3291 = vmax.f32 %v3099, %v3147
    %v3292 = vmax.f32 %v3100, %v3148
    %v3293 = vmax.f32 %v3101, %v3149
    %v3294 = vmax.f32 %v3102, %v3150
    %v3295 = vmax.f32 %v3103, %v3151
    %v3296 = vmax.f32 %v3104, %v3152
    %v3297 = vmax.f32 %v3105, %v3153
    %v3298 = vmax.f32 %v3106, %v3154
    %v3299 = vmax.f32 %v3107, %v3155
    %v3300 = vmax.f32 %v3108, %v3156
    %v3301 = vmax.f32 %v3109, %v3157
    %v3302 = vmax.f32 %v3110, %v3158
    %v3303 = vmax.f32 %v3111, %v3159
    %v3304 = vmax.f32 %v3112, %v3160
    %v3305 = vmax.f32 %v3113, %v3161
    %v3306 = vmax.f32 %v3114, %v3162
    %v3307 = vmax.f32 %v3115, %v3163
    %v3308 = vmax.f32 %v3116, %v3164
    %v3309 = vmax.f32 %v3117, %v3165
    %v3310 = vmax.f32 %v3166, %v3214
    %v3311 = vmax.f32 %v3167, %v3215
    %v3312 = vmax.f32 %v3168, %v3216
    %v3313 = vmax.f32 %v3169, %v3217
    %v3314 = vmax.f32 %v3170, %v3218
    %v3315 = vmax.f32 %v3171, %v3219
    %v3316 = vmax.f32 %v3172, %v3220
    %v3317 = vmax.f32 %v3173, %v3221
    %v3318 = vmax.f32 %v3174, %v3222
    %v3319 = vmax.f32 %v3175, %v3223
    %v3320 = vmax.f32 %v3176, %v3224
    %v3321 = vmax.f32 %v3177, %v3225
    %v3322 = vmax.f32 %v3178, %v3226
    %v3323 = vmax.f32 %v3179, %v3227
    %v3324 = vmax.f32 %v3180, %v3228
    %v3325 = vmax.f32 %v3181, %v3229
    %v3326 = vmax.f32 %v3182, %v3230
    %v3327 = vmax.f32 %v3183, %v3231
    %v3328 = vmax.f32 %v3184, %v3232
    %v3329 = vmax.f32 %v3185, %v3233
    %v3330 = vmax.f32 %v3186, %v3234
    %v3331 = vmax.f32 %v3187, %v3235
    %v3332 = vmax.f32 %v3188, %v3236
    %v3333 = vmax.f32 %v3189, %v3237
    %v3334 = vmax.f32 %v3190, %v3238
    %v3335 = vmax.f32 %v3191, %v3239
    %v3336 = vmax.f32 %v3192, %v3240
    %v3337 = vmax.f32 %v3193, %v3241
    %v3338 = vmax.f32 %v3194, %v3242
    %v3339 = vmax.f32 %v3195, %v3243
    %v3340 = vmax.f32 %v3196, %v3244
    %v3341 = vmax.f32 %v3197, %v3245
    %v3342 = vmax.f32 %v3198, %v3246
    %v3343 = vmax.f32 %v3199, %v3247
    %v3344 = vmax.f32 %v3200, %v3248
    %v3345 = vmax.f32 %v3201, %v3249
    %v3346 = vmax.f32 %v3202, %v3250
    %v3347 = vmax.f32 %v3203, %v3251
    %v3348 = vmax.f32 %v3204, %v3252
    %v3349 = vmax.f32 %v3205, %v3253
    %v3350 = vmax.f32 %v3206, %v3254
    %v3351 = vmax.f32 %v3207, %v3255
    %v3352 = vmax.f32 %v3208, %v3256
    %v3353 = vmax.f32 %v3209, %v3257
    %v3354 = vmax.f32 %v3210, %v3258
    %v3355 = vmax.f32 %v3211, %v3259
    %v3356 = vmax.f32 %v3212, %v3260
    %v3357 = vmax.f32 %v3213, %v3261
    %v3358 = vmax.f32 %v3262, %v3310
    %v3359 = vmax.f32 %v3263, %v3311
    %v3360 = vmax.f32 %v3264, %v3312
    %v3361 = vmax.f32 %v3265, %v3313
    %v3362 = vmax.f32 %v3266, %v3314
    %v3363 = vmax.f32 %v3267, %v3315
    %v3364 = vmax.f32 %v3268, %v3316
    %v3365 = vmax.f32 %v3269, %v3317
    %v3366 = vmax.f32 %v3270, %v3318
    %v3367 = vmax.f32 %v3271, %v3319
    %v3368 = vmax.f32 %v3272, %v3320
    %v3369 = vmax.f32 %v3273, %v3321
    %v3370 = vmax.f32 %v3274, %v3322
    %v3371 = vmax.f32 %v3275, %v3323
    %v3372 = vmax.f32 %v3276, %v3324
    %v3373 = vmax.f32 %v3277, %v3325
    %v3374 = vmax.f32 %v3278, %v3326
    %v3375 = vmax.f32 %v3279, %v3327
    %v3376 = vmax.f32 %v3280, %v3328
    %v3377 = vmax.f32 %v3281, %v3329
    %v3378 = vmax.f32 %v3282, %v3330
    %v3379 = vmax.f32 %v3283, %v3331
    %v3380 = vmax.f32 %v3284, %v3332
    %v3381 = vmax.f32 %v3285, %v3333
    %v3382 = vmax.f32 %v3286, %v3334
    %v3383 = vmax.f32 %v3287, %v3335
    %v3384 = vmax.f32 %v3288, %v3336
    %v3385 = vmax.f32 %v3289, %v3337
    %v3386 = vmax.f32 %v3290, %v3338
    %v3387 = vmax.f32 %v3291, %v3339
    %v3388 = vmax.f32 %v3292, %v3340
    %v3389 = vmax.f32 %v3293, %v3341
    %v3390 = vmax.f32 %v3294, %v3342
    %v3391 = vmax.f32 %v3295, %v3343
    %v3392 = vmax.f32 %v3296, %v3344
    %v3393 = vmax.f32 %v3297, %v3345
    %v3394 = vmax.f32 %v3298, %v3346
    %v3395 = vmax.f32 %v3299, %v3347
    %v3396 = vmax.f32 %v3300, %v3348
    %v3397 = vmax.f32 %v3301, %v3349
    %v3398 = vmax.f32 %v3302, %v3350
    %v3399 = vmax.f32 %v3303, %v3351
    %v3400 = vmax.f32 %v3304, %v3352
    %v3401 = vmax.f32 %v3305, %v3353
    %v3402 = vmax.f32 %v3306, %v3354
    %v3403 = vmax.f32 %v3307, %v3355
    %v3404 = vmax.f32 %v3308, %v3356
    %v3405 = vmax.f32 %v3309, %v3357
    %v3406 = vld [vmem:[%s3] sm:$0xff]
    %v3407 = vld [vmem:[%s3 + $0x8] sm:$0xff]
    %v3408 = vld [vmem:[%s3 + $0x10] sm:$0xff]
    %v3409 = vld [vmem:[%s3 + $0x18] sm:$0xff]
    %v3410 = vld [vmem:[%s3 + $0x20] sm:$0xff]
    %v3411 = vld [vmem:[%s3 + $0x28] sm:$0xff]
    %v3412 = vld [vmem:[%s3 + $0x30] sm:$0xff]
    %v3413 = vld [vmem:[%s3 + $0x38] sm:$0xff]
    %v3414 = vld [vmem:[%s3 + $0x40] sm:$0xff]
    %v3415 = vld [vmem:[%s3 + $0x48] sm:$0xff]
    %v3416 = vld [vmem:[%s3 + $0x50] sm:$0xff]
    %v3417 = vld [vmem:[%s3 + $0x58] sm:$0xff]
    %v3418 = vld [vmem:[%s3 + $0x60] sm:$0xff]
    %v3419 = vld [vmem:[%s3 + $0x68] sm:$0xff]
    %v3420 = vld [vmem:[%s3 + $0x70] sm:$0xff]
    %v3421 = vld [vmem:[%s3 + $0x78] sm:$0xff]
    %v3422 = vld [vmem:[%s3 + $0x80] sm:$0xff]
    %v3423 = vld [vmem:[%s3 + $0x88] sm:$0xff]
    %v3424 = vld [vmem:[%s3 + $0x90] sm:$0xff]
    %v3425 = vld [vmem:[%s3 + $0x98] sm:$0xff]
    %v3426 = vld [vmem:[%s3 + $0xa0] sm:$0xff]
    %v3427 = vld [vmem:[%s3 + $0xa8] sm:$0xff]
    %v3428 = vld [vmem:[%s3 + $0xb0] sm:$0xff]
    %v3429 = vld [vmem:[%s3 + $0xb8] sm:$0xff]
    %v3430 = vld [vmem:[%s3 + $0xc0] sm:$0xff]
    %v3431 = vld [vmem:[%s3 + $0xc8] sm:$0xff]
    %v3432 = vld [vmem:[%s3 + $0xd0] sm:$0xff]
    %v3433 = vld [vmem:[%s3 + $0xd8] sm:$0xff]
    %v3434 = vld [vmem:[%s3 + $0xe0] sm:$0xff]
    %v3435 = vld [vmem:[%s3 + $0xe8] sm:$0xff]
    %v3436 = vld [vmem:[%s3 + $0xf0] sm:$0xff]
    %v3437 = vld [vmem:[%s3 + $0xf8] sm:$0xff]
    %v3438 = vld [vmem:[%s3 + $0x100] sm:$0xff]
    %v3439 = vld [vmem:[%s3 + $0x108] sm:$0xff]
    %v3440 = vld [vmem:[%s3 + $0x110] sm:$0xff]
    %v3441 = vld [vmem:[%s3 + $0x118] sm:$0xff]
    %v3442 = vld [vmem:[%s3 + $0x120] sm:$0xff]
    %v3443 = vld [vmem:[%s3 + $0x128] sm:$0xff]
    %v3444 = vld [vmem:[%s3 + $0x130] sm:$0xff]
    %v3445 = vld [vmem:[%s3 + $0x138] sm:$0xff]
    %v3446 = vld [vmem:[%s3 + $0x140] sm:$0xff]
    %v3447 = vld [vmem:[%s3 + $0x148] sm:$0xff]
    %v3448 = vld [vmem:[%s3 + $0x150] sm:$0xff]
    %v3449 = vld [vmem:[%s3 + $0x158] sm:$0xff]
    %v3450 = vld [vmem:[%s3 + $0x160] sm:$0xff]
    %v3451 = vld [vmem:[%s3 + $0x168] sm:$0xff]
    %v3452 = vld [vmem:[%s3 + $0x170] sm:$0xff]
    %v3453 = vld [vmem:[%s3 + $0x178] sm:$0xff]
    %v3454 = vld [vmem:[%s3 + $0x180] sm:$0xff]
    %v3455 = vld [vmem:[%s3 + $0x188] sm:$0xff]
    %v3456 = vld [vmem:[%s3 + $0x190] sm:$0xff]
    %v3457 = vld [vmem:[%s3 + $0x198] sm:$0xff]
    %v3458 = vld [vmem:[%s3 + $0x1a0] sm:$0xff]
    %v3459 = vld [vmem:[%s3 + $0x1a8] sm:$0xff]
    %v3460 = vld [vmem:[%s3 + $0x1b0] sm:$0xff]
    %v3461 = vld [vmem:[%s3 + $0x1b8] sm:$0xff]
    %v3462 = vld [vmem:[%s3 + $0x1c0] sm:$0xff]
    %v3463 = vld [vmem:[%s3 + $0x1c8] sm:$0xff]
    %v3464 = vld [vmem:[%s3 + $0x1d0] sm:$0xff]
    %v3465 = vld [vmem:[%s3 + $0x1d8] sm:$0xff]
    %v3466 = vld [vmem:[%s3 + $0x1e0] sm:$0xff]
    %v3467 = vld [vmem:[%s3 + $0x1e8] sm:$0xff]
    %v3468 = vld [vmem:[%s3 + $0x1f0] sm:$0xff]
    %v3469 = vld [vmem:[%s3 + $0x1f8] sm:$0xff]
    %v3470 = vld [vmem:[%s3 + $0x200] sm:$0xff]
    %v3471 = vld [vmem:[%s3 + $0x208] sm:$0xff]
    %v3472 = vld [vmem:[%s3 + $0x210] sm:$0xff]
    %v3473 = vld [vmem:[%s3 + $0x218] sm:$0xff]
    %v3474 = vld [vmem:[%s3 + $0x220] sm:$0xff]
    %v3475 = vld [vmem:[%s3 + $0x228] sm:$0xff]
    %v3476 = vld [vmem:[%s3 + $0x230] sm:$0xff]
    %v3477 = vld [vmem:[%s3 + $0x238] sm:$0xff]
    %v3478 = vld [vmem:[%s3 + $0x240] sm:$0xff]
    %v3479 = vld [vmem:[%s3 + $0x248] sm:$0xff]
    %v3480 = vld [vmem:[%s3 + $0x250] sm:$0xff]
    %v3481 = vld [vmem:[%s3 + $0x258] sm:$0xff]
    %v3482 = vld [vmem:[%s3 + $0x260] sm:$0xff]
    %v3483 = vld [vmem:[%s3 + $0x268] sm:$0xff]
    %v3484 = vld [vmem:[%s3 + $0x270] sm:$0xff]
    %v3485 = vld [vmem:[%s3 + $0x278] sm:$0xff]
    %v3486 = vld [vmem:[%s3 + $0x280] sm:$0xff]
    %v3487 = vld [vmem:[%s3 + $0x288] sm:$0xff]
    %v3488 = vld [vmem:[%s3 + $0x290] sm:$0xff]
    %v3489 = vld [vmem:[%s3 + $0x298] sm:$0xff]
    %v3490 = vld [vmem:[%s3 + $0x2a0] sm:$0xff]
    %v3491 = vld [vmem:[%s3 + $0x2a8] sm:$0xff]
    %v3492 = vld [vmem:[%s3 + $0x2b0] sm:$0xff]
    %v3493 = vld [vmem:[%s3 + $0x2b8] sm:$0xff]
    %v3494 = vld [vmem:[%s3 + $0x2c0] sm:$0xff]
    %v3495 = vld [vmem:[%s3 + $0x2c8] sm:$0xff]
    %v3496 = vld [vmem:[%s3 + $0x2d0] sm:$0xff]
    %v3497 = vld [vmem:[%s3 + $0x2d8] sm:$0xff]
    %v3498 = vld [vmem:[%s3 + $0x2e0] sm:$0xff]
    %v3499 = vld [vmem:[%s3 + $0x2e8] sm:$0xff]
    %v3500 = vld [vmem:[%s3 + $0x2f0] sm:$0xff]
    %v3501 = vld [vmem:[%s3 + $0x2f8] sm:$0xff]
    %v3502 = vld [vmem:[%s3 + $0x300] sm:$0xff]
    %v3503 = vld [vmem:[%s3 + $0x308] sm:$0xff]
    %v3504 = vld [vmem:[%s3 + $0x310] sm:$0xff]
    %v3505 = vld [vmem:[%s3 + $0x318] sm:$0xff]
    %v3506 = vld [vmem:[%s3 + $0x320] sm:$0xff]
    %v3507 = vld [vmem:[%s3 + $0x328] sm:$0xff]
    %v3508 = vld [vmem:[%s3 + $0x330] sm:$0xff]
    %v3509 = vld [vmem:[%s3 + $0x338] sm:$0xff]
    %v3510 = vld [vmem:[%s3 + $0x340] sm:$0xff]
    %v3511 = vld [vmem:[%s3 + $0x348] sm:$0xff]
    %v3512 = vld [vmem:[%s3 + $0x350] sm:$0xff]
    %v3513 = vld [vmem:[%s3 + $0x358] sm:$0xff]
    %v3514 = vld [vmem:[%s3 + $0x360] sm:$0xff]
    %v3515 = vld [vmem:[%s3 + $0x368] sm:$0xff]
    %v3516 = vld [vmem:[%s3 + $0x370] sm:$0xff]
    %v3517 = vld [vmem:[%s3 + $0x378] sm:$0xff]
    %v3518 = vld [vmem:[%s3 + $0x380] sm:$0xff]
    %v3519 = vld [vmem:[%s3 + $0x388] sm:$0xff]
    %v3520 = vld [vmem:[%s3 + $0x390] sm:$0xff]
    %v3521 = vld [vmem:[%s3 + $0x398] sm:$0xff]
    %v3522 = vld [vmem:[%s3 + $0x3a0] sm:$0xff]
    %v3523 = vld [vmem:[%s3 + $0x3a8] sm:$0xff]
    %v3524 = vld [vmem:[%s3 + $0x3b0] sm:$0xff]
    %v3525 = vld [vmem:[%s3 + $0x3b8] sm:$0xff]
    %v3526 = vld [vmem:[%s3 + $0x3c0] sm:$0xff]
    %v3527 = vld [vmem:[%s3 + $0x3c8] sm:$0xff]
    %v3528 = vld [vmem:[%s3 + $0x3d0] sm:$0xff]
    %v3529 = vld [vmem:[%s3 + $0x3d8] sm:$0xff]
    %v3530 = vld [vmem:[%s3 + $0x3e0] sm:$0xff]
    %v3531 = vld [vmem:[%s3 + $0x3e8] sm:$0xff]
    %v3532 = vld [vmem:[%s3 + $0x3f0] sm:$0xff]
    %v3533 = vld [vmem:[%s3 + $0x3f8] sm:$0xff]
    %v3534 = vld [vmem:[%s3 + $0x400] sm:$0xff]
    %v3535 = vld [vmem:[%s3 + $0x408] sm:$0xff]
    %v3536 = vld [vmem:[%s3 + $0x410] sm:$0xff]
    %v3537 = vld [vmem:[%s3 + $0x418] sm:$0xff]
    %v3538 = vld [vmem:[%s3 + $0x420] sm:$0xff]
    %v3539 = vld [vmem:[%s3 + $0x428] sm:$0xff]
    %v3540 = vld [vmem:[%s3 + $0x430] sm:$0xff]
    %v3541 = vld [vmem:[%s3 + $0x438] sm:$0xff]
    %v3542 = vld [vmem:[%s3 + $0x440] sm:$0xff]
    %v3543 = vld [vmem:[%s3 + $0x448] sm:$0xff]
    %v3544 = vld [vmem:[%s3 + $0x450] sm:$0xff]
    %v3545 = vld [vmem:[%s3 + $0x458] sm:$0xff]
    %v3546 = vld [vmem:[%s3 + $0x460] sm:$0xff]
    %v3547 = vld [vmem:[%s3 + $0x468] sm:$0xff]
    %v3548 = vld [vmem:[%s3 + $0x470] sm:$0xff]
    %v3549 = vld [vmem:[%s3 + $0x478] sm:$0xff]
    %v3550 = vld [vmem:[%s3 + $0x480] sm:$0xff]
    %v3551 = vld [vmem:[%s3 + $0x488] sm:$0xff]
    %v3552 = vld [vmem:[%s3 + $0x490] sm:$0xff]
    %v3553 = vld [vmem:[%s3 + $0x498] sm:$0xff]
    %v3554 = vld [vmem:[%s3 + $0x4a0] sm:$0xff]
    %v3555 = vld [vmem:[%s3 + $0x4a8] sm:$0xff]
    %v3556 = vld [vmem:[%s3 + $0x4b0] sm:$0xff]
    %v3557 = vld [vmem:[%s3 + $0x4b8] sm:$0xff]
    %v3558 = vld [vmem:[%s3 + $0x4c0] sm:$0xff]
    %v3559 = vld [vmem:[%s3 + $0x4c8] sm:$0xff]
    %v3560 = vld [vmem:[%s3 + $0x4d0] sm:$0xff]
    %v3561 = vld [vmem:[%s3 + $0x4d8] sm:$0xff]
    %v3562 = vld [vmem:[%s3 + $0x4e0] sm:$0xff]
    %v3563 = vld [vmem:[%s3 + $0x4e8] sm:$0xff]
    %v3564 = vld [vmem:[%s3 + $0x4f0] sm:$0xff]
    %v3565 = vld [vmem:[%s3 + $0x4f8] sm:$0xff]
    %v3566 = vld [vmem:[%s3 + $0x500] sm:$0xff]
    %v3567 = vld [vmem:[%s3 + $0x508] sm:$0xff]
    %v3568 = vld [vmem:[%s3 + $0x510] sm:$0xff]
    %v3569 = vld [vmem:[%s3 + $0x518] sm:$0xff]
    %v3570 = vld [vmem:[%s3 + $0x520] sm:$0xff]
    %v3571 = vld [vmem:[%s3 + $0x528] sm:$0xff]
    %v3572 = vld [vmem:[%s3 + $0x530] sm:$0xff]
    %v3573 = vld [vmem:[%s3 + $0x538] sm:$0xff]
    %v3574 = vld [vmem:[%s3 + $0x540] sm:$0xff]
    %v3575 = vld [vmem:[%s3 + $0x548] sm:$0xff]
    %v3576 = vld [vmem:[%s3 + $0x550] sm:$0xff]
    %v3577 = vld [vmem:[%s3 + $0x558] sm:$0xff]
    %v3578 = vld [vmem:[%s3 + $0x560] sm:$0xff]
    %v3579 = vld [vmem:[%s3 + $0x568] sm:$0xff]
    %v3580 = vld [vmem:[%s3 + $0x570] sm:$0xff]
    %v3581 = vld [vmem:[%s3 + $0x578] sm:$0xff]
    %v3582 = vld [vmem:[%s3 + $0x580] sm:$0xff]
    %v3583 = vld [vmem:[%s3 + $0x588] sm:$0xff]
    %v3584 = vld [vmem:[%s3 + $0x590] sm:$0xff]
    %v3585 = vld [vmem:[%s3 + $0x598] sm:$0xff]
    %v3586 = vld [vmem:[%s3 + $0x5a0] sm:$0xff]
    %v3587 = vld [vmem:[%s3 + $0x5a8] sm:$0xff]
    %v3588 = vld [vmem:[%s3 + $0x5b0] sm:$0xff]
    %v3589 = vld [vmem:[%s3 + $0x5b8] sm:$0xff]
    %v3590 = vld [vmem:[%s3 + $0x5c0] sm:$0xff]
    %v3591 = vld [vmem:[%s3 + $0x5c8] sm:$0xff]
    %v3592 = vld [vmem:[%s3 + $0x5d0] sm:$0xff]
    %v3593 = vld [vmem:[%s3 + $0x5d8] sm:$0xff]
    %v3594 = vld [vmem:[%s3 + $0x5e0] sm:$0xff]
    %v3595 = vld [vmem:[%s3 + $0x5e8] sm:$0xff]
    %v3596 = vld [vmem:[%s3 + $0x5f0] sm:$0xff]
    %v3597 = vld [vmem:[%s3 + $0x5f8] sm:$0xff]
    %v3598 = vld [vmem:[%s4] sm:$0xff]
    %v3599 = vld [vmem:[%s4 + $0x8] sm:$0xff]
    %v3600 = vld [vmem:[%s4 + $0x10] sm:$0xff]
    %v3601 = vld [vmem:[%s4 + $0x18] sm:$0xff]
    %v3602 = vld [vmem:[%s4 + $0x20] sm:$0xff]
    %v3603 = vld [vmem:[%s4 + $0x28] sm:$0xff]
    %v3604 = vld [vmem:[%s4 + $0x30] sm:$0xff]
    %v3605 = vld [vmem:[%s4 + $0x38] sm:$0xff]
    %v3606 = vld [vmem:[%s4 + $0x40] sm:$0xff]
    %v3607 = vld [vmem:[%s4 + $0x48] sm:$0xff]
    %v3608 = vld [vmem:[%s4 + $0x50] sm:$0xff]
    %v3609 = vld [vmem:[%s4 + $0x58] sm:$0xff]
    %v3610 = vld [vmem:[%s4 + $0x60] sm:$0xff]
    %v3611 = vld [vmem:[%s4 + $0x68] sm:$0xff]
    %v3612 = vld [vmem:[%s4 + $0x70] sm:$0xff]
    %v3613 = vld [vmem:[%s4 + $0x78] sm:$0xff]
    %v3614 = vld [vmem:[%s4 + $0x80] sm:$0xff]
    %v3615 = vld [vmem:[%s4 + $0x88] sm:$0xff]
    %v3616 = vld [vmem:[%s4 + $0x90] sm:$0xff]
    %v3617 = vld [vmem:[%s4 + $0x98] sm:$0xff]
    %v3618 = vld [vmem:[%s4 + $0xa0] sm:$0xff]
    %v3619 = vld [vmem:[%s4 + $0xa8] sm:$0xff]
    %v3620 = vld [vmem:[%s4 + $0xb0] sm:$0xff]
    %v3621 = vld [vmem:[%s4 + $0xb8] sm:$0xff]
    %v3622 = vld [vmem:[%s4 + $0xc0] sm:$0xff]
    %v3623 = vld [vmem:[%s4 + $0xc8] sm:$0xff]
    %v3624 = vld [vmem:[%s4 + $0xd0] sm:$0xff]
    %v3625 = vld [vmem:[%s4 + $0xd8] sm:$0xff]
    %v3626 = vld [vmem:[%s4 + $0xe0] sm:$0xff]
    %v3627 = vld [vmem:[%s4 + $0xe8] sm:$0xff]
    %v3628 = vld [vmem:[%s4 + $0xf0] sm:$0xff]
    %v3629 = vld [vmem:[%s4 + $0xf8] sm:$0xff]
    %v3630 = vld [vmem:[%s4 + $0x100] sm:$0xff]
    %v3631 = vld [vmem:[%s4 + $0x108] sm:$0xff]
    %v3632 = vld [vmem:[%s4 + $0x110] sm:$0xff]
    %v3633 = vld [vmem:[%s4 + $0x118] sm:$0xff]
    %v3634 = vld [vmem:[%s4 + $0x120] sm:$0xff]
    %v3635 = vld [vmem:[%s4 + $0x128] sm:$0xff]
    %v3636 = vld [vmem:[%s4 + $0x130] sm:$0xff]
    %v3637 = vld [vmem:[%s4 + $0x138] sm:$0xff]
    %v3638 = vld [vmem:[%s4 + $0x140] sm:$0xff]
    %v3639 = vld [vmem:[%s4 + $0x148] sm:$0xff]
    %v3640 = vld [vmem:[%s4 + $0x150] sm:$0xff]
    %v3641 = vld [vmem:[%s4 + $0x158] sm:$0xff]
    %v3642 = vld [vmem:[%s4 + $0x160] sm:$0xff]
    %v3643 = vld [vmem:[%s4 + $0x168] sm:$0xff]
    %v3644 = vld [vmem:[%s4 + $0x170] sm:$0xff]
    %v3645 = vld [vmem:[%s4 + $0x178] sm:$0xff]
    %v3646 = vld [vmem:[%s4 + $0x180] sm:$0xff]
    %v3647 = vld [vmem:[%s4 + $0x188] sm:$0xff]
    %v3648 = vld [vmem:[%s4 + $0x190] sm:$0xff]
    %v3649 = vld [vmem:[%s4 + $0x198] sm:$0xff]
    %v3650 = vld [vmem:[%s4 + $0x1a0] sm:$0xff]
    %v3651 = vld [vmem:[%s4 + $0x1a8] sm:$0xff]
    %v3652 = vld [vmem:[%s4 + $0x1b0] sm:$0xff]
    %v3653 = vld [vmem:[%s4 + $0x1b8] sm:$0xff]
    %v3654 = vld [vmem:[%s4 + $0x1c0] sm:$0xff]
    %v3655 = vld [vmem:[%s4 + $0x1c8] sm:$0xff]
    %v3656 = vld [vmem:[%s4 + $0x1d0] sm:$0xff]
    %v3657 = vld [vmem:[%s4 + $0x1d8] sm:$0xff]
    %v3658 = vld [vmem:[%s4 + $0x1e0] sm:$0xff]
    %v3659 = vld [vmem:[%s4 + $0x1e8] sm:$0xff]
    %v3660 = vld [vmem:[%s4 + $0x1f0] sm:$0xff]
    %v3661 = vld [vmem:[%s4 + $0x1f8] sm:$0xff]
    %3663 = vset.pattern.permute.xlu0 0
    %3664 = vperm.xlu0 %3663, %v3598
    %v3665 = vpop.permute.xlu0 %3664
    %3668 = vset.pattern.permute.xlu0 0
    %3669 = vperm.xlu0 %3668, %v3599
    %v3670 = vpop.permute.xlu0 %3669
    %3673 = vset.pattern.permute.xlu0 0
    %3674 = vperm.xlu0 %3673, %v3600
    %v3675 = vpop.permute.xlu0 %3674
    %3678 = vset.pattern.permute.xlu0 0
    %3679 = vperm.xlu0 %3678, %v3601
    %v3680 = vpop.permute.xlu0 %3679
    %3683 = vset.pattern.permute.xlu0 0
    %3684 = vperm.xlu0 %3683, %v3602
    %v3685 = vpop.permute.xlu0 %3684
    %3688 = vset.pattern.permute.xlu0 0
    %3689 = vperm.xlu0 %3688, %v3603
    %v3690 = vpop.permute.xlu0 %3689
    %3693 = vset.pattern.permute.xlu0 0
    %3694 = vperm.xlu0 %3693, %v3604
    %v3695 = vpop.permute.xlu0 %3694
    %3698 = vset.pattern.permute.xlu0 0
    %3699 = vperm.xlu0 %3698, %v3605
    %v3700 = vpop.permute.xlu0 %3699
    %3703 = vset.pattern.permute.xlu0 0
    %3704 = vperm.xlu0 %3703, %v3606
    %v3705 = vpop.permute.xlu0 %3704
    %3708 = vset.pattern.permute.xlu0 0
    %3709 = vperm.xlu0 %3708, %v3607
    %v3710 = vpop.permute.xlu0 %3709
    %3713 = vset.pattern.permute.xlu0 0
    %3714 = vperm.xlu0 %3713, %v3608
    %v3715 = vpop.permute.xlu0 %3714
    %3718 = vset.pattern.permute.xlu0 0
    %3719 = vperm.xlu0 %3718, %v3609
    %v3720 = vpop.permute.xlu0 %3719
    %3723 = vset.pattern.permute.xlu0 0
    %3724 = vperm.xlu0 %3723, %v3610
    %v3725 = vpop.permute.xlu0 %3724
    %3728 = vset.pattern.permute.xlu0 0
    %3729 = vperm.xlu0 %3728, %v3611
    %v3730 = vpop.permute.xlu0 %3729
    %3733 = vset.pattern.permute.xlu0 0
    %3734 = vperm.xlu0 %3733, %v3612
    %v3735 = vpop.permute.xlu0 %3734
    %3738 = vset.pattern.permute.xlu0 0
    %3739 = vperm.xlu0 %3738, %v3613
    %v3740 = vpop.permute.xlu0 %3739
    %3743 = vset.pattern.permute.xlu0 0
    %3744 = vperm.xlu0 %3743, %v3614
    %v3745 = vpop.permute.xlu0 %3744
    %3748 = vset.pattern.permute.xlu0 0
    %3749 = vperm.xlu0 %3748, %v3615
    %v3750 = vpop.permute.xlu0 %3749
    %3753 = vset.pattern.permute.xlu0 0
    %3754 = vperm.xlu0 %3753, %v3616
    %v3755 = vpop.permute.xlu0 %3754
    %3758 = vset.pattern.permute.xlu0 0
    %3759 = vperm.xlu0 %3758, %v3617
    %v3760 = vpop.permute.xlu0 %3759
    %3763 = vset.pattern.permute.xlu0 0
    %3764 = vperm.xlu0 %3763, %v3618
    %v3765 = vpop.permute.xlu0 %3764
    %3768 = vset.pattern.permute.xlu0 0
    %3769 = vperm.xlu0 %3768, %v3619
    %v3770 = vpop.permute.xlu0 %3769
    %3773 = vset.pattern.permute.xlu0 0
    %3774 = vperm.xlu0 %3773, %v3620
    %v3775 = vpop.permute.xlu0 %3774
    %3778 = vset.pattern.permute.xlu0 0
    %3779 = vperm.xlu0 %3778, %v3621
    %v3780 = vpop.permute.xlu0 %3779
    %3783 = vset.pattern.permute.xlu0 0
    %3784 = vperm.xlu0 %3783, %v3622
    %v3785 = vpop.permute.xlu0 %3784
    %3788 = vset.pattern.permute.xlu0 0
    %3789 = vperm.xlu0 %3788, %v3623
    %v3790 = vpop.permute.xlu0 %3789
    %3793 = vset.pattern.permute.xlu0 0
    %3794 = vperm.xlu0 %3793, %v3624
    %v3795 = vpop.permute.xlu0 %3794
    %3798 = vset.pattern.permute.xlu0 0
    %3799 = vperm.xlu0 %3798, %v3625
    %v3800 = vpop.permute.xlu0 %3799
    %3803 = vset.pattern.permute.xlu0 0
    %3804 = vperm.xlu0 %3803, %v3626
    %v3805 = vpop.permute.xlu0 %3804
    %3808 = vset.pattern.permute.xlu0 0
    %3809 = vperm.xlu0 %3808, %v3627
    %v3810 = vpop.permute.xlu0 %3809
    %3813 = vset.pattern.permute.xlu0 0
    %3814 = vperm.xlu0 %3813, %v3628
    %v3815 = vpop.permute.xlu0 %3814
    %3818 = vset.pattern.permute.xlu0 0
    %3819 = vperm.xlu0 %3818, %v3629
    %v3820 = vpop.permute.xlu0 %3819
    %3823 = vset.pattern.permute.xlu0 0
    %3824 = vperm.xlu0 %3823, %v3630
    %v3825 = vpop.permute.xlu0 %3824
    %3828 = vset.pattern.permute.xlu0 0
    %3829 = vperm.xlu0 %3828, %v3631
    %v3830 = vpop.permute.xlu0 %3829
    %3833 = vset.pattern.permute.xlu0 0
    %3834 = vperm.xlu0 %3833, %v3632
    %v3835 = vpop.permute.xlu0 %3834
    %3838 = vset.pattern.permute.xlu0 0
    %3839 = vperm.xlu0 %3838, %v3633
    %v3840 = vpop.permute.xlu0 %3839
    %3843 = vset.pattern.permute.xlu0 0
    %3844 = vperm.xlu0 %3843, %v3634
    %v3845 = vpop.permute.xlu0 %3844
    %3848 = vset.pattern.permute.xlu0 0
    %3849 = vperm.xlu0 %3848, %v3635
    %v3850 = vpop.permute.xlu0 %3849
    %3853 = vset.pattern.permute.xlu0 0
    %3854 = vperm.xlu0 %3853, %v3636
    %v3855 = vpop.permute.xlu0 %3854
    %3858 = vset.pattern.permute.xlu0 0
    %3859 = vperm.xlu0 %3858, %v3637
    %v3860 = vpop.permute.xlu0 %3859
    %3863 = vset.pattern.permute.xlu0 0
    %3864 = vperm.xlu0 %3863, %v3638
    %v3865 = vpop.permute.xlu0 %3864
    %3868 = vset.pattern.permute.xlu0 0
    %3869 = vperm.xlu0 %3868, %v3639
    %v3870 = vpop.permute.xlu0 %3869
    %3873 = vset.pattern.permute.xlu0 0
    %3874 = vperm.xlu0 %3873, %v3640
    %v3875 = vpop.permute.xlu0 %3874
    %3878 = vset.pattern.permute.xlu0 0
    %3879 = vperm.xlu0 %3878, %v3641
    %v3880 = vpop.permute.xlu0 %3879
    %3883 = vset.pattern.permute.xlu0 0
    %3884 = vperm.xlu0 %3883, %v3642
    %v3885 = vpop.permute.xlu0 %3884
    %3888 = vset.pattern.permute.xlu0 0
    %3889 = vperm.xlu0 %3888, %v3643
    %v3890 = vpop.permute.xlu0 %3889
    %3893 = vset.pattern.permute.xlu0 0
    %3894 = vperm.xlu0 %3893, %v3644
    %v3895 = vpop.permute.xlu0 %3894
    %3898 = vset.pattern.permute.xlu0 0
    %3899 = vperm.xlu0 %3898, %v3645
    %v3900 = vpop.permute.xlu0 %3899
    %3903 = vset.pattern.permute.xlu0 0
    %3904 = vperm.xlu0 %3903, %v3646
    %v3905 = vpop.permute.xlu0 %3904
    %3908 = vset.pattern.permute.xlu0 0
    %3909 = vperm.xlu0 %3908, %v3647
    %v3910 = vpop.permute.xlu0 %3909
    %3913 = vset.pattern.permute.xlu0 0
    %3914 = vperm.xlu0 %3913, %v3648
    %v3915 = vpop.permute.xlu0 %3914
    %3918 = vset.pattern.permute.xlu0 0
    %3919 = vperm.xlu0 %3918, %v3649
    %v3920 = vpop.permute.xlu0 %3919
    %3923 = vset.pattern.permute.xlu0 0
    %3924 = vperm.xlu0 %3923, %v3650
    %v3925 = vpop.permute.xlu0 %3924
    %3928 = vset.pattern.permute.xlu0 0
    %3929 = vperm.xlu0 %3928, %v3651
    %v3930 = vpop.permute.xlu0 %3929
    %3933 = vset.pattern.permute.xlu0 0
    %3934 = vperm.xlu0 %3933, %v3652
    %v3935 = vpop.permute.xlu0 %3934
    %3938 = vset.pattern.permute.xlu0 0
    %3939 = vperm.xlu0 %3938, %v3653
    %v3940 = vpop.permute.xlu0 %3939
    %3943 = vset.pattern.permute.xlu0 0
    %3944 = vperm.xlu0 %3943, %v3654
    %v3945 = vpop.permute.xlu0 %3944
    %3948 = vset.pattern.permute.xlu0 0
    %3949 = vperm.xlu0 %3948, %v3655
    %v3950 = vpop.permute.xlu0 %3949
    %3953 = vset.pattern.permute.xlu0 0
    %3954 = vperm.xlu0 %3953, %v3656
    %v3955 = vpop.permute.xlu0 %3954
    %3958 = vset.pattern.permute.xlu0 0
    %3959 = vperm.xlu0 %3958, %v3657
    %v3960 = vpop.permute.xlu0 %3959
    %3963 = vset.pattern.permute.xlu0 0
    %3964 = vperm.xlu0 %3963, %v3658
    %v3965 = vpop.permute.xlu0 %3964
    %3968 = vset.pattern.permute.xlu0 0
    %3969 = vperm.xlu0 %3968, %v3659
    %v3970 = vpop.permute.xlu0 %3969
    %3973 = vset.pattern.permute.xlu0 0
    %3974 = vperm.xlu0 %3973, %v3660
    %v3975 = vpop.permute.xlu0 %3974
    %3978 = vset.pattern.permute.xlu0 0
    %3979 = vperm.xlu0 %3978, %v3661
    %v3980 = vpop.permute.xlu0 %3979
    %3982 = vmatprep.subr.mxu0 0.0
    %3983 = vmatpush1.msra.mxu0 %v3358
    %3984 = vmatprep.subr.mxu0 0.0
    %3985 = vmatpush1.msra.mxu0 %v3359
    %3986 = vmatprep.subr.mxu0 0.0
    %3987 = vmatpush1.msra.mxu0 %v3360
    %3988 = vmatprep.subr.mxu0 0.0
    %3989 = vmatpush1.msra.mxu0 %v3361
    %3990 = vmatprep.subr.mxu0 0.0
    %3991 = vmatpush1.msra.mxu0 %v3362
    %3992 = vmatprep.subr.mxu0 0.0
    %3993 = vmatpush1.msra.mxu0 %v3363
    %3994 = vmatprep.subr.mxu0 0.0
    %3995 = vmatpush1.msra.mxu0 %v3364
    %3996 = vmatprep.subr.mxu0 0.0
    %3997 = vmatpush1.msra.mxu0 %v3365
    %3998 = vmatprep.subr.mxu0 0.0
    %3999 = vmatpush1.msra.mxu0 %v3366
    %4000 = vmatprep.subr.mxu0 0.0
    %4001 = vmatpush1.msra.mxu0 %v3367
    %4002 = vmatprep.subr.mxu0 0.0
    %4003 = vmatpush1.msra.mxu0 %v3368
    %4004 = vmatprep.subr.mxu0 0.0
    %4005 = vmatpush1.msra.mxu0 %v3369
    %4006 = vmatprep.subr.mxu0 0.0
    %4007 = vmatpush1.msra.mxu0 %v3370
    %4008 = vmatprep.subr.mxu0 0.0
    %4009 = vmatpush1.msra.mxu0 %v3371
    %4010 = vmatprep.subr.mxu0 0.0
    %4011 = vmatpush1.msra.mxu0 %v3372
    %4012 = vmatprep.subr.mxu0 0.0
    %4013 = vmatpush1.msra.mxu0 %v3373
    %4014 = vmatprep.subr.mxu0 0.0
    %4015 = vmatpush1.msra.mxu0 %v3374
    %4016 = vmatprep.subr.mxu0 0.0
    %4017 = vmatpush1.msra.mxu0 %v3375
    %4018 = vmatprep.subr.mxu0 0.0
    %4019 = vmatpush1.msra.mxu0 %v3376
    %4020 = vmatprep.subr.mxu0 0.0
    %4021 = vmatpush1.msra.mxu0 %v3377
    %4022 = vmatprep.subr.mxu0 0.0
    %4023 = vmatpush1.msra.mxu0 %v3378
    %4024 = vmatprep.subr.mxu0 0.0
    %4025 = vmatpush1.msra.mxu0 %v3379
    %4026 = vmatprep.subr.mxu0 0.0
    %4027 = vmatpush1.msra.mxu0 %v3380
    %4028 = vmatprep.subr.mxu0 0.0
    %4029 = vmatpush1.msra.mxu0 %v3381
    %4030 = vmatprep.subr.mxu0 0.0
    %4031 = vmatpush1.msra.mxu0 %v3382
    %4032 = vmatprep.subr.mxu0 0.0
    %4033 = vmatpush1.msra.mxu0 %v3383
    %4034 = vmatprep.subr.mxu0 0.0
    %4035 = vmatpush1.msra.mxu0 %v3384
    %4036 = vmatprep.subr.mxu0 0.0
    %4037 = vmatpush1.msra.mxu0 %v3385
    %4038 = vmatprep.subr.mxu0 0.0
    %4039 = vmatpush1.msra.mxu0 %v3386
    %4040 = vmatprep.subr.mxu0 0.0
    %4041 = vmatpush1.msra.mxu0 %v3387
    %4042 = vmatprep.subr.mxu0 0.0
    %4043 = vmatpush1.msra.mxu0 %v3388
    %4044 = vmatprep.subr.mxu0 0.0
    %4045 = vmatpush1.msra.mxu0 %v3389
    %4046 = vmatprep.mubr.f32.mxu0 %v3407
    %4047 = vmatmul.mubr.f32.gmra.mrb[0].mxu0 %v3406
    %v4048 = vpop.f32.mrb[0].mxu0
    %v4049 = vadd.f32 %v3665, %v4048
    %v4050 = vpop.f32.mrb[0].mxu0
    %4051 = vmatprep.mubr.f32.mxu0 %v3410
    %4052 = vmatmul.mubr.f32.gmra.mrb[0].mxu0 %v3409
    %v4053 = vpop.f32.mrb[0].mxu0
    %v4054 = vadd.f32 %v3670, %v4053
    %v4055 = vpop.f32.mrb[0].mxu0
    %4056 = vmatprep.mubr.f32.mxu0 %v3413
    %4057 = vmatmul.mubr.f32.gmra.mrb[0].mxu0 %v3412
    %v4058 = vpop.f32.mrb[0].mxu0
    %v4059 = vadd.f32 %v3675, %v4058
    %v4060 = vpop.f32.mrb[0].mxu0
    %4061 = vmatprep.mubr.f32.mxu0 %v3416
    %4062 = vmatmul.mubr.f32.gmra.mrb[0].mxu0 %v3415
    %v4063 = vpop.f32.mrb[0].mxu0
    %v4064 = vadd.f32 %v3680, %v4063
    %v4065 = vpop.f32.mrb[0].mxu0
    %4066 = vmatprep.mubr.f32.mxu0 %v3419
    %4067 = vmatmul.mubr.f32.gmra.mrb[0].mxu0 %v3418
    %v4068 = vpop.f32.mrb[0].mxu0
    %v4069 = vadd.f32 %v3685, %v4068
    %v4070 = vpop.f32.mrb[0].mxu0
    %4071 = vmatprep.mubr.f32.mxu0 %v3422
    %4072 = vmatmul.mubr.f32.gmra.mrb[0].mxu0 %v3421
    %v4073 = vpop.f32.mrb[0].mxu0
    %v4074 = vadd.f32 %v3690, %v4073
    %v4075 = vpop.f32.mrb[0].mxu0
    %4076 = vmatprep.mubr.f32.mxu0 %v3425
    %4077 = vmatmul.mubr.f32.gmra.mrb[0].mxu0 %v3424
    %v4078 = vpop.f32.mrb[0].mxu0
    %v4079 = vadd.f32 %v3695, %v4078
    %v4080 = vpop.f32.mrb[0].mxu0
    %4081 = vmatprep.mubr.f32.mxu0 %v3428
    %4082 = vmatmul.mubr.f32.gmra.mrb[0].mxu0 %v3427
    %v4083 = vpop.f32.mrb[0].mxu0
    %v4084 = vadd.f32 %v3700, %v4083
    %v4085 = vpop.f32.mrb[0].mxu0
    %4086 = vmatprep.mubr.f32.mxu0 %v3431
    %4087 = vmatmul.mubr.f32.gmra.mrb[0].mxu0 %v3430
    %v4088 = vpop.f32.mrb[0].mxu0
    %v4089 = vadd.f32 %v3705, %v4088
    %v4090 = vpop.f32.mrb[0].mxu0
    %4091 = vmatprep.mubr.f32.mxu0 %v3434
    %4092 = vmatmul.mubr.f32.gmra.mrb[0].mxu0 %v3433
    %v4093 = vpop.f32.mrb[0].mxu0
    %v4094 = vadd.f32 %v3710, %v4093
    %v4095 = vpop.f32.mrb[0].mxu0
    %4096 = vmatprep.mubr.f32.mxu0 %v3437
    %4097 = vmatmul.mubr.f32.gmra.mrb[0].mxu0 %v3436
    %v4098 = vpop.f32.mrb[0].mxu0
    %v4099 = vadd.f32 %v3715, %v4098
    %v4100 = vpop.f32.mrb[0].mxu0
    %4101 = vmatprep.mubr.f32.mxu0 %v3440
    %4102 = vmatmul.mubr.f32.gmra.mrb[0].mxu0 %v3439
    %v4103 = vpop.f32.mrb[0].mxu0
    %v4104 = vadd.f32 %v3720, %v4103
    %v4105 = vpop.f32.mrb[0].mxu0
    %4106 = vmatprep.mubr.f32.mxu0 %v3443
    %4107 = vmatmul.mubr.f32.gmra.mrb[0].mxu0 %v3442
    %v4108 = vpop.f32.mrb[0].mxu0
    %v4109 = vadd.f32 %v3725, %v4108
    %v4110 = vpop.f32.mrb[0].mxu0
    %4111 = vmatprep.mubr.f32.mxu0 %v3446
    %4112 = vmatmul.mubr.f32.gmra.mrb[0].mxu0 %v3445
    %v4113 = vpop.f32.mrb[0].mxu0
    %v4114 = vadd.f32 %v3730, %v4113
    %v4115 = vpop.f32.mrb[0].mxu0
    %4116 = vmatprep.mubr.f32.mxu0 %v3449
    %4117 = vmatmul.mubr.f32.gmra.mrb[0].mxu0 %v3448
    %v4118 = vpop.f32.mrb[0].mxu0
    %v4119 = vadd.f32 %v3735, %v4118
    %v4120 = vpop.f32.mrb[0].mxu0
    %4121 = vmatprep.mubr.f32.mxu0 %v3452
    %4122 = vmatmul.mubr.f32.gmra.mrb[0].mxu0 %v3451
    %v4123 = vpop.f32.mrb[0].mxu0
    %v4124 = vadd.f32 %v3740, %v4123
    %v4125 = vpop.f32.mrb[0].mxu0
    %4126 = vmatprep.mubr.f32.mxu0 %v3455
    %4127 = vmatmul.mubr.f32.gmra.mrb[0].mxu0 %v3454
    %v4128 = vpop.f32.mrb[0].mxu0
    %v4129 = vadd.f32 %v3745, %v4128
    %v4130 = vpop.f32.mrb[0].mxu0
    %4131 = vmatprep.mubr.f32.mxu0 %v3458
    %4132 = vmatmul.mubr.f32.gmra.mrb[0].mxu0 %v3457
    %v4133 = vpop.f32.mrb[0].mxu0
    %v4134 = vadd.f32 %v3750, %v4133
    %v4135 = vpop.f32.mrb[0].mxu0
    %4136 = vmatprep.mubr.f32.mxu0 %v3461
    %4137 = vmatmul.mubr.f32.gmra.mrb[0].mxu0 %v3460
    %v4138 = vpop.f32.mrb[0].mxu0
    %v4139 = vadd.f32 %v3755, %v4138
    %v4140 = vpop.f32.mrb[0].mxu0
    %4141 = vmatprep.mubr.f32.mxu0 %v3464
    %4142 = vmatmul.mubr.f32.gmra.mrb[0].mxu0 %v3463
    %v4143 = vpop.f32.mrb[0].mxu0
    %v4144 = vadd.f32 %v3760, %v4143
    %v4145 = vpop.f32.mrb[0].mxu0
    %4146 = vmatprep.mubr.f32.mxu0 %v3467
    %4147 = vmatmul.mubr.f32.gmra.mrb[0].mxu0 %v3466
    %v4148 = vpop.f32.mrb[0].mxu0
    %v4149 = vadd.f32 %v3765, %v4148
    %v4150 = vpop.f32.mrb[0].mxu0
    %4151 = vmatprep.mubr.f32.mxu0 %v3470
    %4152 = vmatmul.mubr.f32.gmra.mrb[0].mxu0 %v3469
    %v4153 = vpop.f32.mrb[0].mxu0
    %v4154 = vadd.f32 %v3770, %v4153
    %v4155 = vpop.f32.mrb[0].mxu0
    %4156 = vmatprep.mubr.f32.mxu0 %v3473
    %4157 = vmatmul.mubr.f32.gmra.mrb[0].mxu0 %v3472
    %v4158 = vpop.f32.mrb[0].mxu0
    %v4159 = vadd.f32 %v3775, %v4158
    %v4160 = vpop.f32.mrb[0].mxu0
    %4161 = vmatprep.mubr.f32.mxu0 %v3476
    %4162 = vmatmul.mubr.f32.gmra.mrb[0].mxu0 %v3475
    %v4163 = vpop.f32.mrb[0].mxu0
    %v4164 = vadd.f32 %v3780, %v4163
    %v4165 = vpop.f32.mrb[0].mxu0
    %4166 = vmatprep.mubr.f32.mxu0 %v3479
    %4167 = vmatmul.mubr.f32.gmra.mrb[0].mxu0 %v3478
    %v4168 = vpop.f32.mrb[0].mxu0
    %v4169 = vadd.f32 %v3785, %v4168
    %v4170 = vpop.f32.mrb[0].mxu0
    %4171 = vmatprep.mubr.f32.mxu0 %v3482
    %4172 = vmatmul.mubr.f32.gmra.mrb[0].mxu0 %v3481
    %v4173 = vpop.f32.mrb[0].mxu0
    %v4174 = vadd.f32 %v3790, %v4173
    %v4175 = vpop.f32.mrb[0].mxu0
    %4176 = vmatprep.mubr.f32.mxu0 %v3485
    %4177 = vmatmul.mubr.f32.gmra.mrb[0].mxu0 %v3484
    %v4178 = vpop.f32.mrb[0].mxu0
    %v4179 = vadd.f32 %v3795, %v4178
    %v4180 = vpop.f32.mrb[0].mxu0
    %4181 = vmatprep.mubr.f32.mxu0 %v3488
    %4182 = vmatmul.mubr.f32.gmra.mrb[0].mxu0 %v3487
    %v4183 = vpop.f32.mrb[0].mxu0
    %v4184 = vadd.f32 %v3800, %v4183
    %v4185 = vpop.f32.mrb[0].mxu0
    %4186 = vmatprep.mubr.f32.mxu0 %v3491
    %4187 = vmatmul.mubr.f32.gmra.mrb[0].mxu0 %v3490
    %v4188 = vpop.f32.mrb[0].mxu0
    %v4189 = vadd.f32 %v3805, %v4188
    %v4190 = vpop.f32.mrb[0].mxu0
    %4191 = vmatprep.mubr.f32.mxu0 %v3494
    %4192 = vmatmul.mubr.f32.gmra.mrb[0].mxu0 %v3493
    %v4193 = vpop.f32.mrb[0].mxu0
    %v4194 = vadd.f32 %v3810, %v4193
    %v4195 = vpop.f32.mrb[0].mxu0
    %4196 = vmatprep.mubr.f32.mxu0 %v3497
    %4197 = vmatmul.mubr.f32.gmra.mrb[0].mxu0 %v3496
    %v4198 = vpop.f32.mrb[0].mxu0
    %v4199 = vadd.f32 %v3815, %v4198
    %v4200 = vpop.f32.mrb[0].mxu0
    %4201 = vmatprep.mubr.f32.mxu0 %v3500
    %4202 = vmatmul.mubr.f32.gmra.mrb[0].mxu0 %v3499
    %v4203 = vpop.f32.mrb[0].mxu0
    %v4204 = vadd.f32 %v3820, %v4203
    %v4205 = vpop.f32.mrb[0].mxu0
    %4206 = vmatprep.mubr.f32.mxu0 %v3503
    %4207 = vmatmul.mubr.f32.gmra.mrb[0].mxu0 %v3502
    %v4208 = vpop.f32.mrb[0].mxu0
    %v4209 = vadd.f32 %v3825, %v4208
    %v4210 = vpop.f32.mrb[0].mxu0
    %4211 = vmatprep.mubr.f32.mxu0 %v3506
    %4212 = vmatmul.mubr.f32.gmra.mrb[0].mxu0 %v3505
    %v4213 = vpop.f32.mrb[0].mxu0
    %v4214 = vadd.f32 %v3830, %v4213
    %v4215 = vpop.f32.mrb[0].mxu0
    %4216 = vmatprep.mubr.f32.mxu0 %v3509
    %4217 = vmatmul.mubr.f32.gmra.mrb[0].mxu0 %v3508
    %v4218 = vpop.f32.mrb[0].mxu0
    %v4219 = vadd.f32 %v3835, %v4218
    %v4220 = vpop.f32.mrb[0].mxu0
    %4221 = vmatprep.mubr.f32.mxu0 %v3512
    %4222 = vmatmul.mubr.f32.gmra.mrb[0].mxu0 %v3511
    %v4223 = vpop.f32.mrb[0].mxu0
    %v4224 = vadd.f32 %v3840, %v4223
    %v4225 = vpop.f32.mrb[0].mxu0
    %4226 = vmatprep.mubr.f32.mxu0 %v3515
    %4227 = vmatmul.mubr.f32.gmra.mrb[0].mxu0 %v3514
    %v4228 = vpop.f32.mrb[0].mxu0
    %v4229 = vadd.f32 %v3845, %v4228
    %v4230 = vpop.f32.mrb[0].mxu0
    %4231 = vmatprep.mubr.f32.mxu0 %v3518
    %4232 = vmatmul.mubr.f32.gmra.mrb[0].mxu0 %v3517
    %v4233 = vpop.f32.mrb[0].mxu0
    %v4234 = vadd.f32 %v3850, %v4233
    %v4235 = vpop.f32.mrb[0].mxu0
    %4236 = vmatprep.mubr.f32.mxu0 %v3521
    %4237 = vmatmul.mubr.f32.gmra.mrb[0].mxu0 %v3520
    %v4238 = vpop.f32.mrb[0].mxu0
    %v4239 = vadd.f32 %v3855, %v4238
    %v4240 = vpop.f32.mrb[0].mxu0
    %4241 = vmatprep.mubr.f32.mxu0 %v3524
    %4242 = vmatmul.mubr.f32.gmra.mrb[0].mxu0 %v3523
    %v4243 = vpop.f32.mrb[0].mxu0
    %v4244 = vadd.f32 %v3860, %v4243
    %v4245 = vpop.f32.mrb[0].mxu0
    %4246 = vmatprep.mubr.f32.mxu0 %v3527
    %4247 = vmatmul.mubr.f32.gmra.mrb[0].mxu0 %v3526
    %v4248 = vpop.f32.mrb[0].mxu0
    %v4249 = vadd.f32 %v3865, %v4248
    %v4250 = vpop.f32.mrb[0].mxu0
    %4251 = vmatprep.mubr.f32.mxu0 %v3530
    %4252 = vmatmul.mubr.f32.gmra.mrb[0].mxu0 %v3529
    %v4253 = vpop.f32.mrb[0].mxu0
    %v4254 = vadd.f32 %v3870, %v4253
    %v4255 = vpop.f32.mrb[0].mxu0
    %4256 = vmatprep.mubr.f32.mxu0 %v3533
    %4257 = vmatmul.mubr.f32.gmra.mrb[0].mxu0 %v3532
    %v4258 = vpop.f32.mrb[0].mxu0
    %v4259 = vadd.f32 %v3875, %v4258
    %v4260 = vpop.f32.mrb[0].mxu0
    %4261 = vmatprep.mubr.f32.mxu0 %v3536
    %4262 = vmatmul.mubr.f32.gmra.mrb[0].mxu0 %v3535
    %v4263 = vpop.f32.mrb[0].mxu0
    %v4264 = vadd.f32 %v3880, %v4263
    %v4265 = vpop.f32.mrb[0].mxu0
    %4266 = vmatprep.mubr.f32.mxu0 %v3539
    %4267 = vmatmul.mubr.f32.gmra.mrb[0].mxu0 %v3538
    %v4268 = vpop.f32.mrb[0].mxu0
    %v4269 = vadd.f32 %v3885, %v4268
    %v4270 = vpop.f32.mrb[0].mxu0
    %4271 = vmatprep.mubr.f32.mxu0 %v3542
    %4272 = vmatmul.mubr.f32.gmra.mrb[0].mxu0 %v3541
    %v4273 = vpop.f32.mrb[0].mxu0
    %v4274 = vadd.f32 %v3890, %v4273
    %v4275 = vpop.f32.mrb[0].mxu0
    %4276 = vmatprep.mubr.f32.mxu0 %v3545
    %4277 = vmatmul.mubr.f32.gmra.mrb[0].mxu0 %v3544
    %v4278 = vpop.f32.mrb[0].mxu0
    %v4279 = vadd.f32 %v3895, %v4278
    %v4280 = vpop.f32.mrb[0].mxu0
    %4281 = vmatprep.mubr.f32.mxu0 %v3548
    %4282 = vmatmul.mubr.f32.gmra.mrb[0].mxu0 %v3547
    %v4283 = vpop.f32.mrb[0].mxu0
    %v4284 = vadd.f32 %v3900, %v4283
    %v4285 = vpop.f32.mrb[0].mxu0
    %4286 = vmatprep.mubr.f32.mxu0 %v3551
    %4287 = vmatmul.mubr.f32.gmra.mrb[0].mxu0 %v3550
    %v4288 = vpop.f32.mrb[0].mxu0
    %v4289 = vadd.f32 %v3905, %v4288
    %v4290 = vpop.f32.mrb[0].mxu0
    %4291 = vmatprep.mubr.f32.mxu0 %v3554
    %4292 = vmatmul.mubr.f32.gmra.mrb[0].mxu0 %v3553
    %v4293 = vpop.f32.mrb[0].mxu0
    %v4294 = vadd.f32 %v3910, %v4293
    %v4295 = vpop.f32.mrb[0].mxu0
    %4296 = vmatprep.mubr.f32.mxu0 %v3557
    %4297 = vmatmul.mubr.f32.gmra.mrb[0].mxu0 %v3556
    %v4298 = vpop.f32.mrb[0].mxu0
    %v4299 = vadd.f32 %v3915, %v4298
    %v4300 = vpop.f32.mrb[0].mxu0
    %4301 = vmatprep.mubr.f32.mxu0 %v3560
    %4302 = vmatmul.mubr.f32.gmra.mrb[0].mxu0 %v3559
    %v4303 = vpop.f32.mrb[0].mxu0
    %v4304 = vadd.f32 %v3920, %v4303
    %v4305 = vpop.f32.mrb[0].mxu0
    %4306 = vmatprep.mubr.f32.mxu0 %v3563
    %4307 = vmatmul.mubr.f32.gmra.mrb[0].mxu0 %v3562
    %v4308 = vpop.f32.mrb[0].mxu0
    %v4309 = vadd.f32 %v3925, %v4308
    %v4310 = vpop.f32.mrb[0].mxu0
    %4311 = vmatprep.mubr.f32.mxu0 %v3566
    %4312 = vmatmul.mubr.f32.gmra.mrb[0].mxu0 %v3565
    %v4313 = vpop.f32.mrb[0].mxu0
    %v4314 = vadd.f32 %v3930, %v4313
    %v4315 = vpop.f32.mrb[0].mxu0
    %4316 = vmatprep.mubr.f32.mxu0 %v3569
    %4317 = vmatmul.mubr.f32.gmra.mrb[0].mxu0 %v3568
    %v4318 = vpop.f32.mrb[0].mxu0
    %v4319 = vadd.f32 %v3935, %v4318
    %v4320 = vpop.f32.mrb[0].mxu0
    %4321 = vmatprep.mubr.f32.mxu0 %v3572
    %4322 = vmatmul.mubr.f32.gmra.mrb[0].mxu0 %v3571
    %v4323 = vpop.f32.mrb[0].mxu0
    %v4324 = vadd.f32 %v3940, %v4323
    %v4325 = vpop.f32.mrb[0].mxu0
    %4326 = vmatprep.mubr.f32.mxu0 %v3575
    %4327 = vmatmul.mubr.f32.gmra.mrb[0].mxu0 %v3574
    %v4328 = vpop.f32.mrb[0].mxu0
    %v4329 = vadd.f32 %v3945, %v4328
    %v4330 = vpop.f32.mrb[0].mxu0
    %4331 = vmatprep.mubr.f32.mxu0 %v3578
    %4332 = vmatmul.mubr.f32.gmra.mrb[0].mxu0 %v3577
    %v4333 = vpop.f32.mrb[0].mxu0
    %v4334 = vadd.f32 %v3950, %v4333
    %v4335 = vpop.f32.mrb[0].mxu0
    %4336 = vmatprep.mubr.f32.mxu0 %v3581
    %4337 = vmatmul.mubr.f32.gmra.mrb[0].mxu0 %v3580
    %v4338 = vpop.f32.mrb[0].mxu0
    %v4339 = vadd.f32 %v3955, %v4338
    %v4340 = vpop.f32.mrb[0].mxu0
    %4341 = vmatprep.mubr.f32.mxu0 %v3584
    %4342 = vmatmul.mubr.f32.gmra.mrb[0].mxu0 %v3583
    %v4343 = vpop.f32.mrb[0].mxu0
    %v4344 = vadd.f32 %v3960, %v4343
    %v4345 = vpop.f32.mrb[0].mxu0
    %4346 = vmatprep.mubr.f32.mxu0 %v3587
    %4347 = vmatmul.mubr.f32.gmra.mrb[0].mxu0 %v3586
    %v4348 = vpop.f32.mrb[0].mxu0
    %v4349 = vadd.f32 %v3965, %v4348
    %v4350 = vpop.f32.mrb[0].mxu0
    %4351 = vmatprep.mubr.f32.mxu0 %v3590
    %4352 = vmatmul.mubr.f32.gmra.mrb[0].mxu0 %v3589
    %v4353 = vpop.f32.mrb[0].mxu0
    %v4354 = vadd.f32 %v3970, %v4353
    %v4355 = vpop.f32.mrb[0].mxu0
    %4356 = vmatprep.mubr.f32.mxu0 %v3593
    %4357 = vmatmul.mubr.f32.gmra.mrb[0].mxu0 %v3592
    %v4358 = vpop.f32.mrb[0].mxu0
    %v4359 = vadd.f32 %v3975, %v4358
    %v4360 = vpop.f32.mrb[0].mxu0
    %4361 = vmatprep.mubr.f32.mxu0 %v3596
    %4362 = vmatmul.mubr.f32.gmra.mrb[0].mxu0 %v3595
    %v4363 = vpop.f32.mrb[0].mxu0
    %v4364 = vadd.f32 %v3980, %v4363
    %v4365 = vpop.f32.mrb[0].mxu0
    %4366 = vdwg.mxu0
    %4367 = vmatprep.subr.mxu0 0.0
    %4368 = vmatpush1.msra.mxu0 %v3390
    %4369 = vmatprep.subr.mxu0 0.0
    %4370 = vmatpush1.msra.mxu0 %v3391
    %4371 = vmatprep.subr.mxu0 0.0
    %4372 = vmatpush1.msra.mxu0 %v3392
    %4373 = vmatprep.subr.mxu0 0.0
    %4374 = vmatpush1.msra.mxu0 %v3393
    %4375 = vmatprep.subr.mxu0 0.0
    %4376 = vmatpush1.msra.mxu0 %v3394
    %4377 = vmatprep.subr.mxu0 0.0
    %4378 = vmatpush1.msra.mxu0 %v3395
    %4379 = vmatprep.subr.mxu0 0.0
    %4380 = vmatpush1.msra.mxu0 %v3396
    %4381 = vmatprep.subr.mxu0 0.0
    %4382 = vmatpush1.msra.mxu0 %v3397
    %4383 = vmatprep.subr.mxu0 0.0
    %4384 = vmatpush1.msra.mxu0 %v3398
    %4385 = vmatprep.subr.mxu0 0.0
    %4386 = vmatpush1.msra.mxu0 %v3399
    %4387 = vmatprep.subr.mxu0 0.0
    %4388 = vmatpush1.msra.mxu0 %v3400
    %4389 = vmatprep.subr.mxu0 0.0
    %4390 = vmatpush1.msra.mxu0 %v3401
    %4391 = vmatprep.subr.mxu0 0.0
    %4392 = vmatpush1.msra.mxu0 %v3402
    %4393 = vmatprep.subr.mxu0 0.0
    %4394 = vmatpush1.msra.mxu0 %v3403
    %4395 = vmatprep.subr.mxu0 0.0
    %4396 = vmatpush1.msra.mxu0 %v3404
    %4397 = vmatprep.subr.mxu0 0.0
    %4398 = vmatpush1.msra.mxu0 %v3405
    %4399 = vmatprep.subr.mxu0 0.0
    %4400 = vmatpush1.msra.mxu0 0.0
    %4401 = vmatprep.subr.mxu0 0.0
    %4402 = vmatpush1.msra.mxu0 0.0
    %4403 = vmatprep.subr.mxu0 0.0
    %4404 = vmatpush1.msra.mxu0 0.0
    %4405 = vmatprep.subr.mxu0 0.0
    %4406 = vmatpush1.msra.mxu0 0.0
    %4407 = vmatprep.subr.mxu0 0.0
    %4408 = vmatpush1.msra.mxu0 0.0
    %4409 = vmatprep.subr.mxu0 0.0
    %4410 = vmatpush1.msra.mxu0 0.0
    %4411 = vmatprep.subr.mxu0 0.0
    %4412 = vmatpush1.msra.mxu0 0.0
    %4413 = vmatprep.subr.mxu0 0.0
    %4414 = vmatpush1.msra.mxu0 0.0
    %4415 = vmatprep.subr.mxu0 0.0
    %4416 = vmatpush1.msra.mxu0 0.0
    %4417 = vmatprep.subr.mxu0 0.0
    %4418 = vmatpush1.msra.mxu0 0.0
    %4419 = vmatprep.subr.mxu0 0.0
    %4420 = vmatpush1.msra.mxu0 0.0
    %4421 = vmatprep.subr.mxu0 0.0
    %4422 = vmatpush1.msra.mxu0 0.0
    %4423 = vmatprep.subr.mxu0 0.0
    %4424 = vmatpush1.msra.mxu0 0.0
    %4425 = vmatprep.subr.mxu0 0.0
    %4426 = vmatpush1.msra.mxu0 0.0
    %4427 = vmatprep.subr.mxu0 0.0
    %4428 = vmatpush1.msra.mxu0 0.0
    %4429 = vmatprep.subr.mxu0 0.0
    %4430 = vmatpush1.msra.mxu0 0.0
    %4431 = vmatprep.mubr.f32.mxu0 0.0
    %4432 = vmatmul.mubr.f32.gmra.mrb[0].mxu0 %v3408
    %v4433 = vpop.f32.mrb[0].mxu0
    %v4434 = vadd.f32 %v4049, %v4433
    %v4435 = vpop.f32.mrb[0].mxu0
    %4436 = vmatprep.mubr.f32.mxu0 0.0
    %4437 = vmatmul.mubr.f32.gmra.mrb[0].mxu0 %v3411
    %v4438 = vpop.f32.mrb[0].mxu0
    %v4439 = vadd.f32 %v4054, %v4438
    %v4440 = vpop.f32.mrb[0].mxu0
    %4441 = vmatprep.mubr.f32.mxu0 0.0
    %4442 = vmatmul.mubr.f32.gmra.mrb[0].mxu0 %v3414
    %v4443 = vpop.f32.mrb[0].mxu0
    %v4444 = vadd.f32 %v4059, %v4443
    %v4445 = vpop.f32.mrb[0].mxu0
    %4446 = vmatprep.mubr.f32.mxu0 0.0
    %4447 = vmatmul.mubr.f32.gmra.mrb[0].mxu0 %v3417
    %v4448 = vpop.f32.mrb[0].mxu0
    %v4449 = vadd.f32 %v4064, %v4448
    %v4450 = vpop.f32.mrb[0].mxu0
    %4451 = vmatprep.mubr.f32.mxu0 0.0
    %4452 = vmatmul.mubr.f32.gmra.mrb[0].mxu0 %v3420
    %v4453 = vpop.f32.mrb[0].mxu0
    %v4454 = vadd.f32 %v4069, %v4453
    %v4455 = vpop.f32.mrb[0].mxu0
    %4456 = vmatprep.mubr.f32.mxu0 0.0
    %4457 = vmatmul.mubr.f32.gmra.mrb[0].mxu0 %v3423
    %v4458 = vpop.f32.mrb[0].mxu0
    %v4459 = vadd.f32 %v4074, %v4458
    %v4460 = vpop.f32.mrb[0].mxu0
    %4461 = vmatprep.mubr.f32.mxu0 0.0
    %4462 = vmatmul.mubr.f32.gmra.mrb[0].mxu0 %v3426
    %v4463 = vpop.f32.mrb[0].mxu0
    %v4464 = vadd.f32 %v4079, %v4463
    %v4465 = vpop.f32.mrb[0].mxu0
    %4466 = vmatprep.mubr.f32.mxu0 0.0
    %4467 = vmatmul.mubr.f32.gmra.mrb[0].mxu0 %v3429
    %v4468 = vpop.f32.mrb[0].mxu0
    %v4469 = vadd.f32 %v4084, %v4468
    %v4470 = vpop.f32.mrb[0].mxu0
    %4471 = vmatprep.mubr.f32.mxu0 0.0
    %4472 = vmatmul.mubr.f32.gmra.mrb[0].mxu0 %v3432
    %v4473 = vpop.f32.mrb[0].mxu0
    %v4474 = vadd.f32 %v4089, %v4473
    %v4475 = vpop.f32.mrb[0].mxu0
    %4476 = vmatprep.mubr.f32.mxu0 0.0
    %4477 = vmatmul.mubr.f32.gmra.mrb[0].mxu0 %v3435
    %v4478 = vpop.f32.mrb[0].mxu0
    %v4479 = vadd.f32 %v4094, %v4478
    %v4480 = vpop.f32.mrb[0].mxu0
    %4481 = vmatprep.mubr.f32.mxu0 0.0
    %4482 = vmatmul.mubr.f32.gmra.mrb[0].mxu0 %v3438
    %v4483 = vpop.f32.mrb[0].mxu0
    %v4484 = vadd.f32 %v4099, %v4483
    %v4485 = vpop.f32.mrb[0].mxu0
    %4486 = vmatprep.mubr.f32.mxu0 0.0
    %4487 = vmatmul.mubr.f32.gmra.mrb[0].mxu0 %v3441
    %v4488 = vpop.f32.mrb[0].mxu0
    %v4489 = vadd.f32 %v4104, %v4488
    %v4490 = vpop.f32.mrb[0].mxu0
    %4491 = vmatprep.mubr.f32.mxu0 0.0
    %4492 = vmatmul.mubr.f32.gmra.mrb[0].mxu0 %v3444
    %v4493 = vpop.f32.mrb[0].mxu0
    %v4494 = vadd.f32 %v4109, %v4493
    %v4495 = vpop.f32.mrb[0].mxu0
    %4496 = vmatprep.mubr.f32.mxu0 0.0
    %4497 = vmatmul.mubr.f32.gmra.mrb[0].mxu0 %v3447
    %v4498 = vpop.f32.mrb[0].mxu0
    %v4499 = vadd.f32 %v4114, %v4498
    %v4500 = vpop.f32.mrb[0].mxu0
    %4501 = vmatprep.mubr.f32.mxu0 0.0
    %4502 = vmatmul.mubr.f32.gmra.mrb[0].mxu0 %v3450
    %v4503 = vpop.f32.mrb[0].mxu0
    %v4504 = vadd.f32 %v4119, %v4503
    %v4505 = vpop.f32.mrb[0].mxu0
    %4506 = vmatprep.mubr.f32.mxu0 0.0
    %4507 = vmatmul.mubr.f32.gmra.mrb[0].mxu0 %v3453
    %v4508 = vpop.f32.mrb[0].mxu0
    %v4509 = vadd.f32 %v4124, %v4508
    %v4510 = vpop.f32.mrb[0].mxu0
    %4511 = vmatprep.mubr.f32.mxu0 0.0
    %4512 = vmatmul.mubr.f32.gmra.mrb[0].mxu0 %v3456
    %v4513 = vpop.f32.mrb[0].mxu0
    %v4514 = vadd.f32 %v4129, %v4513
    %v4515 = vpop.f32.mrb[0].mxu0
    %4516 = vmatprep.mubr.f32.mxu0 0.0
    %4517 = vmatmul.mubr.f32.gmra.mrb[0].mxu0 %v3459
    %v4518 = vpop.f32.mrb[0].mxu0
    %v4519 = vadd.f32 %v4134, %v4518
    %v4520 = vpop.f32.mrb[0].mxu0
    %4521 = vmatprep.mubr.f32.mxu0 0.0
    %4522 = vmatmul.mubr.f32.gmra.mrb[0].mxu0 %v3462
    %v4523 = vpop.f32.mrb[0].mxu0
    %v4524 = vadd.f32 %v4139, %v4523
    %v4525 = vpop.f32.mrb[0].mxu0
    %4526 = vmatprep.mubr.f32.mxu0 0.0
    %4527 = vmatmul.mubr.f32.gmra.mrb[0].mxu0 %v3465
    %v4528 = vpop.f32.mrb[0].mxu0
    %v4529 = vadd.f32 %v4144, %v4528
    %v4530 = vpop.f32.mrb[0].mxu0
    %4531 = vmatprep.mubr.f32.mxu0 0.0
    %4532 = vmatmul.mubr.f32.gmra.mrb[0].mxu0 %v3468
    %v4533 = vpop.f32.mrb[0].mxu0
    %v4534 = vadd.f32 %v4149, %v4533
    %v4535 = vpop.f32.mrb[0].mxu0
    %4536 = vmatprep.mubr.f32.mxu0 0.0
    %4537 = vmatmul.mubr.f32.gmra.mrb[0].mxu0 %v3471
    %v4538 = vpop.f32.mrb[0].mxu0
    %v4539 = vadd.f32 %v4154, %v4538
    %v4540 = vpop.f32.mrb[0].mxu0
    %4541 = vmatprep.mubr.f32.mxu0 0.0
    %4542 = vmatmul.mubr.f32.gmra.mrb[0].mxu0 %v3474
    %v4543 = vpop.f32.mrb[0].mxu0
    %v4544 = vadd.f32 %v4159, %v4543
    %v4545 = vpop.f32.mrb[0].mxu0
    %4546 = vmatprep.mubr.f32.mxu0 0.0
    %4547 = vmatmul.mubr.f32.gmra.mrb[0].mxu0 %v3477
    %v4548 = vpop.f32.mrb[0].mxu0
    %v4549 = vadd.f32 %v4164, %v4548
    %v4550 = vpop.f32.mrb[0].mxu0
    %4551 = vmatprep.mubr.f32.mxu0 0.0
    %4552 = vmatmul.mubr.f32.gmra.mrb[0].mxu0 %v3480
    %v4553 = vpop.f32.mrb[0].mxu0
    %v4554 = vadd.f32 %v4169, %v4553
    %v4555 = vpop.f32.mrb[0].mxu0
    %4556 = vmatprep.mubr.f32.mxu0 0.0
    %4557 = vmatmul.mubr.f32.gmra.mrb[0].mxu0 %v3483
    %v4558 = vpop.f32.mrb[0].mxu0
    %v4559 = vadd.f32 %v4174, %v4558
    %v4560 = vpop.f32.mrb[0].mxu0
    %4561 = vmatprep.mubr.f32.mxu0 0.0
    %4562 = vmatmul.mubr.f32.gmra.mrb[0].mxu0 %v3486
    %v4563 = vpop.f32.mrb[0].mxu0
    %v4564 = vadd.f32 %v4179, %v4563
    %v4565 = vpop.f32.mrb[0].mxu0
    %4566 = vmatprep.mubr.f32.mxu0 0.0
    %4567 = vmatmul.mubr.f32.gmra.mrb[0].mxu0 %v3489
    %v4568 = vpop.f32.mrb[0].mxu0
    %v4569 = vadd.f32 %v4184, %v4568
    %v4570 = vpop.f32.mrb[0].mxu0
    %4571 = vmatprep.mubr.f32.mxu0 0.0
    %4572 = vmatmul.mubr.f32.gmra.mrb[0].mxu0 %v3492
    %v4573 = vpop.f32.mrb[0].mxu0
    %v4574 = vadd.f32 %v4189, %v4573
    %v4575 = vpop.f32.mrb[0].mxu0
    %4576 = vmatprep.mubr.f32.mxu0 0.0
    %4577 = vmatmul.mubr.f32.gmra.mrb[0].mxu0 %v3495
    %v4578 = vpop.f32.mrb[0].mxu0
    %v4579 = vadd.f32 %v4194, %v4578
    %v4580 = vpop.f32.mrb[0].mxu0
    %4581 = vmatprep.mubr.f32.mxu0 0.0
    %4582 = vmatmul.mubr.f32.gmra.mrb[0].mxu0 %v3498
    %v4583 = vpop.f32.mrb[0].mxu0
    %v4584 = vadd.f32 %v4199, %v4583
    %v4585 = vpop.f32.mrb[0].mxu0
    %4586 = vmatprep.mubr.f32.mxu0 0.0
    %4587 = vmatmul.mubr.f32.gmra.mrb[0].mxu0 %v3501
    %v4588 = vpop.f32.mrb[0].mxu0
    %v4589 = vadd.f32 %v4204, %v4588
    %v4590 = vpop.f32.mrb[0].mxu0
    %4591 = vmatprep.mubr.f32.mxu0 0.0
    %4592 = vmatmul.mubr.f32.gmra.mrb[0].mxu0 %v3504
    %v4593 = vpop.f32.mrb[0].mxu0
    %v4594 = vadd.f32 %v4209, %v4593
    %v4595 = vpop.f32.mrb[0].mxu0
    %4596 = vmatprep.mubr.f32.mxu0 0.0
    %4597 = vmatmul.mubr.f32.gmra.mrb[0].mxu0 %v3507
    %v4598 = vpop.f32.mrb[0].mxu0
    %v4599 = vadd.f32 %v4214, %v4598
    %v4600 = vpop.f32.mrb[0].mxu0
    %4601 = vmatprep.mubr.f32.mxu0 0.0
    %4602 = vmatmul.mubr.f32.gmra.mrb[0].mxu0 %v3510
    %v4603 = vpop.f32.mrb[0].mxu0
    %v4604 = vadd.f32 %v4219, %v4603
    %v4605 = vpop.f32.mrb[0].mxu0
    %4606 = vmatprep.mubr.f32.mxu0 0.0
    %4607 = vmatmul.mubr.f32.gmra.mrb[0].mxu0 %v3513
    %v4608 = vpop.f32.mrb[0].mxu0
    %v4609 = vadd.f32 %v4224, %v4608
    %v4610 = vpop.f32.mrb[0].mxu0
    %4611 = vmatprep.mubr.f32.mxu0 0.0
    %4612 = vmatmul.mubr.f32.gmra.mrb[0].mxu0 %v3516
    %v4613 = vpop.f32.mrb[0].mxu0
    %v4614 = vadd.f32 %v4229, %v4613
    %v4615 = vpop.f32.mrb[0].mxu0
    %4616 = vmatprep.mubr.f32.mxu0 0.0
    %4617 = vmatmul.mubr.f32.gmra.mrb[0].mxu0 %v3519
    %v4618 = vpop.f32.mrb[0].mxu0
    %v4619 = vadd.f32 %v4234, %v4618
    %v4620 = vpop.f32.mrb[0].mxu0
    %4621 = vmatprep.mubr.f32.mxu0 0.0
    %4622 = vmatmul.mubr.f32.gmra.mrb[0].mxu0 %v3522
    %v4623 = vpop.f32.mrb[0].mxu0
    %v4624 = vadd.f32 %v4239, %v4623
    %v4625 = vpop.f32.mrb[0].mxu0
    %4626 = vmatprep.mubr.f32.mxu0 0.0
    %4627 = vmatmul.mubr.f32.gmra.mrb[0].mxu0 %v3525
    %v4628 = vpop.f32.mrb[0].mxu0
    %v4629 = vadd.f32 %v4244, %v4628
    %v4630 = vpop.f32.mrb[0].mxu0
    %4631 = vmatprep.mubr.f32.mxu0 0.0
    %4632 = vmatmul.mubr.f32.gmra.mrb[0].mxu0 %v3528
    %v4633 = vpop.f32.mrb[0].mxu0
    %v4634 = vadd.f32 %v4249, %v4633
    %v4635 = vpop.f32.mrb[0].mxu0
    %4636 = vmatprep.mubr.f32.mxu0 0.0
    %4637 = vmatmul.mubr.f32.gmra.mrb[0].mxu0 %v3531
    %v4638 = vpop.f32.mrb[0].mxu0
    %v4639 = vadd.f32 %v4254, %v4638
    %v4640 = vpop.f32.mrb[0].mxu0
    %4641 = vmatprep.mubr.f32.mxu0 0.0
    %4642 = vmatmul.mubr.f32.gmra.mrb[0].mxu0 %v3534
    %v4643 = vpop.f32.mrb[0].mxu0
    %v4644 = vadd.f32 %v4259, %v4643
    %v4645 = vpop.f32.mrb[0].mxu0
    %4646 = vmatprep.mubr.f32.mxu0 0.0
    %4647 = vmatmul.mubr.f32.gmra.mrb[0].mxu0 %v3537
    %v4648 = vpop.f32.mrb[0].mxu0
    %v4649 = vadd.f32 %v4264, %v4648
    %v4650 = vpop.f32.mrb[0].mxu0
    %4651 = vmatprep.mubr.f32.mxu0 0.0
    %4652 = vmatmul.mubr.f32.gmra.mrb[0].mxu0 %v3540
    %v4653 = vpop.f32.mrb[0].mxu0
    %v4654 = vadd.f32 %v4269, %v4653
    %v4655 = vpop.f32.mrb[0].mxu0
    %4656 = vmatprep.mubr.f32.mxu0 0.0
    %4657 = vmatmul.mubr.f32.gmra.mrb[0].mxu0 %v3543
    %v4658 = vpop.f32.mrb[0].mxu0
    %v4659 = vadd.f32 %v4274, %v4658
    %v4660 = vpop.f32.mrb[0].mxu0
    %4661 = vmatprep.mubr.f32.mxu0 0.0
    %4662 = vmatmul.mubr.f32.gmra.mrb[0].mxu0 %v3546
    %v4663 = vpop.f32.mrb[0].mxu0
    %v4664 = vadd.f32 %v4279, %v4663
    %v4665 = vpop.f32.mrb[0].mxu0
    %4666 = vmatprep.mubr.f32.mxu0 0.0
    %4667 = vmatmul.mubr.f32.gmra.mrb[0].mxu0 %v3549
    %v4668 = vpop.f32.mrb[0].mxu0
    %v4669 = vadd.f32 %v4284, %v4668
    %v4670 = vpop.f32.mrb[0].mxu0
    %4671 = vmatprep.mubr.f32.mxu0 0.0
    %4672 = vmatmul.mubr.f32.gmra.mrb[0].mxu0 %v3552
    %v4673 = vpop.f32.mrb[0].mxu0
    %v4674 = vadd.f32 %v4289, %v4673
    %v4675 = vpop.f32.mrb[0].mxu0
    %4676 = vmatprep.mubr.f32.mxu0 0.0
    %4677 = vmatmul.mubr.f32.gmra.mrb[0].mxu0 %v3555
    %v4678 = vpop.f32.mrb[0].mxu0
    %v4679 = vadd.f32 %v4294, %v4678
    %v4680 = vpop.f32.mrb[0].mxu0
    %4681 = vmatprep.mubr.f32.mxu0 0.0
    %4682 = vmatmul.mubr.f32.gmra.mrb[0].mxu0 %v3558
    %v4683 = vpop.f32.mrb[0].mxu0
    %v4684 = vadd.f32 %v4299, %v4683
    %v4685 = vpop.f32.mrb[0].mxu0
    %4686 = vmatprep.mubr.f32.mxu0 0.0
    %4687 = vmatmul.mubr.f32.gmra.mrb[0].mxu0 %v3561
    %v4688 = vpop.f32.mrb[0].mxu0
    %v4689 = vadd.f32 %v4304, %v4688
    %v4690 = vpop.f32.mrb[0].mxu0
    %4691 = vmatprep.mubr.f32.mxu0 0.0
    %4692 = vmatmul.mubr.f32.gmra.mrb[0].mxu0 %v3564
    %v4693 = vpop.f32.mrb[0].mxu0
    %v4694 = vadd.f32 %v4309, %v4693
    %v4695 = vpop.f32.mrb[0].mxu0
    %4696 = vmatprep.mubr.f32.mxu0 0.0
    %4697 = vmatmul.mubr.f32.gmra.mrb[0].mxu0 %v3567
    %v4698 = vpop.f32.mrb[0].mxu0
    %v4699 = vadd.f32 %v4314, %v4698
    %v4700 = vpop.f32.mrb[0].mxu0
    %4701 = vmatprep.mubr.f32.mxu0 0.0
    %4702 = vmatmul.mubr.f32.gmra.mrb[0].mxu0 %v3570
    %v4703 = vpop.f32.mrb[0].mxu0
    %v4704 = vadd.f32 %v4319, %v4703
    %v4705 = vpop.f32.mrb[0].mxu0
    %4706 = vmatprep.mubr.f32.mxu0 0.0
    %4707 = vmatmul.mubr.f32.gmra.mrb[0].mxu0 %v3573
    %v4708 = vpop.f32.mrb[0].mxu0
    %v4709 = vadd.f32 %v4324, %v4708
    %v4710 = vpop.f32.mrb[0].mxu0
    %4711 = vmatprep.mubr.f32.mxu0 0.0
    %4712 = vmatmul.mubr.f32.gmra.mrb[0].mxu0 %v3576
    %v4713 = vpop.f32.mrb[0].mxu0
    %v4714 = vadd.f32 %v4329, %v4713
    %v4715 = vpop.f32.mrb[0].mxu0
    %4716 = vmatprep.mubr.f32.mxu0 0.0
    %4717 = vmatmul.mubr.f32.gmra.mrb[0].mxu0 %v3579
    %v4718 = vpop.f32.mrb[0].mxu0
    %v4719 = vadd.f32 %v4334, %v4718
    %v4720 = vpop.f32.mrb[0].mxu0
    %4721 = vmatprep.mubr.f32.mxu0 0.0
    %4722 = vmatmul.mubr.f32.gmra.mrb[0].mxu0 %v3582
    %v4723 = vpop.f32.mrb[0].mxu0
    %v4724 = vadd.f32 %v4339, %v4723
    %v4725 = vpop.f32.mrb[0].mxu0
    %4726 = vmatprep.mubr.f32.mxu0 0.0
    %4727 = vmatmul.mubr.f32.gmra.mrb[0].mxu0 %v3585
    %v4728 = vpop.f32.mrb[0].mxu0
    %v4729 = vadd.f32 %v4344, %v4728
    %v4730 = vpop.f32.mrb[0].mxu0
    %4731 = vmatprep.mubr.f32.mxu0 0.0
    %4732 = vmatmul.mubr.f32.gmra.mrb[0].mxu0 %v3588
    %v4733 = vpop.f32.mrb[0].mxu0
    %v4734 = vadd.f32 %v4349, %v4733
    %v4735 = vpop.f32.mrb[0].mxu0
    %4736 = vmatprep.mubr.f32.mxu0 0.0
    %4737 = vmatmul.mubr.f32.gmra.mrb[0].mxu0 %v3591
    %v4738 = vpop.f32.mrb[0].mxu0
    %v4739 = vadd.f32 %v4354, %v4738
    %v4740 = vpop.f32.mrb[0].mxu0
    %4741 = vmatprep.mubr.f32.mxu0 0.0
    %4742 = vmatmul.mubr.f32.gmra.mrb[0].mxu0 %v3594
    %v4743 = vpop.f32.mrb[0].mxu0
    %v4744 = vadd.f32 %v4359, %v4743
    %v4745 = vpop.f32.mrb[0].mxu0
    %4746 = vmatprep.mubr.f32.mxu0 0.0
    %4747 = vmatmul.mubr.f32.gmra.mrb[0].mxu0 %v3597
    %v4748 = vpop.f32.mrb[0].mxu0
    %v4749 = vadd.f32 %v4364, %v4748
    %v4750 = vpop.f32.mrb[0].mxu0
    %4751 = vdwg.mxu0
    %vm4752 = vcmp.ge.f32.partialorder %v4434, 0.0
    %vm4753 = vcmp.ge.f32.partialorder %v4439, 0.0
    %vm4754 = vcmp.ge.f32.partialorder %v4444, 0.0
    %vm4755 = vcmp.ge.f32.partialorder %v4449, 0.0
    %vm4756 = vcmp.ge.f32.partialorder %v4454, 0.0
    %vm4757 = vcmp.ge.f32.partialorder %v4459, 0.0
    %vm4758 = vcmp.ge.f32.partialorder %v4464, 0.0
    %vm4759 = vcmp.ge.f32.partialorder %v4469, 0.0
    %vm4760 = vcmp.ge.f32.partialorder %v4474, 0.0
    %vm4761 = vcmp.ge.f32.partialorder %v4479, 0.0
    %vm4762 = vcmp.ge.f32.partialorder %v4484, 0.0
    %vm4763 = vcmp.ge.f32.partialorder %v4489, 0.0
    %vm4764 = vcmp.ge.f32.partialorder %v4494, 0.0
    %vm4765 = vcmp.ge.f32.partialorder %v4499, 0.0
    %vm4766 = vcmp.ge.f32.partialorder %v4504, 0.0
    %vm4767 = vcmp.ge.f32.partialorder %v4509, 0.0
    %vm4768 = vcmp.ge.f32.partialorder %v4514, 0.0
    %vm4769 = vcmp.ge.f32.partialorder %v4519, 0.0
    %vm4770 = vcmp.ge.f32.partialorder %v4524, 0.0
    %vm4771 = vcmp.ge.f32.partialorder %v4529, 0.0
    %vm4772 = vcmp.ge.f32.partialorder %v4534, 0.0
    %vm4773 = vcmp.ge.f32.partialorder %v4539, 0.0
    %vm4774 = vcmp.ge.f32.partialorder %v4544, 0.0
    %vm4775 = vcmp.ge.f32.partialorder %v4549, 0.0
    %vm4776 = vcmp.ge.f32.partialorder %v4554, 0.0
    %vm4777 = vcmp.ge.f32.partialorder %v4559, 0.0
    %vm4778 = vcmp.ge.f32.partialorder %v4564, 0.0
    %vm4779 = vcmp.ge.f32.partialorder %v4569, 0.0
    %vm4780 = vcmp.ge.f32.partialorder %v4574, 0.0
    %vm4781 = vcmp.ge.f32.partialorder %v4579, 0.0
    %vm4782 = vcmp.ge.f32.partialorder %v4584, 0.0
    %vm4783 = vcmp.ge.f32.partialorder %v4589, 0.0
    %vm4784 = vcmp.ge.f32.partialorder %v4594, 0.0
    %vm4785 = vcmp.ge.f32.partialorder %v4599, 0.0
    %vm4786 = vcmp.ge.f32.partialorder %v4604, 0.0
    %vm4787 = vcmp.ge.f32.partialorder %v4609, 0.0
    %vm4788 = vcmp.ge.f32.partialorder %v4614, 0.0
    %vm4789 = vcmp.ge.f32.partialorder %v4619, 0.0
    %vm4790 = vcmp.ge.f32.partialorder %v4624, 0.0
    %vm4791 = vcmp.ge.f32.partialorder %v4629, 0.0
    %vm4792 = vcmp.ge.f32.partialorder %v4634, 0.0
    %vm4793 = vcmp.ge.f32.partialorder %v4639, 0.0
    %vm4794 = vcmp.ge.f32.partialorder %v4644, 0.0
    %vm4795 = vcmp.ge.f32.partialorder %v4649, 0.0
    %vm4796 = vcmp.ge.f32.partialorder %v4654, 0.0
    %vm4797 = vcmp.ge.f32.partialorder %v4659, 0.0
    %vm4798 = vcmp.ge.f32.partialorder %v4664, 0.0
    %vm4799 = vcmp.ge.f32.partialorder %v4669, 0.0
    %vm4800 = vcmp.ge.f32.partialorder %v4674, 0.0
    %vm4801 = vcmp.ge.f32.partialorder %v4679, 0.0
    %vm4802 = vcmp.ge.f32.partialorder %v4684, 0.0
    %vm4803 = vcmp.ge.f32.partialorder %v4689, 0.0
    %vm4804 = vcmp.ge.f32.partialorder %v4694, 0.0
    %vm4805 = vcmp.ge.f32.partialorder %v4699, 0.0
    %vm4806 = vcmp.ge.f32.partialorder %v4704, 0.0
    %vm4807 = vcmp.ge.f32.partialorder %v4709, 0.0
    %vm4808 = vcmp.ge.f32.partialorder %v4714, 0.0
    %vm4809 = vcmp.ge.f32.partialorder %v4719, 0.0
    %vm4810 = vcmp.ge.f32.partialorder %v4724, 0.0
    %vm4811 = vcmp.ge.f32.partialorder %v4729, 0.0
    %vm4812 = vcmp.ge.f32.partialorder %v4734, 0.0
    %vm4813 = vcmp.ge.f32.partialorder %v4739, 0.0
    %vm4814 = vcmp.ge.f32.partialorder %v4744, 0.0
    %vm4815 = vcmp.ge.f32.partialorder %v4749, 0.0
    %v4816 = vmul.f32 %v4434, 0.01
    %v4817 = vmul.f32 %v4439, 0.01
    %v4818 = vmul.f32 %v4444, 0.01
    %v4819 = vmul.f32 %v4449, 0.01
    %v4820 = vmul.f32 %v4454, 0.01
    %v4821 = vmul.f32 %v4459, 0.01
    %v4822 = vmul.f32 %v4464, 0.01
    %v4823 = vmul.f32 %v4469, 0.01
    %v4824 = vmul.f32 %v4474, 0.01
    %v4825 = vmul.f32 %v4479, 0.01
    %v4826 = vmul.f32 %v4484, 0.01
    %v4827 = vmul.f32 %v4489, 0.01
    %v4828 = vmul.f32 %v4494, 0.01
    %v4829 = vmul.f32 %v4499, 0.01
    %v4830 = vmul.f32 %v4504, 0.01
    %v4831 = vmul.f32 %v4509, 0.01
    %v4832 = vmul.f32 %v4514, 0.01
    %v4833 = vmul.f32 %v4519, 0.01
    %v4834 = vmul.f32 %v4524, 0.01
    %v4835 = vmul.f32 %v4529, 0.01
    %v4836 = vmul.f32 %v4534, 0.01
    %v4837 = vmul.f32 %v4539, 0.01
    %v4838 = vmul.f32 %v4544, 0.01
    %v4839 = vmul.f32 %v4549, 0.01
    %v4840 = vmul.f32 %v4554, 0.01
    %v4841 = vmul.f32 %v4559, 0.01
    %v4842 = vmul.f32 %v4564, 0.01
    %v4843 = vmul.f32 %v4569, 0.01
    %v4844 = vmul.f32 %v4574, 0.01
    %v4845 = vmul.f32 %v4579, 0.01
    %v4846 = vmul.f32 %v4584, 0.01
    %v4847 = vmul.f32 %v4589, 0.01
    %v4848 = vmul.f32 %v4594, 0.01
    %v4849 = vmul.f32 %v4599, 0.01
    %v4850 = vmul.f32 %v4604, 0.01
    %v4851 = vmul.f32 %v4609, 0.01
    %v4852 = vmul.f32 %v4614, 0.01
    %v4853 = vmul.f32 %v4619, 0.01
    %v4854 = vmul.f32 %v4624, 0.01
    %v4855 = vmul.f32 %v4629, 0.01
    %v4856 = vmul.f32 %v4634, 0.01
    %v4857 = vmul.f32 %v4639, 0.01
    %v4858 = vmul.f32 %v4644, 0.01
    %v4859 = vmul.f32 %v4649, 0.01
    %v4860 = vmul.f32 %v4654, 0.01
    %v4861 = vmul.f32 %v4659, 0.01
    %v4862 = vmul.f32 %v4664, 0.01
    %v4863 = vmul.f32 %v4669, 0.01
    %v4864 = vmul.f32 %v4674, 0.01
    %v4865 = vmul.f32 %v4679, 0.01
    %v4866 = vmul.f32 %v4684, 0.01
    %v4867 = vmul.f32 %v4689, 0.01
    %v4868 = vmul.f32 %v4694, 0.01
    %v4869 = vmul.f32 %v4699, 0.01
    %v4870 = vmul.f32 %v4704, 0.01
    %v4871 = vmul.f32 %v4709, 0.01
    %v4872 = vmul.f32 %v4714, 0.01
    %v4873 = vmul.f32 %v4719, 0.01
    %v4874 = vmul.f32 %v4724, 0.01
    %v4875 = vmul.f32 %v4729, 0.01
    %v4876 = vmul.f32 %v4734, 0.01
    %v4877 = vmul.f32 %v4739, 0.01
    %v4878 = vmul.f32 %v4744, 0.01
    %v4879 = vmul.f32 %v4749, 0.01
    %v4880 = vsel %vm4752, %v4434, %v4816
    %v4881 = vsel %vm4753, %v4439, %v4817
    %v4882 = vsel %vm4754, %v4444, %v4818
    %v4883 = vsel %vm4755, %v4449, %v4819
    %v4884 = vsel %vm4756, %v4454, %v4820
    %v4885 = vsel %vm4757, %v4459, %v4821
    %v4886 = vsel %vm4758, %v4464, %v4822
    %v4887 = vsel %vm4759, %v4469, %v4823
    %v4888 = vsel %vm4760, %v4474, %v4824
    %v4889 = vsel %vm4761, %v4479, %v4825
    %v4890 = vsel %vm4762, %v4484, %v4826
    %v4891 = vsel %vm4763, %v4489, %v4827
    %v4892 = vsel %vm4764, %v4494, %v4828
    %v4893 = vsel %vm4765, %v4499, %v4829
    %v4894 = vsel %vm4766, %v4504, %v4830
    %v4895 = vsel %vm4767, %v4509, %v4831
    %v4896 = vsel %vm4768, %v4514, %v4832
    %v4897 = vsel %vm4769, %v4519, %v4833
    %v4898 = vsel %vm4770, %v4524, %v4834
    %v4899 = vsel %vm4771, %v4529, %v4835
    %v4900 = vsel %vm4772, %v4534, %v4836
    %v4901 = vsel %vm4773, %v4539, %v4837
    %v4902 = vsel %vm4774, %v4544, %v4838
    %v4903 = vsel %vm4775, %v4549, %v4839
    %v4904 = vsel %vm4776, %v4554, %v4840
    %v4905 = vsel %vm4777, %v4559, %v4841
    %v4906 = vsel %vm4778, %v4564, %v4842
    %v4907 = vsel %vm4779, %v4569, %v4843
    %v4908 = vsel %vm4780, %v4574, %v4844
    %v4909 = vsel %vm4781, %v4579, %v4845
    %v4910 = vsel %vm4782, %v4584, %v4846
    %v4911 = vsel %vm4783, %v4589, %v4847
    %v4912 = vsel %vm4784, %v4594, %v4848
    %v4913 = vsel %vm4785, %v4599, %v4849
    %v4914 = vsel %vm4786, %v4604, %v4850
    %v4915 = vsel %vm4787, %v4609, %v4851
    %v4916 = vsel %vm4788, %v4614, %v4852
    %v4917 = vsel %vm4789, %v4619, %v4853
    %v4918 = vsel %vm4790, %v4624, %v4854
    %v4919 = vsel %vm4791, %v4629, %v4855
    %v4920 = vsel %vm4792, %v4634, %v4856
    %v4921 = vsel %vm4793, %v4639, %v4857
    %v4922 = vsel %vm4794, %v4644, %v4858
    %v4923 = vsel %vm4795, %v4649, %v4859
    %v4924 = vsel %vm4796, %v4654, %v4860
    %v4925 = vsel %vm4797, %v4659, %v4861
    %v4926 = vsel %vm4798, %v4664, %v4862
    %v4927 = vsel %vm4799, %v4669, %v4863
    %v4928 = vsel %vm4800, %v4674, %v4864
    %v4929 = vsel %vm4801, %v4679, %v4865
    %v4930 = vsel %vm4802, %v4684, %v4866
    %v4931 = vsel %vm4803, %v4689, %v4867
    %v4932 = vsel %vm4804, %v4694, %v4868
    %v4933 = vsel %vm4805, %v4699, %v4869
    %v4934 = vsel %vm4806, %v4704, %v4870
    %v4935 = vsel %vm4807, %v4709, %v4871
    %v4936 = vsel %vm4808, %v4714, %v4872
    %v4937 = vsel %vm4809, %v4719, %v4873
    %v4938 = vsel %vm4810, %v4724, %v4874
    %v4939 = vsel %vm4811, %v4729, %v4875
    %v4940 = vsel %vm4812, %v4734, %v4876
    %v4941 = vsel %vm4813, %v4739, %v4877
    %v4942 = vsel %vm4814, %v4744, %v4878
    %v4943 = vsel %vm4815, %v4749, %v4879
    %v4944 = vmax.f32 %v4880, %v4896
    %v4945 = vmax.f32 %v4881, %v4897
    %v4946 = vmax.f32 %v4882, %v4898
    %v4947 = vmax.f32 %v4883, %v4899
    %v4948 = vmax.f32 %v4884, %v4900
    %v4949 = vmax.f32 %v4885, %v4901
    %v4950 = vmax.f32 %v4886, %v4902
    %v4951 = vmax.f32 %v4887, %v4903
    %v4952 = vmax.f32 %v4888, %v4904
    %v4953 = vmax.f32 %v4889, %v4905
    %v4954 = vmax.f32 %v4890, %v4906
    %v4955 = vmax.f32 %v4891, %v4907
    %v4956 = vmax.f32 %v4892, %v4908
    %v4957 = vmax.f32 %v4893, %v4909
    %v4958 = vmax.f32 %v4894, %v4910
    %v4959 = vmax.f32 %v4895, %v4911
    %v4960 = vmax.f32 %v4912, %v4928
    %v4961 = vmax.f32 %v4913, %v4929
    %v4962 = vmax.f32 %v4914, %v4930
    %v4963 = vmax.f32 %v4915, %v4931
    %v4964 = vmax.f32 %v4916, %v4932
    %v4965 = vmax.f32 %v4917, %v4933
    %v4966 = vmax.f32 %v4918, %v4934
    %v4967 = vmax.f32 %v4919, %v4935
    %v4968 = vmax.f32 %v4920, %v4936
    %v4969 = vmax.f32 %v4921, %v4937
    %v4970 = vmax.f32 %v4922, %v4938
    %v4971 = vmax.f32 %v4923, %v4939
    %v4972 = vmax.f32 %v4924, %v4940
    %v4973 = vmax.f32 %v4925, %v4941
    %v4974 = vmax.f32 %v4926, %v4942
    %v4975 = vmax.f32 %v4927, %v4943
    %v4976 = vmax.f32 %v4944, %v4960
    %v4977 = vmax.f32 %v4945, %v4961
    %v4978 = vmax.f32 %v4946, %v4962
    %v4979 = vmax.f32 %v4947, %v4963
    %v4980 = vmax.f32 %v4948, %v4964
    %v4981 = vmax.f32 %v4949, %v4965
    %v4982 = vmax.f32 %v4950, %v4966
    %v4983 = vmax.f32 %v4951, %v4967
    %v4984 = vmax.f32 %v4952, %v4968
    %v4985 = vmax.f32 %v4953, %v4969
    %v4986 = vmax.f32 %v4954, %v4970
    %v4987 = vmax.f32 %v4955, %v4971
    %v4988 = vmax.f32 %v4956, %v4972
    %v4989 = vmax.f32 %v4957, %v4973
    %v4990 = vmax.f32 %v4958, %v4974
    %v4991 = vmax.f32 %v4959, %v4975
    %v4992 = vld [vmem:[#allocation5] sm:$0xff]
    %v4993 = vld [vmem:[#allocation5 + $0x8] sm:$0xff]
    %v4994 = vld [vmem:[#allocation5 + $0x10] sm:$0xff]
    %v4995 = vld [vmem:[#allocation5 + $0x18] sm:$0xff]
    %v4996 = vld [vmem:[#allocation5 + $0x20] sm:$0xff]
    %v4997 = vld [vmem:[#allocation5 + $0x28] sm:$0xff]
    %v4998 = vld [vmem:[#allocation5 + $0x30] sm:$0xff]
    %v4999 = vld [vmem:[#allocation5 + $0x38] sm:$0xff]
    %v5000 = vld [vmem:[%s6] sm:$0xff]
    %v5001 = vld [vmem:[%s6 + $0x8] sm:$0xff]
    %v5002 = vld [vmem:[%s6 + $0x10] sm:$0xff]
    %v5003 = vld [vmem:[%s6 + $0x18] sm:$0xff]
    %v5004 = vld [vmem:[%s6 + $0x20] sm:$0xff]
    %v5005 = vld [vmem:[%s6 + $0x28] sm:$0xff]
    %v5006 = vld [vmem:[%s6 + $0x30] sm:$0xff]
    %v5007 = vld [vmem:[%s6 + $0x38] sm:$0xff]
    %5009 = vset.pattern.permute.xlu0 0
    %5010 = vperm.xlu0 %5009, %v5000
    %v5011 = vpop.permute.xlu0 %5010
    %5014 = vset.pattern.permute.xlu0 0
    %5015 = vperm.xlu0 %5014, %v5001
    %v5016 = vpop.permute.xlu0 %5015
    %5019 = vset.pattern.permute.xlu0 0
    %5020 = vperm.xlu0 %5019, %v5002
    %v5021 = vpop.permute.xlu0 %5020
    %5024 = vset.pattern.permute.xlu0 0
    %5025 = vperm.xlu0 %5024, %v5003
    %v5026 = vpop.permute.xlu0 %5025
    %5029 = vset.pattern.permute.xlu0 0
    %5030 = vperm.xlu0 %5029, %v5004
    %v5031 = vpop.permute.xlu0 %5030
    %5034 = vset.pattern.permute.xlu0 0
    %5035 = vperm.xlu0 %5034, %v5005
    %v5036 = vpop.permute.xlu0 %5035
    %5039 = vset.pattern.permute.xlu0 0
    %5040 = vperm.xlu0 %5039, %v5006
    %v5041 = vpop.permute.xlu0 %5040
    %5044 = vset.pattern.permute.xlu0 0
    %5045 = vperm.xlu0 %5044, %v5007
    %v5046 = vpop.permute.xlu0 %5045
    %5048 = vmatprep.subr.mxu0 0.0
    %5049 = vmatpush1.msra.mxu0 %v4976
    %5050 = vmatprep.subr.mxu0 0.0
    %5051 = vmatpush1.msra.mxu0 %v4977
    %5052 = vmatprep.subr.mxu0 0.0
    %5053 = vmatpush1.msra.mxu0 %v4978
    %5054 = vmatprep.subr.mxu0 0.0
    %5055 = vmatpush1.msra.mxu0 %v4979
    %5056 = vmatprep.subr.mxu0 0.0
    %5057 = vmatpush1.msra.mxu0 %v4980
    %5058 = vmatprep.subr.mxu0 0.0
    %5059 = vmatpush1.msra.mxu0 %v4981
    %5060 = vmatprep.subr.mxu0 0.0
    %5061 = vmatpush1.msra.mxu0 %v4982
    %5062 = vmatprep.subr.mxu0 0.0
    %5063 = vmatpush1.msra.mxu0 %v4983
    %5064 = vmatprep.subr.mxu0 0.0
    %5065 = vmatpush1.msra.mxu0 %v4984
    %5066 = vmatprep.subr.mxu0 0.0
    %5067 = vmatpush1.msra.mxu0 %v4985
    %5068 = vmatprep.subr.mxu0 0.0
    %5069 = vmatpush1.msra.mxu0 %v4986
    %5070 = vmatprep.subr.mxu0 0.0
    %5071 = vmatpush1.msra.mxu0 %v4987
    %5072 = vmatprep.subr.mxu0 0.0
    %5073 = vmatpush1.msra.mxu0 %v4988
    %5074 = vmatprep.subr.mxu0 0.0
    %5075 = vmatpush1.msra.mxu0 %v4989
    %5076 = vmatprep.subr.mxu0 0.0
    %5077 = vmatpush1.msra.mxu0 %v4990
    %5078 = vmatprep.subr.mxu0 0.0
    %5079 = vmatpush1.msra.mxu0 %v4991
    %5080 = vmatprep.subr.mxu0 0.0
    %5081 = vmatpush1.msra.mxu0 0.0
    %5082 = vmatprep.subr.mxu0 0.0
    %5083 = vmatpush1.msra.mxu0 0.0
    %5084 = vmatprep.subr.mxu0 0.0
    %5085 = vmatpush1.msra.mxu0 0.0
    %5086 = vmatprep.subr.mxu0 0.0
    %5087 = vmatpush1.msra.mxu0 0.0
    %5088 = vmatprep.subr.mxu0 0.0
    %5089 = vmatpush1.msra.mxu0 0.0
    %5090 = vmatprep.subr.mxu0 0.0
    %5091 = vmatpush1.msra.mxu0 0.0
    %5092 = vmatprep.subr.mxu0 0.0
    %5093 = vmatpush1.msra.mxu0 0.0
    %5094 = vmatprep.subr.mxu0 0.0
    %5095 = vmatpush1.msra.mxu0 0.0
    %5096 = vmatprep.subr.mxu0 0.0
    %5097 = vmatpush1.msra.mxu0 0.0
    %5098 = vmatprep.subr.mxu0 0.0
    %5099 = vmatpush1.msra.mxu0 0.0
    %5100 = vmatprep.subr.mxu0 0.0
    %5101 = vmatpush1.msra.mxu0 0.0
    %5102 = vmatprep.subr.mxu0 0.0
    %5103 = vmatpush1.msra.mxu0 0.0
    %5104 = vmatprep.subr.mxu0 0.0
    %5105 = vmatpush1.msra.mxu0 0.0
    %5106 = vmatprep.subr.mxu0 0.0
    %5107 = vmatpush1.msra.mxu0 0.0
    %5108 = vmatprep.subr.mxu0 0.0
    %5109 = vmatpush1.msra.mxu0 0.0
    %5110 = vmatprep.subr.mxu0 0.0
    %5111 = vmatpush1.msra.mxu0 0.0
    %5112 = vmatprep.mubr.f32.mxu0 0.0
    %5113 = vmatmul.mubr.f32.gmra.mrb[0].mxu0 %v4992
    %v5114 = vpop.f32.mrb[0].mxu0
    %v5115 = vadd.f32 %v5011, %v5114
    %v5116 = vpop.f32.mrb[0].mxu0
    %5117 = vmatprep.mubr.f32.mxu0 0.0
    %5118 = vmatmul.mubr.f32.gmra.mrb[0].mxu0 %v4993
    %v5119 = vpop.f32.mrb[0].mxu0
    %v5120 = vadd.f32 %v5016, %v5119
    %v5121 = vpop.f32.mrb[0].mxu0
    %5122 = vmatprep.mubr.f32.mxu0 0.0
    %5123 = vmatmul.mubr.f32.gmra.mrb[0].mxu0 %v4994
    %v5124 = vpop.f32.mrb[0].mxu0
    %v5125 = vadd.f32 %v5021, %v5124
    %v5126 = vpop.f32.mrb[0].mxu0
    %5127 = vmatprep.mubr.f32.mxu0 0.0
    %5128 = vmatmul.mubr.f32.gmra.mrb[0].mxu0 %v4995
    %v5129 = vpop.f32.mrb[0].mxu0
    %v5130 = vadd.f32 %v5026, %v5129
    %v5131 = vpop.f32.mrb[0].mxu0
    %5132 = vmatprep.mubr.f32.mxu0 0.0
    %5133 = vmatmul.mubr.f32.gmra.mrb[0].mxu0 %v4996
    %v5134 = vpop.f32.mrb[0].mxu0
    %v5135 = vadd.f32 %v5031, %v5134
    %v5136 = vpop.f32.mrb[0].mxu0
    %5137 = vmatprep.mubr.f32.mxu0 0.0
    %5138 = vmatmul.mubr.f32.gmra.mrb[0].mxu0 %v4997
    %v5139 = vpop.f32.mrb[0].mxu0
    %v5140 = vadd.f32 %v5036, %v5139
    %v5141 = vpop.f32.mrb[0].mxu0
    %5142 = vmatprep.mubr.f32.mxu0 0.0
    %5143 = vmatmul.mubr.f32.gmra.mrb[0].mxu0 %v4998
    %v5144 = vpop.f32.mrb[0].mxu0
    %v5145 = vadd.f32 %v5041, %v5144
    %v5146 = vpop.f32.mrb[0].mxu0
    %5147 = vmatprep.mubr.f32.mxu0 0.0
    %5148 = vmatmul.mubr.f32.gmra.mrb[0].mxu0 %v4999
    %v5149 = vpop.f32.mrb[0].mxu0
    %v5150 = vadd.f32 %v5046, %v5149
    %v5151 = vpop.f32.mrb[0].mxu0
    %5152 = vdwg.mxu0
    %vm5153 = vcmp.ge.f32.partialorder %v5115, 0.0
    %vm5154 = vcmp.ge.f32.partialorder %v5120, 0.0
    %vm5155 = vcmp.ge.f32.partialorder %v5125, 0.0
    %vm5156 = vcmp.ge.f32.partialorder %v5130, 0.0
    %vm5157 = vcmp.ge.f32.partialorder %v5135, 0.0
    %vm5158 = vcmp.ge.f32.partialorder %v5140, 0.0
    %vm5159 = vcmp.ge.f32.partialorder %v5145, 0.0
    %vm5160 = vcmp.ge.f32.partialorder %v5150, 0.0
    %v5161 = vmul.f32 %v5115, 0.01
    %v5162 = vmul.f32 %v5120, 0.01
    %v5163 = vmul.f32 %v5125, 0.01
    %v5164 = vmul.f32 %v5130, 0.01
    %v5165 = vmul.f32 %v5135, 0.01
    %v5166 = vmul.f32 %v5140, 0.01
    %v5167 = vmul.f32 %v5145, 0.01
    %v5168 = vmul.f32 %v5150, 0.01
    %v5169 = vsel %vm5153, %v5115, %v5161
    %v5170 = vsel %vm5154, %v5120, %v5162
    %v5171 = vsel %vm5155, %v5125, %v5163
    %v5172 = vsel %vm5156, %v5130, %v5164
    %v5173 = vsel %vm5157, %v5135, %v5165
    %v5174 = vsel %vm5158, %v5140, %v5166
    %v5175 = vsel %vm5159, %v5145, %v5167
    %v5176 = vsel %vm5160, %v5150, %v5168
    %v5177 = vld [vmem:[#allocation7] sm:$0xff]
    %v5178 = vld [vmem:[#allocation7 + $0x8] sm:$0xff]
    %v5179 = vld [vmem:[%s8] sm:$0xff]
    %v5180 = vld [vmem:[%s8 + $0x8] sm:$0xff]
    %5182 = vset.pattern.permute.xlu0 0
    %5183 = vperm.xlu0 %5182, %v5179
    %v5184 = vpop.permute.xlu0 %5183
    %5187 = vset.pattern.permute.xlu0 0
    %5188 = vperm.xlu0 %5187, %v5180
    %v5189 = vpop.permute.xlu0 %5188
    %vm5191 = vcmask 523264
    %v5193 = vsel %vm5191, %v5177, 0
    %v5196 = vsel %vm5191, %v5178, 0
    %5198 = vmatprep.subr.mxu0 0.0
    %5199 = vmatpush1.msra.mxu0 %v5169
    %5200 = vmatprep.subr.mxu0 0.0
    %5201 = vmatpush1.msra.mxu0 %v5170
    %5202 = vmatprep.subr.mxu0 0.0
    %5203 = vmatpush1.msra.mxu0 %v5171
    %5204 = vmatprep.subr.mxu0 0.0
    %5205 = vmatpush1.msra.mxu0 %v5172
    %5206 = vmatprep.subr.mxu0 0.0
    %5207 = vmatpush1.msra.mxu0 %v5173
    %5208 = vmatprep.subr.mxu0 0.0
    %5209 = vmatpush1.msra.mxu0 %v5174
    %5210 = vmatprep.subr.mxu0 0.0
    %5211 = vmatpush1.msra.mxu0 %v5175
    %5212 = vmatprep.subr.mxu0 0.0
    %5213 = vmatpush1.msra.mxu0 %v5176
    %5214 = vmatprep.subr.mxu0 0.0
    %5215 = vmatpush1.msra.mxu0 0.0
    %5216 = vmatprep.subr.mxu0 0.0
    %5217 = vmatpush1.msra.mxu0 0.0
    %5218 = vmatprep.subr.mxu0 0.0
    %5219 = vmatpush1.msra.mxu0 0.0
    %5220 = vmatprep.subr.mxu0 0.0
    %5221 = vmatpush1.msra.mxu0 0.0
    %5222 = vmatprep.subr.mxu0 0.0
    %5223 = vmatpush1.msra.mxu0 0.0
    %5224 = vmatprep.subr.mxu0 0.0
    %5225 = vmatpush1.msra.mxu0 0.0
    %5226 = vmatprep.subr.mxu0 0.0
    %5227 = vmatpush1.msra.mxu0 0.0
    %5228 = vmatprep.subr.mxu0 0.0
    %5229 = vmatpush1.msra.mxu0 0.0
    %5230 = vmatprep.subr.mxu0 0.0
    %5231 = vmatpush1.msra.mxu0 0.0
    %5232 = vmatprep.subr.mxu0 0.0
    %5233 = vmatpush1.msra.mxu0 0.0
    %5234 = vmatprep.subr.mxu0 0.0
    %5235 = vmatpush1.msra.mxu0 0.0
    %5236 = vmatprep.subr.mxu0 0.0
    %5237 = vmatpush1.msra.mxu0 0.0
    %5238 = vmatprep.subr.mxu0 0.0
    %5239 = vmatpush1.msra.mxu0 0.0
    %5240 = vmatprep.subr.mxu0 0.0
    %5241 = vmatpush1.msra.mxu0 0.0
    %5242 = vmatprep.subr.mxu0 0.0
    %5243 = vmatpush1.msra.mxu0 0.0
    %5244 = vmatprep.subr.mxu0 0.0
    %5245 = vmatpush1.msra.mxu0 0.0
    %5246 = vmatprep.subr.mxu0 0.0
    %5247 = vmatpush1.msra.mxu0 0.0
    %5248 = vmatprep.subr.mxu0 0.0
    %5249 = vmatpush1.msra.mxu0 0.0
    %5250 = vmatprep.subr.mxu0 0.0
    %5251 = vmatpush1.msra.mxu0 0.0
    %5252 = vmatprep.subr.mxu0 0.0
    %5253 = vmatpush1.msra.mxu0 0.0
    %5254 = vmatprep.subr.mxu0 0.0
    %5255 = vmatpush1.msra.mxu0 0.0
    %5256 = vmatprep.subr.mxu0 0.0
    %5257 = vmatpush1.msra.mxu0 0.0
    %5258 = vmatprep.subr.mxu0 0.0
    %5259 = vmatpush1.msra.mxu0 0.0
    %5260 = vmatprep.subr.mxu0 0.0
    %5261 = vmatpush1.msra.mxu0 0.0
    %5262 = vmatprep.mubr.f32.mxu0 0.0
    %5263 = vmatmul.mubr.f32.gmra.mrb[0].mxu0 %v5193
    %v5264 = vpop.f32.mrb[0].mxu0
    %v5265 = vadd.f32 %v5184, %v5264
    %v5266 = vpop.f32.mrb[0].mxu0
    %5267 = vmatprep.mubr.f32.mxu0 0.0
    %5268 = vmatmul.mubr.f32.gmra.mrb[0].mxu0 %v5196
    %v5269 = vpop.f32.mrb[0].mxu0
    %v5270 = vadd.f32 %v5189, %v5269
    %v5271 = vpop.f32.mrb[0].mxu0
    %5272 = vdwg.mxu0
    %vm5273 = vcmp.ge.f32.partialorder %v5265, 0.0
    %vm5274 = vcmp.ge.f32.partialorder %v5270, 0.0
    %v5275 = vmul.f32 %v5265, 0.01
    %v5276 = vmul.f32 %v5270, 0.01
    %v5277 = vsel %vm5273, %v5265, %v5275
    %v5278 = vsel %vm5274, %v5270, %v5276
    %v5279 = vld [vmem:[#allocation8] sm:$0x1]
    %v5280 = vld [vmem:[#allocation2] sm:$0x1]
    %5282 = vset.pattern.permute.xlu0 0
    %5283 = vperm.xlu0 %5282, %v5280
    %v5284 = vpop.permute.xlu0 %5283
    %v5286 = vlaneseq
    %v5287 = vshrl.u32 %v5286, 7
    %v5288 = vsub.s32 0, %v5287
    %v5289 = vrot.slane %v5284, %v5288
    %vm5290 = vcmask 130048
    %v5292 = vsel %vm5290, %v5279, 0
    %5294 = vmatprep.subr.mxu0 0.0
    %5295 = vmatpush1.msra.mxu0 %v5277
    %5296 = vmatprep.subr.mxu0 0.0
    %5297 = vmatpush1.msra.mxu0 %v5278
    %5298 = vmatprep.subr.mxu0 0.0
    %5299 = vmatpush1.msra.mxu0 0.0
    %5300 = vmatprep.subr.mxu0 0.0
    %5301 = vmatpush1.msra.mxu0 0.0
    %5302 = vmatprep.subr.mxu0 0.0
    %5303 = vmatpush1.msra.mxu0 0.0
    %5304 = vmatprep.subr.mxu0 0.0
    %5305 = vmatpush1.msra.mxu0 0.0
    %5306 = vmatprep.subr.mxu0 0.0
    %5307 = vmatpush1.msra.mxu0 0.0
    %5308 = vmatprep.subr.mxu0 0.0
    %5309 = vmatpush1.msra.mxu0 0.0
    %5310 = vmatprep.subr.mxu0 0.0
    %5311 = vmatpush1.msra.mxu0 0.0
    %5312 = vmatprep.subr.mxu0 0.0
    %5313 = vmatpush1.msra.mxu0 0.0
    %5314 = vmatprep.subr.mxu0 0.0
    %5315 = vmatpush1.msra.mxu0 0.0
    %5316 = vmatprep.subr.mxu0 0.0
    %5317 = vmatpush1.msra.mxu0 0.0
    %5318 = vmatprep.subr.mxu0 0.0
    %5319 = vmatpush1.msra.mxu0 0.0
    %5320 = vmatprep.subr.mxu0 0.0
    %5321 = vmatpush1.msra.mxu0 0.0
    %5322 = vmatprep.subr.mxu0 0.0
    %5323 = vmatpush1.msra.mxu0 0.0
    %5324 = vmatprep.subr.mxu0 0.0
    %5325 = vmatpush1.msra.mxu0 0.0
    %5326 = vmatprep.subr.mxu0 0.0
    %5327 = vmatpush1.msra.mxu0 0.0
    %5328 = vmatprep.subr.mxu0 0.0
    %5329 = vmatpush1.msra.mxu0 0.0
    %5330 = vmatprep.subr.mxu0 0.0
    %5331 = vmatpush1.msra.mxu0 0.0
    %5332 = vmatprep.subr.mxu0 0.0
    %5333 = vmatpush1.msra.mxu0 0.0
    %5334 = vmatprep.subr.mxu0 0.0
    %5335 = vmatpush1.msra.mxu0 0.0
    %5336 = vmatprep.subr.mxu0 0.0
    %5337 = vmatpush1.msra.mxu0 0.0
    %5338 = vmatprep.subr.mxu0 0.0
    %5339 = vmatpush1.msra.mxu0 0.0
    %5340 = vmatprep.subr.mxu0 0.0
    %5341 = vmatpush1.msra.mxu0 0.0
    %5342 = vmatprep.subr.mxu0 0.0
    %5343 = vmatpush1.msra.mxu0 0.0
    %5344 = vmatprep.subr.mxu0 0.0
    %5345 = vmatpush1.msra.mxu0 0.0
    %5346 = vmatprep.subr.mxu0 0.0
    %5347 = vmatpush1.msra.mxu0 0.0
    %5348 = vmatprep.subr.mxu0 0.0
    %5349 = vmatpush1.msra.mxu0 0.0
    %5350 = vmatprep.subr.mxu0 0.0
    %5351 = vmatpush1.msra.mxu0 0.0
    %5352 = vmatprep.subr.mxu0 0.0
    %5353 = vmatpush1.msra.mxu0 0.0
    %5354 = vmatprep.subr.mxu0 0.0
    %5355 = vmatpush1.msra.mxu0 0.0
    %5356 = vmatprep.subr.mxu0 0.0
    %5357 = vmatpush1.msra.mxu0 0.0
    %5358 = vmatprep.mubr.f32.mxu0 0.0
    %5359 = vmatmul.mubr.f32.gmra.mrb[0].mxu0 %v5292
    %v5360 = vpop.f32.mrb[0].mxu0
    %v5361 = vadd.f32 %v5289, %v5360
    %v5362 = vpop.f32.mrb[0].mxu0
    %5363 = vdwg.mxu0
    %5364 = vst [vmem:[%s11] sm:$0x1] %v5361
    // Predicated region
    $region62: #{convnet_forward.1} parent=1 // pred_check
      _
    $region63: #{convnet_forward.1} parent=1 // pred_check_branch
      %5366 = sbr.rel (0) target = $region65
    $region64: #{convnet_forward.1} parent=1 // pred_region
      _
    $region65: #{convnet_forward.1} parent=1 // pred_fallthru
      _
    // Predicated region
    $region66: #{convnet_forward.1} parent=1 // pred_check
      _
    $region67: #{convnet_forward.1} parent=1 // pred_check_branch
      %5368 = sbr.rel (0) target = $region69
    $region68: #{convnet_forward.1} parent=1 // pred_region
      _
    $region69: #{convnet_forward.1} parent=1 // pred_fallthru
      _
    %5369 = vsyncpa [#allocation4], 1
    %5370 = vsyncpa [#allocation6], 1
    %5371 = vsyncpa [#allocation9], 1

</llo_original>
